<compile_context>
chip_gen: v6e
topology: v6e:2x2x1
jax: 0.10.0
libtpu: 0.0.40
codegen_flags: <defaults>
</compile_context>

<pallas_src>
import functools
import math

import jax
import jax.numpy as jnp
from jax.experimental import pallas as pl
from jax.experimental.pallas import tpu as pltpu


# ----------------------------------------------------------------------------
# Tile picking helpers
# ----------------------------------------------------------------------------
def _pick_tile(dim, target, unit):
    """Largest multiple of `unit` (<= target) that divides `dim`, else full dim."""
    if dim <= target:
        return dim
    t = (target // unit) * unit
    while t >= unit:
        if dim % t == 0:
            return t
        t -= unit
    return dim


# ----------------------------------------------------------------------------
# Kernel 1: tiled matmul + bias (+ optional ReLU).  y = x @ w + b
#   x: [M, K]   w: [K, N] (stored (in, out))   b: [1, N]
# ----------------------------------------------------------------------------
def _linear_kernel(x_ref, w_ref, b_ref, o_ref, acc_ref, *, activation):
    @pl.when(pl.program_id(2) == 0)
    def _():
        acc_ref[...] = jnp.zeros_like(acc_ref)

    acc_ref[...] += jnp.dot(x_ref[...], w_ref[...],
                            preferred_element_type=jnp.float32)

    @pl.when(pl.program_id(2) == pl.num_programs(2) - 1)
    def _():
        y = acc_ref[...] + b_ref[...].astype(jnp.float32)
        if activation == "relu":
            y = jnp.maximum(y, 0.0)
        o_ref[...] = y.astype(o_ref.dtype)


def pallas_linear(x, w, b, activation=None):
    M, K = x.shape
    Kw, N = w.shape
    assert K == Kw
    b = b.reshape(1, N)

    tm = _pick_tile(M, 256, 8)
    tn = _pick_tile(N, 256, 128)
    tk = _pick_tile(K, 512, 128)
    grid = (M // tm, N // tn, K // tk)

    return pl.pallas_call(
        functools.partial(_linear_kernel, activation=activation),
        out_shape=jax.ShapeDtypeStruct((M, N), x.dtype),
        grid_spec=pltpu.PrefetchScalarGridSpec(
            num_scalar_prefetch=0,
            grid=grid,
            in_specs=[
                pl.BlockSpec((tm, tk), lambda i, j, k: (i, k)),
                pl.BlockSpec((tk, tn), lambda i, j, k: (k, j)),
                pl.BlockSpec((1, tn), lambda i, j, k: (0, j)),
            ],
            out_specs=pl.BlockSpec((tm, tn), lambda i, j, k: (i, j)),
            scratch_shapes=[pltpu.VMEM((tm, tn), jnp.float32)],
        ),
        compiler_params=pltpu.CompilerParams(
            dimension_semantics=("parallel", "parallel", "arbitrary")),
    )(x, w, b)


# ----------------------------------------------------------------------------
# Kernel 2: matmul + bias + residual add + LayerNorm (post-norm sublayer tail).
#   y = LayerNorm(residual + x @ w + b) * gamma + beta
# Requires the full output feature dim N in one block (needed for mean/var).
# ----------------------------------------------------------------------------
def _linear_res_ln_kernel(x_ref, w_ref, b_ref, r_ref, g_ref, bt_ref, o_ref,
                          acc_ref, *, eps):
    @pl.when(pl.program_id(1) == 0)
    def _():
        acc_ref[...] = jnp.zeros_like(acc_ref)

    acc_ref[...] += jnp.dot(x_ref[...], w_ref[...],
                            preferred_element_type=jnp.float32)

    @pl.when(pl.program_id(1) == pl.num_programs(1) - 1)
    def _():
        z = (acc_ref[...] + b_ref[...].astype(jnp.float32)
             + r_ref[...].astype(jnp.float32))
        mean = jnp.mean(z, axis=-1, keepdims=True)
        zc = z - mean
        var = jnp.mean(zc * zc, axis=-1, keepdims=True)
        inv = jax.lax.rsqrt(var + eps)
        o_ref[...] = (zc * inv * g_ref[...].astype(jnp.float32)
                      + bt_ref[...].astype(jnp.float32)).astype(o_ref.dtype)


def pallas_linear_res_ln(x, w, b, residual, gamma, beta, eps=1e-5):
    M, K = x.shape
    Kw, N = w.shape
    assert K == Kw
    b = b.reshape(1, N)
    gamma = gamma.reshape(1, N)
    beta = beta.reshape(1, N)

    tm = _pick_tile(M, 256, 8)
    tk = _pick_tile(K, 512, 128)
    grid = (M // tm, K // tk)

    return pl.pallas_call(
        functools.partial(_linear_res_ln_kernel, eps=eps),
        out_shape=jax.ShapeDtypeStruct((M, N), x.dtype),
        grid_spec=pltpu.PrefetchScalarGridSpec(
            num_scalar_prefetch=0,
            grid=grid,
            in_specs=[
                pl.BlockSpec((tm, tk), lambda i, k: (i, k)),
                pl.BlockSpec((tk, N), lambda i, k: (k, 0)),
                pl.BlockSpec((1, N), lambda i, k: (0, 0)),
                pl.BlockSpec((tm, N), lambda i, k: (i, 0)),
                pl.BlockSpec((1, N), lambda i, k: (0, 0)),
                pl.BlockSpec((1, N), lambda i, k: (0, 0)),
            ],
            out_specs=pl.BlockSpec((tm, N), lambda i, k: (i, 0)),
            scratch_shapes=[pltpu.VMEM((tm, N), jnp.float32)],
        ),
        compiler_params=pltpu.CompilerParams(
            dimension_semantics=("parallel", "arbitrary")),
    )(x, w, b, residual, gamma, beta)


# ----------------------------------------------------------------------------
# Kernel 3: flash-style attention.  softmax(q k^T * scale) v
#   q: [BH, L, Dh]   k, v: [BH, S, Dh]   ->  [BH, L, Dh]
# Grid batches `tb` (batch*head) slices per step; kv axis is the trailing
# "arbitrary" reduction axis with f32 m/l/acc scratch (online softmax).
# ----------------------------------------------------------------------------
def _flash_attn_kernel(q_ref, k_ref, v_ref, o_ref, m_sc, l_sc, acc_sc, *, scale):
    kv = pl.program_id(2)

    @pl.when(kv == 0)
    def _():
        m_sc[...] = jnp.full_like(m_sc, -jnp.inf)
        l_sc[...] = jnp.zeros_like(l_sc)
        acc_sc[...] = jnp.zeros_like(acc_sc)

    q = q_ref[...].astype(jnp.float32) * scale            # (tb, tq, Dh)
    k = k_ref[...].astype(jnp.float32)                     # (tb, ts, Dh)
    s = jnp.einsum("bqd,bkd->bqk", q, k,
                   preferred_element_type=jnp.float32)     # (tb, tq, ts)

    m_prev = m_sc[...]
    m_new = jnp.maximum(m_prev, jnp.max(s, axis=-1, keepdims=True))
    alpha = jnp.exp(m_prev - m_new)
    p = jnp.exp(s - m_new)
    l_sc[...] = alpha * l_sc[...] + jnp.sum(p, axis=-1, keepdims=True)
    acc_sc[...] = alpha * acc_sc[...] + jnp.einsum(
        "bqk,bkd->bqd", p.astype(v_ref.dtype), v_ref[...],
        preferred_element_type=jnp.float32)
    m_sc[...] = m_new

    @pl.when(kv == pl.num_programs(2) - 1)
    def _():
        o_ref[...] = (acc_sc[...] *
                      pl.reciprocal(l_sc[...], approx=True)).astype(o_ref.dtype)


def pallas_attention(q, k, v, scale):
    BH, L, Dh = q.shape
    S = k.shape[1]
    tq = _pick_tile(L, 256, 8)
    ts = _pick_tile(S, 256, 8)

    # Pick the largest divisor of BH whose VMEM footprint (double-buffered
    # q/k/v/o blocks + f32 scratch + score tile) stays within a small budget.
    per_bh = 4 * (2 * (2 * tq * Dh + 2 * ts * Dh) + tq * ts + 2 * tq + tq * Dh)
    max_tb = max(1, (8 * 1024 * 1024) // max(per_bh, 1))
    tb = 1
    for d in range(1, BH + 1):
        if BH % d == 0 and d <= max_tb:
            tb = d
    grid = (BH // tb, L // tq, S // ts)

    return pl.pallas_call(
        functools.partial(_flash_attn_kernel, scale=scale),
        out_shape=jax.ShapeDtypeStruct((BH, L, Dh), q.dtype),
        grid_spec=pltpu.PrefetchScalarGridSpec(
            num_scalar_prefetch=0,
            grid=grid,
            in_specs=[
                pl.BlockSpec((tb, tq, Dh), lambda b, i, j: (b, i, 0)),
                pl.BlockSpec((tb, ts, Dh), lambda b, i, j: (b, j, 0)),
                pl.BlockSpec((tb, ts, Dh), lambda b, i, j: (b, j, 0)),
            ],
            out_specs=pl.BlockSpec((tb, tq, Dh), lambda b, i, j: (b, i, 0)),
            scratch_shapes=[
                pltpu.VMEM((tb, tq, 1), jnp.float32),
                pltpu.VMEM((tb, tq, 1), jnp.float32),
                pltpu.VMEM((tb, tq, Dh), jnp.float32),
            ],
        ),
        compiler_params=pltpu.CompilerParams(
            dimension_semantics=("parallel", "parallel", "arbitrary")),
    )(q, k, v)


# ----------------------------------------------------------------------------
# Kernel 4: plain LayerNorm over the last dim (final encoder/decoder norms).
#   x: [M, H]   gamma, beta: [1, H]
# ----------------------------------------------------------------------------
def _ln_kernel(x_ref, g_ref, b_ref, o_ref, *, eps):
    xf = x_ref[...].astype(jnp.float32)
    mean = jnp.mean(xf, axis=-1, keepdims=True)
    xc = xf - mean
    var = jnp.mean(xc * xc, axis=-1, keepdims=True)
    inv = jax.lax.rsqrt(var + eps)
    o_ref[...] = (xc * inv * g_ref[...].astype(jnp.float32)
                  + b_ref[...].astype(jnp.float32)).astype(o_ref.dtype)


def pallas_layer_norm(x, gamma, beta, eps=1e-5):
    M, H = x.shape
    gamma = gamma.reshape(1, H)
    beta = beta.reshape(1, H)
    tm = _pick_tile(M, 512, 8)
    grid = (M // tm,)
    row_spec = pl.BlockSpec((tm, H), lambda i: (i, 0))
    vec_spec = pl.BlockSpec((1, H), lambda i: (0, 0))

    return pl.pallas_call(
        functools.partial(_ln_kernel, eps=eps),
        out_shape=jax.ShapeDtypeStruct((M, H), x.dtype),
        grid_spec=pltpu.PrefetchScalarGridSpec(
            num_scalar_prefetch=0,
            grid=grid,
            in_specs=[row_spec, vec_spec, vec_spec],
            out_specs=row_spec,
        ),
        compiler_params=pltpu.CompilerParams(dimension_semantics=("parallel",)),
    )(x, gamma, beta)


# ----------------------------------------------------------------------------
# Pure-jnp reference ops (same signatures) used only for correctness checking.
# ----------------------------------------------------------------------------
def _ref_linear(x, w, b, activation=None):
    y = jnp.dot(x, w, precision=jax.lax.Precision.HIGHEST) + b.reshape(1, -1)
    if activation == "relu":
        y = jnp.maximum(y, 0.0)
    return y


def _ref_linear_res_ln(x, w, b, residual, gamma, beta, eps=1e-5):
    z = jnp.dot(x, w, precision=jax.lax.Precision.HIGHEST) + b.reshape(1, -1)
    z = z + residual
    mean = jnp.mean(z, axis=-1, keepdims=True)
    var = jnp.mean((z - mean) ** 2, axis=-1, keepdims=True)
    return (z - mean) * jax.lax.rsqrt(var + eps) * gamma.reshape(1, -1) \
        + beta.reshape(1, -1)


def _ref_attention(q, k, v, scale):
    s = jnp.einsum("bqd,bkd->bqk", q, k,
                   precision=jax.lax.Precision.HIGHEST) * scale
    p = jax.nn.softmax(s, axis=-1)
    return jnp.einsum("bqk,bkd->bqd", p, v, precision=jax.lax.Precision.HIGHEST)


def _ref_layer_norm(x, gamma, beta, eps=1e-5):
    mean = jnp.mean(x, axis=-1, keepdims=True)
    var = jnp.mean((x - mean) ** 2, axis=-1, keepdims=True)
    return (x - mean) * jax.lax.rsqrt(var + eps) * gamma.reshape(1, -1) \
        + beta.reshape(1, -1)


PALLAS_OPS = {"linear": pallas_linear, "linear_res_ln": pallas_linear_res_ln,
              "attention": pallas_attention, "layer_norm": pallas_layer_norm}
REF_OPS = {"linear": _ref_linear, "linear_res_ln": _ref_linear_res_ln,
           "attention": _ref_attention, "layer_norm": _ref_layer_norm}


# ----------------------------------------------------------------------------
# nn.Transformer forward composed from the kernels above.
# Layout follows PyTorch's default (batch_first=False): (seq_len, batch, E).
# ----------------------------------------------------------------------------
def _split_heads(x2d, seq, batch, num_heads, head_dim):
    # (seq*batch, E) -> (batch*heads, seq, head_dim)
    return (x2d.reshape(seq, batch, num_heads, head_dim)
            .transpose(1, 2, 0, 3)
            .reshape(batch * num_heads, seq, head_dim))


def _merge_heads(xh, seq, batch, num_heads, head_dim):
    # (batch*heads, seq, head_dim) -> (seq*batch, E)
    return (xh.reshape(batch, num_heads, seq, head_dim)
            .transpose(2, 0, 1, 3)
            .reshape(seq * batch, num_heads * head_dim))


def _mha_self(ops, p, x, num_heads):
    """Self-attention (fused QKV projection). Returns concat-head output
    BEFORE the output projection (that is fused with residual+LN by caller)."""
    L, N, E = x.shape
    Dh = E // num_heads
    x2d = x.reshape(L * N, E)
    qkv = ops["linear"](x2d, p["w_qkv"], p["b_qkv"])          # (L*N, 3E)
    q, k, v = qkv[:, :E], qkv[:, E:2 * E], qkv[:, 2 * E:]
    qh = _split_heads(q, L, N, num_heads, Dh)
    kh = _split_heads(k, L, N, num_heads, Dh)
    vh = _split_heads(v, L, N, num_heads, Dh)
    oh = ops["attention"](qh, kh, vh, 1.0 / math.sqrt(Dh))
    return _merge_heads(oh, L, N, num_heads, Dh)               # (L*N, E)


def _mha_cross(ops, p, x, mem, num_heads):
    """Cross-attention (fused KV projection). Returns concat-head output."""
    T, N, E = x.shape
    S = mem.shape[0]
    Dh = E // num_heads
    q = ops["linear"](x.reshape(T * N, E), p["wq"], p["bq"])
    kv = ops["linear"](mem.reshape(S * N, E), p["w_kv"], p["b_kv"])
    k, v = kv[:, :E], kv[:, E:]
    qh = _split_heads(q, T, N, num_heads, Dh)
    kh = _split_heads(k, S, N, num_heads, Dh)
    vh = _split_heads(v, S, N, num_heads, Dh)
    oh = ops["attention"](qh, kh, vh, 1.0 / math.sqrt(Dh))
    return _merge_heads(oh, T, N, num_heads, Dh)               # (T*N, E)


def _encoder_layer(ops, p, x, num_heads):
    L, N, E = x.shape
    x2d = x.reshape(L * N, E)
    sa = _mha_self(ops, p["self_attn"], x, num_heads)
    h1 = ops["linear_res_ln"](sa, p["self_attn"]["wo"], p["self_attn"]["bo"],
                              x2d, p["ln1_g"], p["ln1_b"])
    ff = ops["linear"](h1, p["w1"], p["b1"], activation="relu")
    h2 = ops["linear_res_ln"](ff, p["w2"], p["b2"], h1, p["ln2_g"], p["ln2_b"])
    return h2.reshape(L, N, E)


def _decoder_layer(ops, p, x, memory, num_heads):
    T, N, E = x.shape
    x2d = x.reshape(T * N, E)
    sa = _mha_self(ops, p["self_attn"], x, num_heads)
    h1 = ops["linear_res_ln"](sa, p["self_attn"]["wo"], p["self_attn"]["bo"],
                              x2d, p["ln1_g"], p["ln1_b"])
    ca = _mha_cross(ops, p["cross_attn"], h1.reshape(T, N, E), memory, num_heads)
    h2 = ops["linear_res_ln"](ca, p["cross_attn"]["wo"], p["cross_attn"]["bo"],
                              h1, p["ln2_g"], p["ln2_b"])
    ff = ops["linear"](h2, p["w1"], p["b1"], activation="relu")
    h3 = ops["linear_res_ln"](ff, p["w2"], p["b2"], h2, p["ln3_g"], p["ln3_b"])
    return h3.reshape(T, N, E)


def cross_attention_forward(ops, params, query, key_value, num_heads):
    """CrossAttention.forward == nn.Transformer(src=query, tgt=key_value)."""
    x = query
    for lp in params["encoder_layers"]:
        x = _encoder_layer(ops, lp, x, num_heads)
    Ls, N, E = x.shape
    memory = ops["layer_norm"](x.reshape(Ls * N, E),
                               params["enc_norm_g"],
                               params["enc_norm_b"]).reshape(Ls, N, E)
    y = key_value
    for lp in params["decoder_layers"]:
        y = _decoder_layer(ops, lp, y, memory, num_heads)
    Lt = y.shape[0]
    out = ops["layer_norm"](y.reshape(Lt * N, E),
                            params["dec_norm_g"],
                            params["dec_norm_b"]).reshape(Lt, N, E)
    return out


# ----------------------------------------------------------------------------
# Parameter construction (weights stored as (in, out); biases as (1, out)).
# QKV / KV projections stored packed so they run as a single matmul.
# ----------------------------------------------------------------------------
def init_cross_attention_params(key, hidden_size, num_heads, depth,
                                dim_feedforward=2048, dtype=jnp.float32):
    assert hidden_size % num_heads == 0
    scale = 0.05
    e = hidden_size

    def dense(k, fi, fo):
        return jax.random.normal(k, (fi, fo), dtype) * scale

    def bias(k, n):
        return jax.random.normal(k, (1, n), dtype) * scale

    def mha_self(k):
        ks = jax.random.split(k, 4)
        return {"w_qkv": dense(ks[0], e, 3 * e), "b_qkv": bias(ks[1], 3 * e),
                "wo": dense(ks[2], e, e), "bo": bias(ks[3], e)}

    def mha_cross(k):
        ks = jax.random.split(k, 6)
        return {"wq": dense(ks[0], e, e), "bq": bias(ks[1], e),
                "w_kv": dense(ks[2], e, 2 * e), "b_kv": bias(ks[3], 2 * e),
                "wo": dense(ks[4], e, e), "bo": bias(ks[5], e)}

    def ln(k):
        k1, k2 = jax.random.split(k)
        return (1.0 + 0.1 * jax.random.normal(k1, (1, e), dtype),
                0.1 * jax.random.normal(k2, (1, e), dtype))

    def ffn(k):
        k1, k2, k3, k4 = jax.random.split(k, 4)
        return {"w1": dense(k1, e, dim_feedforward),
                "b1": bias(k2, dim_feedforward),
                "w2": dense(k3, dim_feedforward, e),
                "b2": bias(k4, e)}

    keys = jax.random.split(key, 2 * depth + 2)
    enc_layers, dec_layers = [], []
    for i in range(depth):
        k_sa, k_ff, k_l1, k_l2 = jax.random.split(keys[i], 4)
        g1, b1 = ln(k_l1)
        g2, b2 = ln(k_l2)
        enc_layers.append({"self_attn": mha_self(k_sa), **ffn(k_ff),
                           "ln1_g": g1, "ln1_b": b1, "ln2_g": g2, "ln2_b": b2})
    for i in range(depth):
        k_sa, k_ca, k_ff, k_l1, k_l2, k_l3 = jax.random.split(keys[depth + i], 6)
        g1, b1 = ln(k_l1)
        g2, b2 = ln(k_l2)
        g3, b3 = ln(k_l3)
        dec_layers.append({"self_attn": mha_self(k_sa),
                           "cross_attn": mha_cross(k_ca), **ffn(k_ff),
                           "ln1_g": g1, "ln1_b": b1, "ln2_g": g2, "ln2_b": b2,
                           "ln3_g": g3, "ln3_b": b3})
    ge, be = ln(keys[-2])
    gd, bd = ln(keys[-1])
    return {"encoder_layers": enc_layers, "decoder_layers": dec_layers,
            "enc_norm_g": ge, "enc_norm_b": be,
            "dec_norm_g": gd, "dec_norm_b": bd}


# ----------------------------------------------------------------------------
if __name__ == "__main__":
    hidden_size = 32
    num_heads = 4
    depth = 1
    dim_feedforward = 2048       # nn.Transformer default
    src_len, tgt_len, batch = 8, 8, 2

    root = jax.random.PRNGKey(0)
    k_params, k_q, k_kv = jax.random.split(root, 3)
    params = init_cross_attention_params(
        k_params, hidden_size, num_heads, depth, dim_feedforward)

    # nn.Transformer default layout (batch_first=False): (seq_len, batch, E)
    query = jax.random.normal(k_q, (src_len, batch, hidden_size), jnp.float32)
    key_value = jax.random.normal(k_kv, (tgt_len, batch, hidden_size), jnp.float32)

    pallas_fwd = jax.jit(
        lambda p, q, kv: cross_attention_forward(PALLAS_OPS, p, q, kv, num_heads))
    ref_fwd = jax.jit(
        lambda p, q, kv: cross_attention_forward(REF_OPS, p, q, kv, num_heads))

    out = pallas_fwd(params, query, key_value)
    jax.block_until_ready(out)

    ref = ref_fwd(params, query, key_value)
    jax.block_until_ready(ref)

    assert out.shape == key_value.shape, (out.shape, key_value.shape)
    assert out.dtype == key_value.dtype
    assert bool(jnp.isfinite(out).all())
    max_err = float(jnp.max(jnp.abs(out - ref)))
    assert max_err < 2e-2, f"max abs error vs jnp reference: {max_err}"

    print("KERNEL_OK")
</pallas_src>

<mosaic_0001>
module attributes {stable_mosaic.version = 11 : i64} {
  func.func @_linear_kernel(%arg0: i32, %arg1: i32, %arg2: i32, %arg3: memref<16x32xf32, #tpu.memory_space<vmem>>, %arg4: memref<32x96xf32, #tpu.memory_space<vmem>>, %arg5: memref<1x96xf32, #tpu.memory_space<vmem>>, %arg6: memref<16x96xf32, #tpu.memory_space<vmem>>, %arg7: memref<16x96xf32, #tpu.memory_space<vmem>>) attributes {dimension_semantics = [#tpu.dimension_semantics<parallel>, #tpu.dimension_semantics<parallel>, #tpu.dimension_semantics<arbitrary>], iteration_bounds = array<i64: 1, 1, 1>, scalar_prefetch = 0 : i64, scratch_operands = 1 : i64, tpu.core_type = #tpu.core_type<tc>, window_params = [{transform_indices = @transform_0, window_bounds = array<i64: 16, 32>}, {transform_indices = @transform_1, window_bounds = array<i64: 32, 96>}, {transform_indices = @transform_2, window_bounds = array<i64: 1, 96>}, {transform_indices = @transform_3, window_bounds = array<i64: 16, 96>}]} {
    %c0_i32 = arith.constant 0 : i32
    %0 = arith.cmpi eq, %arg2, %c0_i32 : i32
    %1 = arith.extui %0 : i1 to i32
    %c0_i32_0 = arith.constant 0 : i32
    %2 = arith.cmpi ne, %1, %c0_i32_0 : i32
    scf.if %2 {
      %cst_10 = arith.constant 0.000000e+00 : f32
      %12 = vector.broadcast %cst_10 : f32 to vector<16x96xf32>
      %c0_11 = arith.constant 0 : index
      %c0_12 = arith.constant 0 : index
      %13 = vector.load %arg7[%c0_11, %c0_12] : memref<16x96xf32, #tpu.memory_space<vmem>>, vector<16x96xf32>
      tpu.vector_store %arg7[%c0_11, %c0_12], %12 {strides = array<i32>} : memref<16x96xf32, #tpu.memory_space<vmem>>, vector<16x96xf32>,
    } else {
    }
    %c0 = arith.constant 0 : index
    %c0_1 = arith.constant 0 : index
    %3 = vector.load %arg7[%c0, %c0_1] : memref<16x96xf32, #tpu.memory_space<vmem>>, vector<16x96xf32>
    %c0_2 = arith.constant 0 : index
    %c0_3 = arith.constant 0 : index
    %4 = vector.load %arg3[%c0_2, %c0_3] : memref<16x32xf32, #tpu.memory_space<vmem>>, vector<16x32xf32>
    %c0_4 = arith.constant 0 : index
    %c0_5 = arith.constant 0 : index
    %5 = vector.load %arg4[%c0_4, %c0_5] : memref<32x96xf32, #tpu.memory_space<vmem>>, vector<32x96xf32>
    %cst = arith.constant dense<0.000000e+00> : vector<16x96xf32>
    %6 = tpu.matmul %4, %5, %cst {dimension_numbers = #tpu.dot_dimension_numbers<[1], [0], [0], [1], [0, 0, 1, 1], [], []>} : vector<16x32xf32>, vector<32x96xf32>, vector<16x96xf32> -> vector<16x96xf32>
    %7 = arith.addf %3, %6 : vector<16x96xf32>
    %c0_6 = arith.constant 0 : index
    %c0_7 = arith.constant 0 : index
    %8 = vector.load %arg7[%c0_6, %c0_7] : memref<16x96xf32, #tpu.memory_space<vmem>>, vector<16x96xf32>
    tpu.vector_store %arg7[%c0_6, %c0_7], %7 {strides = array<i32>} : memref<16x96xf32, #tpu.memory_space<vmem>>, vector<16x96xf32>,
    %c0_i32_8 = arith.constant 0 : i32
    %9 = arith.cmpi eq, %arg2, %c0_i32_8 : i32
    %10 = arith.extui %9 : i1 to i32
    %c0_i32_9 = arith.constant 0 : i32
    %11 = arith.cmpi ne, %10, %c0_i32_9 : i32
    scf.if %11 {
      %c0_10 = arith.constant 0 : index
      %c0_11 = arith.constant 0 : index
      %12 = vector.load %arg7[%c0_10, %c0_11] : memref<16x96xf32, #tpu.memory_space<vmem>>, vector<16x96xf32>
      %c0_12 = arith.constant 0 : index
      %c0_13 = arith.constant 0 : index
      %13 = vector.load %arg5[%c0_12, %c0_13] : memref<1x96xf32, #tpu.memory_space<vmem>>, vector<1x96xf32>
      %14 = vector.broadcast %13 : vector<1x96xf32> to vector<16x96xf32>
      %15 = arith.addf %12, %14 : vector<16x96xf32>
      %c0_14 = arith.constant 0 : index
      %c0_15 = arith.constant 0 : index
      %16 = vector.load %arg6[%c0_14, %c0_15] : memref<16x96xf32, #tpu.memory_space<vmem>>, vector<16x96xf32>
      tpu.vector_store %arg6[%c0_14, %c0_15], %15 {strides = array<i32>} : memref<16x96xf32, #tpu.memory_space<vmem>>, vector<16x96xf32>,
    } else {
    }
    return
  }
  func.func @transform_0(%arg0: i32, %arg1: i32, %arg2: i32) -> (i32, i32) {
    %c0_i32 = arith.constant 0 : i32
    return %arg0, %arg2 : i32, i32
  }
  func.func @transform_1(%arg0: i32, %arg1: i32, %arg2: i32) -> (i32, i32) {
    %c0_i32 = arith.constant 0 : i32
    return %arg2, %arg1 : i32, i32
  }
  func.func @transform_2(%arg0: i32, %arg1: i32, %arg2: i32) -> (i32, i32) {
    %c0_i32 = arith.constant 0 : i32
    %c0_i32_0 = arith.constant 0 : i32
    return %c0_i32, %arg1 : i32, i32
  }
  func.func @transform_3(%arg0: i32, %arg1: i32, %arg2: i32) -> (i32, i32) {
    %c0_i32 = arith.constant 0 : i32
    return %arg0, %arg1 : i32, i32
  }
}

module attributes {stable_mosaic.version = 11 : i64} {
  func.func @_linear_kernel(%arg0: i32, %arg1: i32, %arg2: i32, %arg3: memref<16x32xf32, #tpu.memory_space<vmem>>, %arg4: memref<32x256xf32, #tpu.memory_space<vmem>>, %arg5: memref<1x256xf32, #tpu.memory_space<vmem>>, %arg6: memref<16x256xf32, #tpu.memory_space<vmem>>, %arg7: memref<16x256xf32, #tpu.memory_space<vmem>>) attributes {dimension_semantics = [#tpu.dimension_semantics<parallel>, #tpu.dimension_semantics<parallel>, #tpu.dimension_semantics<arbitrary>], iteration_bounds = array<i64: 1, 8, 1>, scalar_prefetch = 0 : i64, scratch_operands = 1 : i64, tpu.core_type = #tpu.core_type<tc>, window_params = [{transform_indices = @transform_0, window_bounds = array<i64: 16, 32>}, {transform_indices = @transform_1, window_bounds = array<i64: 32, 256>}, {transform_indices = @transform_2, window_bounds = array<i64: 1, 256>}, {transform_indices = @transform_3, window_bounds = array<i64: 16, 256>}]} {
    %c0_i32 = arith.constant 0 : i32
    %0 = arith.cmpi eq, %arg2, %c0_i32 : i32
    %1 = arith.extui %0 : i1 to i32
    %c0_i32_0 = arith.constant 0 : i32
    %2 = arith.cmpi ne, %1, %c0_i32_0 : i32
    scf.if %2 {
      %cst_10 = arith.constant 0.000000e+00 : f32
      %12 = vector.broadcast %cst_10 : f32 to vector<16x256xf32>
      %c0_11 = arith.constant 0 : index
      %c0_12 = arith.constant 0 : index
      %13 = vector.load %arg7[%c0_11, %c0_12] : memref<16x256xf32, #tpu.memory_space<vmem>>, vector<16x256xf32>
      tpu.vector_store %arg7[%c0_11, %c0_12], %12 {strides = array<i32>} : memref<16x256xf32, #tpu.memory_space<vmem>>, vector<16x256xf32>,
    } else {
    }
    %c0 = arith.constant 0 : index
    %c0_1 = arith.constant 0 : index
    %3 = vector.load %arg7[%c0, %c0_1] : memref<16x256xf32, #tpu.memory_space<vmem>>, vector<16x256xf32>
    %c0_2 = arith.constant 0 : index
    %c0_3 = arith.constant 0 : index
    %4 = vector.load %arg3[%c0_2, %c0_3] : memref<16x32xf32, #tpu.memory_space<vmem>>, vector<16x32xf32>
    %c0_4 = arith.constant 0 : index
    %c0_5 = arith.constant 0 : index
    %5 = vector.load %arg4[%c0_4, %c0_5] : memref<32x256xf32, #tpu.memory_space<vmem>>, vector<32x256xf32>
    %cst = arith.constant dense<0.000000e+00> : vector<16x256xf32>
    %6 = tpu.matmul %4, %5, %cst {dimension_numbers = #tpu.dot_dimension_numbers<[1], [0], [0], [1], [0, 0, 1, 1], [], []>} : vector<16x32xf32>, vector<32x256xf32>, vector<16x256xf32> -> vector<16x256xf32>
    %7 = arith.addf %3, %6 : vector<16x256xf32>
    %c0_6 = arith.constant 0 : index
    %c0_7 = arith.constant 0 : index
    %8 = vector.load %arg7[%c0_6, %c0_7] : memref<16x256xf32, #tpu.memory_space<vmem>>, vector<16x256xf32>
    tpu.vector_store %arg7[%c0_6, %c0_7], %7 {strides = array<i32>} : memref<16x256xf32, #tpu.memory_space<vmem>>, vector<16x256xf32>,
    %c0_i32_8 = arith.constant 0 : i32
    %9 = arith.cmpi eq, %arg2, %c0_i32_8 : i32
    %10 = arith.extui %9 : i1 to i32
    %c0_i32_9 = arith.constant 0 : i32
    %11 = arith.cmpi ne, %10, %c0_i32_9 : i32
    scf.if %11 {
      %c0_10 = arith.constant 0 : index
      %c0_11 = arith.constant 0 : index
      %12 = vector.load %arg7[%c0_10, %c0_11] : memref<16x256xf32, #tpu.memory_space<vmem>>, vector<16x256xf32>
      %c0_12 = arith.constant 0 : index
      %c0_13 = arith.constant 0 : index
      %13 = vector.load %arg5[%c0_12, %c0_13] : memref<1x256xf32, #tpu.memory_space<vmem>>, vector<1x256xf32>
      %14 = vector.broadcast %13 : vector<1x256xf32> to vector<16x256xf32>
      %15 = arith.addf %12, %14 : vector<16x256xf32>
      %cst_14 = arith.constant 0.000000e+00 : f32
      %16 = vector.broadcast %cst_14 : f32 to vector<16x256xf32>
      %17 = arith.maximumf %15, %16 : vector<16x256xf32>
      %c0_15 = arith.constant 0 : index
      %c0_16 = arith.constant 0 : index
      %18 = vector.load %arg6[%c0_15, %c0_16] : memref<16x256xf32, #tpu.memory_space<vmem>>, vector<16x256xf32>
      tpu.vector_store %arg6[%c0_15, %c0_16], %17 {strides = array<i32>} : memref<16x256xf32, #tpu.memory_space<vmem>>, vector<16x256xf32>,
    } else {
    }
    return
  }
  func.func @transform_0(%arg0: i32, %arg1: i32, %arg2: i32) -> (i32, i32) {
    %c0_i32 = arith.constant 0 : i32
    return %arg0, %arg2 : i32, i32
  }
  func.func @transform_1(%arg0: i32, %arg1: i32, %arg2: i32) -> (i32, i32) {
    %c0_i32 = arith.constant 0 : i32
    return %arg2, %arg1 : i32, i32
  }
  func.func @transform_2(%arg0: i32, %arg1: i32, %arg2: i32) -> (i32, i32) {
    %c0_i32 = arith.constant 0 : i32
    %c0_i32_0 = arith.constant 0 : i32
    return %c0_i32, %arg1 : i32, i32
  }
  func.func @transform_3(%arg0: i32, %arg1: i32, %arg2: i32) -> (i32, i32) {
    %c0_i32 = arith.constant 0 : i32
    return %arg0, %arg1 : i32, i32
  }
}

module attributes {stable_mosaic.version = 11 : i64} {
  func.func @_flash_attn_kernel(%arg0: i32, %arg1: i32, %arg2: i32, %arg3: memref<8x8x8xf32, #tpu.memory_space<vmem>>, %arg4: memref<8x8x8xf32, #tpu.memory_space<vmem>>, %arg5: memref<8x8x8xf32, #tpu.memory_space<vmem>>, %arg6: memref<8x8x8xf32, #tpu.memory_space<vmem>>, %arg7: memref<8x8x1xf32, #tpu.memory_space<vmem>>, %arg8: memref<8x8x1xf32, #tpu.memory_space<vmem>>, %arg9: memref<8x8x8xf32, #tpu.memory_space<vmem>>) attributes {dimension_semantics = [#tpu.dimension_semantics<parallel>, #tpu.dimension_semantics<parallel>, #tpu.dimension_semantics<arbitrary>], iteration_bounds = array<i64: 1, 1, 1>, scalar_prefetch = 0 : i64, scratch_operands = 3 : i64, tpu.core_type = #tpu.core_type<tc>, window_params = [{transform_indices = @transform_0, window_bounds = array<i64: 8, 8, 8>}, {transform_indices = @transform_1, window_bounds = array<i64: 8, 8, 8>}, {transform_indices = @transform_2, window_bounds = array<i64: 8, 8, 8>}, {transform_indices = @transform_3, window_bounds = array<i64: 8, 8, 8>}]} {
    %c0_i32 = arith.constant 0 : i32
    %0 = arith.cmpi eq, %arg2, %c0_i32 : i32
    %1 = arith.extui %0 : i1 to i32
    %c0_i32_0 = arith.constant 0 : i32
    %2 = arith.cmpi ne, %1, %c0_i32_0 : i32
    scf.if %2 {
      %cst_33 = arith.constant 0xFF800000 : f32
      %34 = vector.broadcast %cst_33 : f32 to vector<8x8x1xf32>
      %c0_34 = arith.constant 0 : index
      %c0_35 = arith.constant 0 : index
      %c0_36 = arith.constant 0 : index
      %35 = vector.load %arg7[%c0_34, %c0_35, %c0_36] : memref<8x8x1xf32, #tpu.memory_space<vmem>>, vector<8x8x1xf32>
      tpu.vector_store %arg7[%c0_34, %c0_35, %c0_36], %34 {strides = array<i32>} : memref<8x8x1xf32, #tpu.memory_space<vmem>>, vector<8x8x1xf32>,
      %cst_37 = arith.constant 0.000000e+00 : f32
      %36 = vector.broadcast %cst_37 : f32 to vector<8x8x1xf32>
      %c0_38 = arith.constant 0 : index
      %c0_39 = arith.constant 0 : index
      %c0_40 = arith.constant 0 : index
      %37 = vector.load %arg8[%c0_38, %c0_39, %c0_40] : memref<8x8x1xf32, #tpu.memory_space<vmem>>, vector<8x8x1xf32>
      tpu.vector_store %arg8[%c0_38, %c0_39, %c0_40], %36 {strides = array<i32>} : memref<8x8x1xf32, #tpu.memory_space<vmem>>, vector<8x8x1xf32>,
      %cst_41 = arith.constant 0.000000e+00 : f32
      %38 = vector.broadcast %cst_41 : f32 to vector<8x8x8xf32>
      %c0_42 = arith.constant 0 : index
      %c0_43 = arith.constant 0 : index
      %c0_44 = arith.constant 0 : index
      %39 = vector.load %arg9[%c0_42, %c0_43, %c0_44] : memref<8x8x8xf32, #tpu.memory_space<vmem>>, vector<8x8x8xf32>
      tpu.vector_store %arg9[%c0_42, %c0_43, %c0_44], %38 {strides = array<i32>} : memref<8x8x8xf32, #tpu.memory_space<vmem>>, vector<8x8x8xf32>,
    } else {
    }
    %c0 = arith.constant 0 : index
    %c0_1 = arith.constant 0 : index
    %c0_2 = arith.constant 0 : index
    %3 = vector.load %arg3[%c0, %c0_1, %c0_2] : memref<8x8x8xf32, #tpu.memory_space<vmem>>, vector<8x8x8xf32>
    %cst = arith.constant 0.353553385 : f32
    %4 = vector.broadcast %cst : f32 to vector<8x8x8xf32>
    %5 = arith.mulf %3, %4 : vector<8x8x8xf32>
    %c0_3 = arith.constant 0 : index
    %c0_4 = arith.constant 0 : index
    %c0_5 = arith.constant 0 : index
    %6 = vector.load %arg4[%c0_3, %c0_4, %c0_5] : memref<8x8x8xf32, #tpu.memory_space<vmem>>, vector<8x8x8xf32>
    "tpu.trace_start"() <{level = 10 : i32, message = "bqd,bkd->bqk"}> : () -> ()
    %cst_6 = arith.constant dense<0.000000e+00> : vector<8x8x8xf32>
    %7 = tpu.matmul %5, %6, %cst_6 {dimension_numbers = #tpu.dot_dimension_numbers<[2], [2], [1], [1], [0, 0, 0, 1, 1, 1], [0], [0]>} : vector<8x8x8xf32>, vector<8x8x8xf32>, vector<8x8x8xf32> -> vector<8x8x8xf32>
    "tpu.trace_stop"() : () -> ()
    %c0_7 = arith.constant 0 : index
    %c0_8 = arith.constant 0 : index
    %c0_9 = arith.constant 0 : index
    %8 = vector.load %arg7[%c0_7, %c0_8, %c0_9] : memref<8x8x1xf32, #tpu.memory_space<vmem>>, vector<8x8x1xf32>
    %cst_10 = arith.constant dense<0xFF800000> : vector<8x8xf32>
    %9 = vector.multi_reduction <maximumf>, %7, %cst_10 [2] : vector<8x8x8xf32> to vector<8x8xf32>
    %10 = vector.shape_cast %9 : vector<8x8xf32> to vector<8x8x1xf32>
    %11 = arith.maximumf %8, %10 : vector<8x8x1xf32>
    %12 = arith.subf %8, %11 : vector<8x8x1xf32>
    %13 = math.exp %12 : vector<8x8x1xf32>
    %14 = vector.broadcast %11 : vector<8x8x1xf32> to vector<8x8x8xf32>
    %15 = arith.subf %7, %14 : vector<8x8x8xf32>
    %16 = math.exp %15 : vector<8x8x8xf32>
    %c0_11 = arith.constant 0 : index
    %c0_12 = arith.constant 0 : index
    %c0_13 = arith.constant 0 : index
    %17 = vector.load %arg8[%c0_11, %c0_12, %c0_13] : memref<8x8x1xf32, #tpu.memory_space<vmem>>, vector<8x8x1xf32>
    %18 = arith.mulf %13, %17 : vector<8x8x1xf32>
    %cst_14 = arith.constant dense<0.000000e+00> : vector<8x8xf32>
    %19 = vector.multi_reduction <add>, %16, %cst_14 [2] : vector<8x8x8xf32> to vector<8x8xf32>
    %20 = vector.shape_cast %19 : vector<8x8xf32> to vector<8x8x1xf32>
    %21 = arith.addf %18, %20 : vector<8x8x1xf32>
    %c0_15 = arith.constant 0 : index
    %c0_16 = arith.constant 0 : index
    %c0_17 = arith.constant 0 : index
    %22 = vector.load %arg8[%c0_15, %c0_16, %c0_17] : memref<8x8x1xf32, #tpu.memory_space<vmem>>, vector<8x8x1xf32>
    tpu.vector_store %arg8[%c0_15, %c0_16, %c0_17], %21 {strides = array<i32>} : memref<8x8x1xf32, #tpu.memory_space<vmem>>, vector<8x8x1xf32>,
    %c0_18 = arith.constant 0 : index
    %c0_19 = arith.constant 0 : index
    %c0_20 = arith.constant 0 : index
    %23 = vector.load %arg9[%c0_18, %c0_19, %c0_20] : memref<8x8x8xf32, #tpu.memory_space<vmem>>, vector<8x8x8xf32>
    %24 = vector.broadcast %13 : vector<8x8x1xf32> to vector<8x8x8xf32>
    %25 = arith.mulf %24, %23 : vector<8x8x8xf32>
    %c0_21 = arith.constant 0 : index
    %c0_22 = arith.constant 0 : index
    %c0_23 = arith.constant 0 : index
    %26 = vector.load %arg5[%c0_21, %c0_22, %c0_23] : memref<8x8x8xf32, #tpu.memory_space<vmem>>, vector<8x8x8xf32>
    "tpu.trace_start"() <{level = 10 : i32, message = "bqk,bkd->bqd"}> : () -> ()
    %cst_24 = arith.constant dense<0.000000e+00> : vector<8x8x8xf32>
    %27 = tpu.matmul %16, %26, %cst_24 {dimension_numbers = #tpu.dot_dimension_numbers<[2], [1], [1], [2], [0, 0, 0, 1, 1, 2], [0], [0]>} : vector<8x8x8xf32>, vector<8x8x8xf32>, vector<8x8x8xf32> -> vector<8x8x8xf32>
    "tpu.trace_stop"() : () -> ()
    %28 = arith.addf %25, %27 : vector<8x8x8xf32>
    %c0_25 = arith.constant 0 : index
    %c0_26 = arith.constant 0 : index
    %c0_27 = arith.constant 0 : index
    %29 = vector.load %arg9[%c0_25, %c0_26, %c0_27] : memref<8x8x8xf32, #tpu.memory_space<vmem>>, vector<8x8x8xf32>
    tpu.vector_store %arg9[%c0_25, %c0_26, %c0_27], %28 {strides = array<i32>} : memref<8x8x8xf32, #tpu.memory_space<vmem>>, vector<8x8x8xf32>,
    %c0_28 = arith.constant 0 : index
    %c0_29 = arith.constant 0 : index
    %c0_30 = arith.constant 0 : index
    %30 = vector.load %arg7[%c0_28, %c0_29, %c0_30] : memref<8x8x1xf32, #tpu.memory_space<vmem>>, vector<8x8x1xf32>
    tpu.vector_store %arg7[%c0_28, %c0_29, %c0_30], %11 {strides = array<i32>} : memref<8x8x1xf32, #tpu.memory_space<vmem>>, vector<8x8x1xf32>,
    %c0_i32_31 = arith.constant 0 : i32
    %31 = arith.cmpi eq, %arg2, %c0_i32_31 : i32
    %32 = arith.extui %31 : i1 to i32
    %c0_i32_32 = arith.constant 0 : i32
    %33 = arith.cmpi ne, %32, %c0_i32_32 : i32
    scf.if %33 {
      %c0_33 = arith.constant 0 : index
      %c0_34 = arith.constant 0 : index
      %c0_35 = arith.constant 0 : index
      %34 = vector.load %arg9[%c0_33, %c0_34, %c0_35] : memref<8x8x8xf32, #tpu.memory_space<vmem>>, vector<8x8x8xf32>
      %c0_36 = arith.constant 0 : index
      %c0_37 = arith.constant 0 : index
      %c0_38 = arith.constant 0 : index
      %35 = vector.load %arg8[%c0_36, %c0_37, %c0_38] : memref<8x8x1xf32, #tpu.memory_space<vmem>>, vector<8x8x1xf32>
      %36 = tpu.reciprocal %35 {approx = true} : vector<8x8x1xf32> -> vector<8x8x1xf32>
      %37 = vector.broadcast %36 : vector<8x8x1xf32> to vector<8x8x8xf32>
      %38 = arith.mulf %34, %37 : vector<8x8x8xf32>
      %c0_39 = arith.constant 0 : index
      %c0_40 = arith.constant 0 : index
      %c0_41 = arith.constant 0 : index
      %39 = vector.load %arg6[%c0_39, %c0_40, %c0_41] : memref<8x8x8xf32, #tpu.memory_space<vmem>>, vector<8x8x8xf32>
      tpu.vector_store %arg6[%c0_39, %c0_40, %c0_41], %38 {strides = array<i32>} : memref<8x8x8xf32, #tpu.memory_space<vmem>>, vector<8x8x8xf32>,
    } else {
    }
    return
  }
  func.func @transform_0(%arg0: i32, %arg1: i32, %arg2: i32) -> (i32, i32, i32) {
    %c0_i32 = arith.constant 0 : i32
    %c0_i32_0 = arith.constant 0 : i32
    return %arg0, %arg1, %c0_i32 : i32, i32, i32
  }
  func.func @transform_1(%arg0: i32, %arg1: i32, %arg2: i32) -> (i32, i32, i32) {
    %c0_i32 = arith.constant 0 : i32
    %c0_i32_0 = arith.constant 0 : i32
    return %arg0, %arg2, %c0_i32 : i32, i32, i32
  }
  func.func @transform_2(%arg0: i32, %arg1: i32, %arg2: i32) -> (i32, i32, i32) {
    %c0_i32 = arith.constant 0 : i32
    %c0_i32_0 = arith.constant 0 : i32
    return %arg0, %arg2, %c0_i32 : i32, i32, i32
  }
  func.func @transform_3(%arg0: i32, %arg1: i32, %arg2: i32) -> (i32, i32, i32) {
    %c0_i32 = arith.constant 0 : i32
    %c0_i32_0 = arith.constant 0 : i32
    return %arg0, %arg1, %c0_i32 : i32, i32, i32
  }
}

module attributes {stable_mosaic.version = 11 : i64} {
  func.func @_linear_res_ln_kernel(%arg0: i32, %arg1: i32, %arg2: memref<16x32xf32, #tpu.memory_space<vmem>>, %arg3: memref<32x32xf32, #tpu.memory_space<vmem>>, %arg4: memref<1x32xf32, #tpu.memory_space<vmem>>, %arg5: memref<16x32xf32, #tpu.memory_space<vmem>>, %arg6: memref<1x32xf32, #tpu.memory_space<vmem>>, %arg7: memref<1x32xf32, #tpu.memory_space<vmem>>, %arg8: memref<16x32xf32, #tpu.memory_space<vmem>>, %arg9: memref<16x32xf32, #tpu.memory_space<vmem>>) attributes {dimension_semantics = [#tpu.dimension_semantics<parallel>, #tpu.dimension_semantics<arbitrary>], iteration_bounds = array<i64: 1, 1>, scalar_prefetch = 0 : i64, scratch_operands = 1 : i64, tpu.core_type = #tpu.core_type<tc>, window_params = [{transform_indices = @transform_0, window_bounds = array<i64: 16, 32>}, {transform_indices = @transform_1, window_bounds = array<i64: 32, 32>}, {pipeline_mode = #tpu.pipeline_mode<synchronous>, transform_indices = @transform_2, window_bounds = array<i64: 1, 32>}, {transform_indices = @transform_3, window_bounds = array<i64: 16, 32>}, {pipeline_mode = #tpu.pipeline_mode<synchronous>, transform_indices = @transform_4, window_bounds = array<i64: 1, 32>}, {pipeline_mode = #tpu.pipeline_mode<synchronous>, transform_indices = @transform_5, window_bounds = array<i64: 1, 32>}, {transform_indices = @transform_6, window_bounds = array<i64: 16, 32>}]} {
    %c0_i32 = arith.constant 0 : i32
    %0 = arith.cmpi eq, %arg1, %c0_i32 : i32
    %1 = arith.extui %0 : i1 to i32
    %c0_i32_0 = arith.constant 0 : i32
    %2 = arith.cmpi ne, %1, %c0_i32_0 : i32
    scf.if %2 {
      %cst_10 = arith.constant 0.000000e+00 : f32
      %12 = vector.broadcast %cst_10 : f32 to vector<16x32xf32>
      %c0_11 = arith.constant 0 : index
      %c0_12 = arith.constant 0 : index
      %13 = vector.load %arg9[%c0_11, %c0_12] : memref<16x32xf32, #tpu.memory_space<vmem>>, vector<16x32xf32>
      tpu.vector_store %arg9[%c0_11, %c0_12], %12 {strides = array<i32>} : memref<16x32xf32, #tpu.memory_space<vmem>>, vector<16x32xf32>,
    } else {
    }
    %c0 = arith.constant 0 : index
    %c0_1 = arith.constant 0 : index
    %3 = vector.load %arg9[%c0, %c0_1] : memref<16x32xf32, #tpu.memory_space<vmem>>, vector<16x32xf32>
    %c0_2 = arith.constant 0 : index
    %c0_3 = arith.constant 0 : index
    %4 = vector.load %arg2[%c0_2, %c0_3] : memref<16x32xf32, #tpu.memory_space<vmem>>, vector<16x32xf32>
    %c0_4 = arith.constant 0 : index
    %c0_5 = arith.constant 0 : index
    %5 = vector.load %arg3[%c0_4, %c0_5] : memref<32x32xf32, #tpu.memory_space<vmem>>, vector<32x32xf32>
    %cst = arith.constant dense<0.000000e+00> : vector<16x32xf32>
    %6 = tpu.matmul %4, %5, %cst {dimension_numbers = #tpu.dot_dimension_numbers<[1], [0], [0], [1], [0, 0, 1, 1], [], []>} : vector<16x32xf32>, vector<32x32xf32>, vector<16x32xf32> -> vector<16x32xf32>
    %7 = arith.addf %3, %6 : vector<16x32xf32>
    %c0_6 = arith.constant 0 : index
    %c0_7 = arith.constant 0 : index
    %8 = vector.load %arg9[%c0_6, %c0_7] : memref<16x32xf32, #tpu.memory_space<vmem>>, vector<16x32xf32>
    tpu.vector_store %arg9[%c0_6, %c0_7], %7 {strides = array<i32>} : memref<16x32xf32, #tpu.memory_space<vmem>>, vector<16x32xf32>,
    %c0_i32_8 = arith.constant 0 : i32
    %9 = arith.cmpi eq, %arg1, %c0_i32_8 : i32
    %10 = arith.extui %9 : i1 to i32
    %c0_i32_9 = arith.constant 0 : i32
    %11 = arith.cmpi ne, %10, %c0_i32_9 : i32
    scf.if %11 {
      %c0_10 = arith.constant 0 : index
      %c0_11 = arith.constant 0 : index
      %12 = vector.load %arg9[%c0_10, %c0_11] : memref<16x32xf32, #tpu.memory_space<vmem>>, vector<16x32xf32>
      %c0_12 = arith.constant 0 : index
      %c0_13 = arith.constant 0 : index
      %13 = vector.load %arg4[%c0_12, %c0_13] : memref<1x32xf32, #tpu.memory_space<vmem>>, vector<1x32xf32>
      %14 = vector.broadcast %13 : vector<1x32xf32> to vector<16x32xf32>
      %15 = arith.addf %12, %14 : vector<16x32xf32>
      %c0_14 = arith.constant 0 : index
      %c0_15 = arith.constant 0 : index
      %16 = vector.load %arg5[%c0_14, %c0_15] : memref<16x32xf32, #tpu.memory_space<vmem>>, vector<16x32xf32>
      %17 = arith.addf %15, %16 : vector<16x32xf32>
      %cst_16 = arith.constant dense<0.000000e+00> : vector<16xf32>
      %18 = vector.multi_reduction <add>, %17, %cst_16 [1] : vector<16x32xf32> to vector<16xf32>
      %19 = vector.shape_cast %18 : vector<16xf32> to vector<16x1xf32>
      %cst_17 = arith.constant 3.200000e+01 : f32
      %20 = vector.broadcast %cst_17 : f32 to vector<16x1xf32>
      %21 = arith.divf %19, %20 : vector<16x1xf32>
      %22 = vector.broadcast %21 : vector<16x1xf32> to vector<16x32xf32>
      %23 = arith.subf %17, %22 : vector<16x32xf32>
      %24 = arith.mulf %23, %23 : vector<16x32xf32>
      %cst_18 = arith.constant dense<0.000000e+00> : vector<16xf32>
      %25 = vector.multi_reduction <add>, %24, %cst_18 [1] : vector<16x32xf32> to vector<16xf32>
      %26 = vector.shape_cast %25 : vector<16xf32> to vector<16x1xf32>
      %cst_19 = arith.constant 3.200000e+01 : f32
      %27 = vector.broadcast %cst_19 : f32 to vector<16x1xf32>
      %28 = arith.divf %26, %27 : vector<16x1xf32>
      %cst_20 = arith.constant 9.99999974E-6 : f32
      %29 = vector.broadcast %cst_20 : f32 to vector<16x1xf32>
      %30 = arith.addf %28, %29 : vector<16x1xf32>
      %31 = math.rsqrt %30 : vector<16x1xf32>
      %32 = vector.broadcast %31 : vector<16x1xf32> to vector<16x32xf32>
      %33 = arith.mulf %23, %32 : vector<16x32xf32>
      %c0_21 = arith.constant 0 : index
      %c0_22 = arith.constant 0 : index
      %34 = vector.load %arg6[%c0_21, %c0_22] : memref<1x32xf32, #tpu.memory_space<vmem>>, vector<1x32xf32>
      %35 = vector.broadcast %34 : vector<1x32xf32> to vector<16x32xf32>
      %36 = arith.mulf %33, %35 : vector<16x32xf32>
      %c0_23 = arith.constant 0 : index
      %c0_24 = arith.constant 0 : index
      %37 = vector.load %arg7[%c0_23, %c0_24] : memref<1x32xf32, #tpu.memory_space<vmem>>, vector<1x32xf32>
      %38 = vector.broadcast %37 : vector<1x32xf32> to vector<16x32xf32>
      %39 = arith.addf %36, %38 : vector<16x32xf32>
      %c0_25 = arith.constant 0 : index
      %c0_26 = arith.constant 0 : index
      %40 = vector.load %arg8[%c0_25, %c0_26] : memref<16x32xf32, #tpu.memory_space<vmem>>, vector<16x32xf32>
      tpu.vector_store %arg8[%c0_25, %c0_26], %39 {strides = array<i32>} : memref<16x32xf32, #tpu.memory_space<vmem>>, vector<16x32xf32>,
    } else {
    }
    return
  }
  func.func @transform_0(%arg0: i32, %arg1: i32) -> (i32, i32) {
    %c0_i32 = arith.constant 0 : i32
    return %arg0, %arg1 : i32, i32
  }
  func.func @transform_1(%arg0: i32, %arg1: i32) -> (i32, i32) {
    %c0_i32 = arith.constant 0 : i32
    %c0_i32_0 = arith.constant 0 : i32
    return %arg1, %c0_i32 : i32, i32
  }
  func.func @transform_2(%arg0: i32, %arg1: i32) -> (i32, i32) {
    %c0_i32 = arith.constant 0 : i32
    %c0_i32_0 = arith.constant 0 : i32
    %c0_i32_1 = arith.constant 0 : i32
    return %c0_i32, %c0_i32_0 : i32, i32
  }
  func.func @transform_3(%arg0: i32, %arg1: i32) -> (i32, i32) {
    %c0_i32 = arith.constant 0 : i32
    %c0_i32_0 = arith.constant 0 : i32
    return %arg0, %c0_i32 : i32, i32
  }
  func.func @transform_4(%arg0: i32, %arg1: i32) -> (i32, i32) {
    %c0_i32 = arith.constant 0 : i32
    %c0_i32_0 = arith.constant 0 : i32
    %c0_i32_1 = arith.constant 0 : i32
    return %c0_i32, %c0_i32_0 : i32, i32
  }
  func.func @transform_5(%arg0: i32, %arg1: i32) -> (i32, i32) {
    %c0_i32 = arith.constant 0 : i32
    %c0_i32_0 = arith.constant 0 : i32
    %c0_i32_1 = arith.constant 0 : i32
    return %c0_i32, %c0_i32_0 : i32, i32
  }
  func.func @transform_6(%arg0: i32, %arg1: i32) -> (i32, i32) {
    %c0_i32 = arith.constant 0 : i32
    %c0_i32_0 = arith.constant 0 : i32
    return %arg0, %c0_i32 : i32, i32
  }
}

module attributes {stable_mosaic.version = 11 : i64} {
  func.func @_ln_kernel(%arg0: i32, %arg1: memref<16x32xf32, #tpu.memory_space<vmem>>, %arg2: memref<1x32xf32, #tpu.memory_space<vmem>>, %arg3: memref<1x32xf32, #tpu.memory_space<vmem>>, %arg4: memref<16x32xf32, #tpu.memory_space<vmem>>) attributes {dimension_semantics = [#tpu.dimension_semantics<parallel>], iteration_bounds = array<i64: 1>, scalar_prefetch = 0 : i64, scratch_operands = 0 : i64, tpu.core_type = #tpu.core_type<tc>, window_params = [{transform_indices = @transform_0, window_bounds = array<i64: 16, 32>}, {pipeline_mode = #tpu.pipeline_mode<synchronous>, transform_indices = @transform_1, window_bounds = array<i64: 1, 32>}, {pipeline_mode = #tpu.pipeline_mode<synchronous>, transform_indices = @transform_2, window_bounds = array<i64: 1, 32>}, {transform_indices = @transform_3, window_bounds = array<i64: 16, 32>}]} {
    %c0 = arith.constant 0 : index
    %c0_0 = arith.constant 0 : index
    %0 = vector.load %arg1[%c0, %c0_0] : memref<16x32xf32, #tpu.memory_space<vmem>>, vector<16x32xf32>
    %cst = arith.constant dense<0.000000e+00> : vector<16xf32>
    %1 = vector.multi_reduction <add>, %0, %cst [1] : vector<16x32xf32> to vector<16xf32>
    %2 = vector.shape_cast %1 : vector<16xf32> to vector<16x1xf32>
    %cst_1 = arith.constant 3.200000e+01 : f32
    %3 = vector.broadcast %cst_1 : f32 to vector<16x1xf32>
    %4 = arith.divf %2, %3 : vector<16x1xf32>
    %5 = vector.broadcast %4 : vector<16x1xf32> to vector<16x32xf32>
    %6 = arith.subf %0, %5 : vector<16x32xf32>
    %7 = arith.mulf %6, %6 : vector<16x32xf32>
    %cst_2 = arith.constant dense<0.000000e+00> : vector<16xf32>
    %8 = vector.multi_reduction <add>, %7, %cst_2 [1] : vector<16x32xf32> to vector<16xf32>
    %9 = vector.shape_cast %8 : vector<16xf32> to vector<16x1xf32>
    %cst_3 = arith.constant 3.200000e+01 : f32
    %10 = vector.broadcast %cst_3 : f32 to vector<16x1xf32>
    %11 = arith.divf %9, %10 : vector<16x1xf32>
    %cst_4 = arith.constant 9.99999974E-6 : f32
    %12 = vector.broadcast %cst_4 : f32 to vector<16x1xf32>
    %13 = arith.addf %11, %12 : vector<16x1xf32>
    %14 = math.rsqrt %13 : vector<16x1xf32>
    %15 = vector.broadcast %14 : vector<16x1xf32> to vector<16x32xf32>
    %16 = arith.mulf %6, %15 : vector<16x32xf32>
    %c0_5 = arith.constant 0 : index
    %c0_6 = arith.constant 0 : index
    %17 = vector.load %arg2[%c0_5, %c0_6] : memref<1x32xf32, #tpu.memory_space<vmem>>, vector<1x32xf32>
    %18 = vector.broadcast %17 : vector<1x32xf32> to vector<16x32xf32>
    %19 = arith.mulf %16, %18 : vector<16x32xf32>
    %c0_7 = arith.constant 0 : index
    %c0_8 = arith.constant 0 : index
    %20 = vector.load %arg3[%c0_7, %c0_8] : memref<1x32xf32, #tpu.memory_space<vmem>>, vector<1x32xf32>
    %21 = vector.broadcast %20 : vector<1x32xf32> to vector<16x32xf32>
    %22 = arith.addf %19, %21 : vector<16x32xf32>
    %c0_9 = arith.constant 0 : index
    %c0_10 = arith.constant 0 : index
    %23 = vector.load %arg4[%c0_9, %c0_10] : memref<16x32xf32, #tpu.memory_space<vmem>>, vector<16x32xf32>
    tpu.vector_store %arg4[%c0_9, %c0_10], %22 {strides = array<i32>} : memref<16x32xf32, #tpu.memory_space<vmem>>, vector<16x32xf32>,
    return
  }
  func.func @transform_0(%arg0: i32) -> (i32, i32) {
    %c0_i32 = arith.constant 0 : i32
    %c0_i32_0 = arith.constant 0 : i32
    return %arg0, %c0_i32 : i32, i32
  }
  func.func @transform_1(%arg0: i32) -> (i32, i32) {
    %c0_i32 = arith.constant 0 : i32
    %c0_i32_0 = arith.constant 0 : i32
    %c0_i32_1 = arith.constant 0 : i32
    return %c0_i32, %c0_i32_0 : i32, i32
  }
  func.func @transform_2(%arg0: i32) -> (i32, i32) {
    %c0_i32 = arith.constant 0 : i32
    %c0_i32_0 = arith.constant 0 : i32
    %c0_i32_1 = arith.constant 0 : i32
    return %c0_i32, %c0_i32_0 : i32, i32
  }
  func.func @transform_3(%arg0: i32) -> (i32, i32) {
    %c0_i32 = arith.constant 0 : i32
    %c0_i32_0 = arith.constant 0 : i32
    return %arg0, %c0_i32 : i32, i32
  }
}

module attributes {stable_mosaic.version = 11 : i64} {
  func.func @_linear_res_ln_kernel(%arg0: i32, %arg1: i32, %arg2: memref<16x512xf32, #tpu.memory_space<vmem>>, %arg3: memref<512x32xf32, #tpu.memory_space<vmem>>, %arg4: memref<1x32xf32, #tpu.memory_space<vmem>>, %arg5: memref<16x32xf32, #tpu.memory_space<vmem>>, %arg6: memref<1x32xf32, #tpu.memory_space<vmem>>, %arg7: memref<1x32xf32, #tpu.memory_space<vmem>>, %arg8: memref<16x32xf32, #tpu.memory_space<vmem>>, %arg9: memref<16x32xf32, #tpu.memory_space<vmem>>) attributes {dimension_semantics = [#tpu.dimension_semantics<parallel>, #tpu.dimension_semantics<arbitrary>], iteration_bounds = array<i64: 1, 4>, scalar_prefetch = 0 : i64, scratch_operands = 1 : i64, tpu.core_type = #tpu.core_type<tc>, window_params = [{transform_indices = @transform_0, window_bounds = array<i64: 16, 512>}, {transform_indices = @transform_1, window_bounds = array<i64: 512, 32>}, {pipeline_mode = #tpu.pipeline_mode<synchronous>, transform_indices = @transform_2, window_bounds = array<i64: 1, 32>}, {transform_indices = @transform_3, window_bounds = array<i64: 16, 32>}, {pipeline_mode = #tpu.pipeline_mode<synchronous>, transform_indices = @transform_4, window_bounds = array<i64: 1, 32>}, {pipeline_mode = #tpu.pipeline_mode<synchronous>, transform_indices = @transform_5, window_bounds = array<i64: 1, 32>}, {transform_indices = @transform_6, window_bounds = array<i64: 16, 32>}]} {
    %c0_i32 = arith.constant 0 : i32
    %0 = arith.cmpi eq, %arg1, %c0_i32 : i32
    %1 = arith.extui %0 : i1 to i32
    %c0_i32_0 = arith.constant 0 : i32
    %2 = arith.cmpi ne, %1, %c0_i32_0 : i32
    scf.if %2 {
      %cst_9 = arith.constant 0.000000e+00 : f32
      %12 = vector.broadcast %cst_9 : f32 to vector<16x32xf32>
      %c0_10 = arith.constant 0 : index
      %c0_11 = arith.constant 0 : index
      %13 = vector.load %arg9[%c0_10, %c0_11] : memref<16x32xf32, #tpu.memory_space<vmem>>, vector<16x32xf32>
      tpu.vector_store %arg9[%c0_10, %c0_11], %12 {strides = array<i32>} : memref<16x32xf32, #tpu.memory_space<vmem>>, vector<16x32xf32>,
    } else {
    }
    %c0 = arith.constant 0 : index
    %c0_1 = arith.constant 0 : index
    %3 = vector.load %arg9[%c0, %c0_1] : memref<16x32xf32, #tpu.memory_space<vmem>>, vector<16x32xf32>
    %c0_2 = arith.constant 0 : index
    %c0_3 = arith.constant 0 : index
    %4 = vector.load %arg2[%c0_2, %c0_3] : memref<16x512xf32, #tpu.memory_space<vmem>>, vector<16x512xf32>
    %c0_4 = arith.constant 0 : index
    %c0_5 = arith.constant 0 : index
    %5 = vector.load %arg3[%c0_4, %c0_5] : memref<512x32xf32, #tpu.memory_space<vmem>>, vector<512x32xf32>
    %cst = arith.constant dense<0.000000e+00> : vector<16x32xf32>
    %6 = tpu.matmul %4, %5, %cst {dimension_numbers = #tpu.dot_dimension_numbers<[1], [0], [0], [1], [0, 0, 1, 1], [], []>} : vector<16x512xf32>, vector<512x32xf32>, vector<16x32xf32> -> vector<16x32xf32>
    %7 = arith.addf %3, %6 : vector<16x32xf32>
    %c0_6 = arith.constant 0 : index
    %c0_7 = arith.constant 0 : index
    %8 = vector.load %arg9[%c0_6, %c0_7] : memref<16x32xf32, #tpu.memory_space<vmem>>, vector<16x32xf32>
    tpu.vector_store %arg9[%c0_6, %c0_7], %7 {strides = array<i32>} : memref<16x32xf32, #tpu.memory_space<vmem>>, vector<16x32xf32>,
    %c3_i32 = arith.constant 3 : i32
    %9 = arith.cmpi eq, %arg1, %c3_i32 : i32
    %10 = arith.extui %9 : i1 to i32
    %c0_i32_8 = arith.constant 0 : i32
    %11 = arith.cmpi ne, %10, %c0_i32_8 : i32
    scf.if %11 {
      %c0_9 = arith.constant 0 : index
      %c0_10 = arith.constant 0 : index
      %12 = vector.load %arg9[%c0_9, %c0_10] : memref<16x32xf32, #tpu.memory_space<vmem>>, vector<16x32xf32>
      %c0_11 = arith.constant 0 : index
      %c0_12 = arith.constant 0 : index
      %13 = vector.load %arg4[%c0_11, %c0_12] : memref<1x32xf32, #tpu.memory_space<vmem>>, vector<1x32xf32>
      %14 = vector.broadcast %13 : vector<1x32xf32> to vector<16x32xf32>
      %15 = arith.addf %12, %14 : vector<16x32xf32>
      %c0_13 = arith.constant 0 : index
      %c0_14 = arith.constant 0 : index
      %16 = vector.load %arg5[%c0_13, %c0_14] : memref<16x32xf32, #tpu.memory_space<vmem>>, vector<16x32xf32>
      %17 = arith.addf %15, %16 : vector<16x32xf32>
      %cst_15 = arith.constant dense<0.000000e+00> : vector<16xf32>
      %18 = vector.multi_reduction <add>, %17, %cst_15 [1] : vector<16x32xf32> to vector<16xf32>
      %19 = vector.shape_cast %18 : vector<16xf32> to vector<16x1xf32>
      %cst_16 = arith.constant 3.200000e+01 : f32
      %20 = vector.broadcast %cst_16 : f32 to vector<16x1xf32>
      %21 = arith.divf %19, %20 : vector<16x1xf32>
      %22 = vector.broadcast %21 : vector<16x1xf32> to vector<16x32xf32>
      %23 = arith.subf %17, %22 : vector<16x32xf32>
      %24 = arith.mulf %23, %23 : vector<16x32xf32>
      %cst_17 = arith.constant dense<0.000000e+00> : vector<16xf32>
      %25 = vector.multi_reduction <add>, %24, %cst_17 [1] : vector<16x32xf32> to vector<16xf32>
      %26 = vector.shape_cast %25 : vector<16xf32> to vector<16x1xf32>
      %cst_18 = arith.constant 3.200000e+01 : f32
      %27 = vector.broadcast %cst_18 : f32 to vector<16x1xf32>
      %28 = arith.divf %26, %27 : vector<16x1xf32>
      %cst_19 = arith.constant 9.99999974E-6 : f32
      %29 = vector.broadcast %cst_19 : f32 to vector<16x1xf32>
      %30 = arith.addf %28, %29 : vector<16x1xf32>
      %31 = math.rsqrt %30 : vector<16x1xf32>
      %32 = vector.broadcast %31 : vector<16x1xf32> to vector<16x32xf32>
      %33 = arith.mulf %23, %32 : vector<16x32xf32>
      %c0_20 = arith.constant 0 : index
      %c0_21 = arith.constant 0 : index
      %34 = vector.load %arg6[%c0_20, %c0_21] : memref<1x32xf32, #tpu.memory_space<vmem>>, vector<1x32xf32>
      %35 = vector.broadcast %34 : vector<1x32xf32> to vector<16x32xf32>
      %36 = arith.mulf %33, %35 : vector<16x32xf32>
      %c0_22 = arith.constant 0 : index
      %c0_23 = arith.constant 0 : index
      %37 = vector.load %arg7[%c0_22, %c0_23] : memref<1x32xf32, #tpu.memory_space<vmem>>, vector<1x32xf32>
      %38 = vector.broadcast %37 : vector<1x32xf32> to vector<16x32xf32>
      %39 = arith.addf %36, %38 : vector<16x32xf32>
      %c0_24 = arith.constant 0 : index
      %c0_25 = arith.constant 0 : index
      %40 = vector.load %arg8[%c0_24, %c0_25] : memref<16x32xf32, #tpu.memory_space<vmem>>, vector<16x32xf32>
      tpu.vector_store %arg8[%c0_24, %c0_25], %39 {strides = array<i32>} : memref<16x32xf32, #tpu.memory_space<vmem>>, vector<16x32xf32>,
    } else {
    }
    return
  }
  func.func @transform_0(%arg0: i32, %arg1: i32) -> (i32, i32) {
    %c0_i32 = arith.constant 0 : i32
    return %arg0, %arg1 : i32, i32
  }
  func.func @transform_1(%arg0: i32, %arg1: i32) -> (i32, i32) {
    %c0_i32 = arith.constant 0 : i32
    %c0_i32_0 = arith.constant 0 : i32
    return %arg1, %c0_i32 : i32, i32
  }
  func.func @transform_2(%arg0: i32, %arg1: i32) -> (i32, i32) {
    %c0_i32 = arith.constant 0 : i32
    %c0_i32_0 = arith.constant 0 : i32
    %c0_i32_1 = arith.constant 0 : i32
    return %c0_i32, %c0_i32_0 : i32, i32
  }
  func.func @transform_3(%arg0: i32, %arg1: i32) -> (i32, i32) {
    %c0_i32 = arith.constant 0 : i32
    %c0_i32_0 = arith.constant 0 : i32
    return %arg0, %c0_i32 : i32, i32
  }
  func.func @transform_4(%arg0: i32, %arg1: i32) -> (i32, i32) {
    %c0_i32 = arith.constant 0 : i32
    %c0_i32_0 = arith.constant 0 : i32
    %c0_i32_1 = arith.constant 0 : i32
    return %c0_i32, %c0_i32_0 : i32, i32
  }
  func.func @transform_5(%arg0: i32, %arg1: i32) -> (i32, i32) {
    %c0_i32 = arith.constant 0 : i32
    %c0_i32_0 = arith.constant 0 : i32
    %c0_i32_1 = arith.constant 0 : i32
    return %c0_i32, %c0_i32_0 : i32, i32
  }
  func.func @transform_6(%arg0: i32, %arg1: i32) -> (i32, i32) {
    %c0_i32 = arith.constant 0 : i32
    %c0_i32_0 = arith.constant 0 : i32
    return %arg0, %c0_i32 : i32, i32
  }
}

module attributes {stable_mosaic.version = 11 : i64} {
  func.func @_linear_kernel(%arg0: i32, %arg1: i32, %arg2: i32, %arg3: memref<16x32xf32, #tpu.memory_space<vmem>>, %arg4: memref<32x64xf32, #tpu.memory_space<vmem>>, %arg5: memref<1x64xf32, #tpu.memory_space<vmem>>, %arg6: memref<16x64xf32, #tpu.memory_space<vmem>>, %arg7: memref<16x64xf32, #tpu.memory_space<vmem>>) attributes {dimension_semantics = [#tpu.dimension_semantics<parallel>, #tpu.dimension_semantics<parallel>, #tpu.dimension_semantics<arbitrary>], iteration_bounds = array<i64: 1, 1, 1>, scalar_prefetch = 0 : i64, scratch_operands = 1 : i64, tpu.core_type = #tpu.core_type<tc>, window_params = [{transform_indices = @transform_0, window_bounds = array<i64: 16, 32>}, {transform_indices = @transform_1, window_bounds = array<i64: 32, 64>}, {transform_indices = @transform_2, window_bounds = array<i64: 1, 64>}, {transform_indices = @transform_3, window_bounds = array<i64: 16, 64>}]} {
    %c0_i32 = arith.constant 0 : i32
    %0 = arith.cmpi eq, %arg2, %c0_i32 : i32
    %1 = arith.extui %0 : i1 to i32
    %c0_i32_0 = arith.constant 0 : i32
    %2 = arith.cmpi ne, %1, %c0_i32_0 : i32
    scf.if %2 {
      %cst_10 = arith.constant 0.000000e+00 : f32
      %12 = vector.broadcast %cst_10 : f32 to vector<16x64xf32>
      %c0_11 = arith.constant 0 : index
      %c0_12 = arith.constant 0 : index
      %13 = vector.load %arg7[%c0_11, %c0_12] : memref<16x64xf32, #tpu.memory_space<vmem>>, vector<16x64xf32>
      tpu.vector_store %arg7[%c0_11, %c0_12], %12 {strides = array<i32>} : memref<16x64xf32, #tpu.memory_space<vmem>>, vector<16x64xf32>,
    } else {
    }
    %c0 = arith.constant 0 : index
    %c0_1 = arith.constant 0 : index
    %3 = vector.load %arg7[%c0, %c0_1] : memref<16x64xf32, #tpu.memory_space<vmem>>, vector<16x64xf32>
    %c0_2 = arith.constant 0 : index
    %c0_3 = arith.constant 0 : index
    %4 = vector.load %arg3[%c0_2, %c0_3] : memref<16x32xf32, #tpu.memory_space<vmem>>, vector<16x32xf32>
    %c0_4 = arith.constant 0 : index
    %c0_5 = arith.constant 0 : index
    %5 = vector.load %arg4[%c0_4, %c0_5] : memref<32x64xf32, #tpu.memory_space<vmem>>, vector<32x64xf32>
    %cst = arith.constant dense<0.000000e+00> : vector<16x64xf32>
    %6 = tpu.matmul %4, %5, %cst {dimension_numbers = #tpu.dot_dimension_numbers<[1], [0], [0], [1], [0, 0, 1, 1], [], []>} : vector<16x32xf32>, vector<32x64xf32>, vector<16x64xf32> -> vector<16x64xf32>
    %7 = arith.addf %3, %6 : vector<16x64xf32>
    %c0_6 = arith.constant 0 : index
    %c0_7 = arith.constant 0 : index
    %8 = vector.load %arg7[%c0_6, %c0_7] : memref<16x64xf32, #tpu.memory_space<vmem>>, vector<16x64xf32>
    tpu.vector_store %arg7[%c0_6, %c0_7], %7 {strides = array<i32>} : memref<16x64xf32, #tpu.memory_space<vmem>>, vector<16x64xf32>,
    %c0_i32_8 = arith.constant 0 : i32
    %9 = arith.cmpi eq, %arg2, %c0_i32_8 : i32
    %10 = arith.extui %9 : i1 to i32
    %c0_i32_9 = arith.constant 0 : i32
    %11 = arith.cmpi ne, %10, %c0_i32_9 : i32
    scf.if %11 {
      %c0_10 = arith.constant 0 : index
      %c0_11 = arith.constant 0 : index
      %12 = vector.load %arg7[%c0_10, %c0_11] : memref<16x64xf32, #tpu.memory_space<vmem>>, vector<16x64xf32>
      %c0_12 = arith.constant 0 : index
      %c0_13 = arith.constant 0 : index
      %13 = vector.load %arg5[%c0_12, %c0_13] : memref<1x64xf32, #tpu.memory_space<vmem>>, vector<1x64xf32>
      %14 = vector.broadcast %13 : vector<1x64xf32> to vector<16x64xf32>
      %15 = arith.addf %12, %14 : vector<16x64xf32>
      %c0_14 = arith.constant 0 : index
      %c0_15 = arith.constant 0 : index
      %16 = vector.load %arg6[%c0_14, %c0_15] : memref<16x64xf32, #tpu.memory_space<vmem>>, vector<16x64xf32>
      tpu.vector_store %arg6[%c0_14, %c0_15], %15 {strides = array<i32>} : memref<16x64xf32, #tpu.memory_space<vmem>>, vector<16x64xf32>,
    } else {
    }
    return
  }
  func.func @transform_0(%arg0: i32, %arg1: i32, %arg2: i32) -> (i32, i32) {
    %c0_i32 = arith.constant 0 : i32
    return %arg0, %arg2 : i32, i32
  }
  func.func @transform_1(%arg0: i32, %arg1: i32, %arg2: i32) -> (i32, i32) {
    %c0_i32 = arith.constant 0 : i32
    return %arg2, %arg1 : i32, i32
  }
  func.func @transform_2(%arg0: i32, %arg1: i32, %arg2: i32) -> (i32, i32) {
    %c0_i32 = arith.constant 0 : i32
    %c0_i32_0 = arith.constant 0 : i32
    return %c0_i32, %arg1 : i32, i32
  }
  func.func @transform_3(%arg0: i32, %arg1: i32, %arg2: i32) -> (i32, i32) {
    %c0_i32 = arith.constant 0 : i32
    return %arg0, %arg1 : i32, i32
  }
}

module attributes {stable_mosaic.version = 11 : i64} {
  func.func @_linear_kernel(%arg0: i32, %arg1: i32, %arg2: i32, %arg3: memref<16x32xf32, #tpu.memory_space<vmem>>, %arg4: memref<32x32xf32, #tpu.memory_space<vmem>>, %arg5: memref<1x32xf32, #tpu.memory_space<vmem>>, %arg6: memref<16x32xf32, #tpu.memory_space<vmem>>, %arg7: memref<16x32xf32, #tpu.memory_space<vmem>>) attributes {dimension_semantics = [#tpu.dimension_semantics<parallel>, #tpu.dimension_semantics<parallel>, #tpu.dimension_semantics<arbitrary>], iteration_bounds = array<i64: 1, 1, 1>, scalar_prefetch = 0 : i64, scratch_operands = 1 : i64, tpu.core_type = #tpu.core_type<tc>, window_params = [{transform_indices = @transform_0, window_bounds = array<i64: 16, 32>}, {transform_indices = @transform_1, window_bounds = array<i64: 32, 32>}, {transform_indices = @transform_2, window_bounds = array<i64: 1, 32>}, {transform_indices = @transform_3, window_bounds = array<i64: 16, 32>}]} {
    %c0_i32 = arith.constant 0 : i32
    %0 = arith.cmpi eq, %arg2, %c0_i32 : i32
    %1 = arith.extui %0 : i1 to i32
    %c0_i32_0 = arith.constant 0 : i32
    %2 = arith.cmpi ne, %1, %c0_i32_0 : i32
    scf.if %2 {
      %cst_10 = arith.constant 0.000000e+00 : f32
      %12 = vector.broadcast %cst_10 : f32 to vector<16x32xf32>
      %c0_11 = arith.constant 0 : index
      %c0_12 = arith.constant 0 : index
      %13 = vector.load %arg7[%c0_11, %c0_12] : memref<16x32xf32, #tpu.memory_space<vmem>>, vector<16x32xf32>
      tpu.vector_store %arg7[%c0_11, %c0_12], %12 {strides = array<i32>} : memref<16x32xf32, #tpu.memory_space<vmem>>, vector<16x32xf32>,
    } else {
    }
    %c0 = arith.constant 0 : index
    %c0_1 = arith.constant 0 : index
    %3 = vector.load %arg7[%c0, %c0_1] : memref<16x32xf32, #tpu.memory_space<vmem>>, vector<16x32xf32>
    %c0_2 = arith.constant 0 : index
    %c0_3 = arith.constant 0 : index
    %4 = vector.load %arg3[%c0_2, %c0_3] : memref<16x32xf32, #tpu.memory_space<vmem>>, vector<16x32xf32>
    %c0_4 = arith.constant 0 : index
    %c0_5 = arith.constant 0 : index
    %5 = vector.load %arg4[%c0_4, %c0_5] : memref<32x32xf32, #tpu.memory_space<vmem>>, vector<32x32xf32>
    %cst = arith.constant dense<0.000000e+00> : vector<16x32xf32>
    %6 = tpu.matmul %4, %5, %cst {dimension_numbers = #tpu.dot_dimension_numbers<[1], [0], [0], [1], [0, 0, 1, 1], [], []>} : vector<16x32xf32>, vector<32x32xf32>, vector<16x32xf32> -> vector<16x32xf32>
    %7 = arith.addf %3, %6 : vector<16x32xf32>
    %c0_6 = arith.constant 0 : index
    %c0_7 = arith.constant 0 : index
    %8 = vector.load %arg7[%c0_6, %c0_7] : memref<16x32xf32, #tpu.memory_space<vmem>>, vector<16x32xf32>
    tpu.vector_store %arg7[%c0_6, %c0_7], %7 {strides = array<i32>} : memref<16x32xf32, #tpu.memory_space<vmem>>, vector<16x32xf32>,
    %c0_i32_8 = arith.constant 0 : i32
    %9 = arith.cmpi eq, %arg2, %c0_i32_8 : i32
    %10 = arith.extui %9 : i1 to i32
    %c0_i32_9 = arith.constant 0 : i32
    %11 = arith.cmpi ne, %10, %c0_i32_9 : i32
    scf.if %11 {
      %c0_10 = arith.constant 0 : index
      %c0_11 = arith.constant 0 : index
      %12 = vector.load %arg7[%c0_10, %c0_11] : memref<16x32xf32, #tpu.memory_space<vmem>>, vector<16x32xf32>
      %c0_12 = arith.constant 0 : index
      %c0_13 = arith.constant 0 : index
      %13 = vector.load %arg5[%c0_12, %c0_13] : memref<1x32xf32, #tpu.memory_space<vmem>>, vector<1x32xf32>
      %14 = vector.broadcast %13 : vector<1x32xf32> to vector<16x32xf32>
      %15 = arith.addf %12, %14 : vector<16x32xf32>
      %c0_14 = arith.constant 0 : index
      %c0_15 = arith.constant 0 : index
      %16 = vector.load %arg6[%c0_14, %c0_15] : memref<16x32xf32, #tpu.memory_space<vmem>>, vector<16x32xf32>
      tpu.vector_store %arg6[%c0_14, %c0_15], %15 {strides = array<i32>} : memref<16x32xf32, #tpu.memory_space<vmem>>, vector<16x32xf32>,
    } else {
    }
    return
  }
  func.func @transform_0(%arg0: i32, %arg1: i32, %arg2: i32) -> (i32, i32) {
    %c0_i32 = arith.constant 0 : i32
    return %arg0, %arg2 : i32, i32
  }
  func.func @transform_1(%arg0: i32, %arg1: i32, %arg2: i32) -> (i32, i32) {
    %c0_i32 = arith.constant 0 : i32
    return %arg2, %arg1 : i32, i32
  }
  func.func @transform_2(%arg0: i32, %arg1: i32, %arg2: i32) -> (i32, i32) {
    %c0_i32 = arith.constant 0 : i32
    %c0_i32_0 = arith.constant 0 : i32
    return %c0_i32, %arg1 : i32, i32
  }
  func.func @transform_3(%arg0: i32, %arg1: i32, %arg2: i32) -> (i32, i32) {
    %c0_i32 = arith.constant 0 : i32
    return %arg0, %arg1 : i32, i32
  }
}

module attributes {stable_mosaic.version = 11 : i64} {
  func.func @_ln_kernel(%arg0: i32, %arg1: memref<16x32xf32, #tpu.memory_space<vmem>>, %arg2: memref<1x32xf32, #tpu.memory_space<vmem>>, %arg3: memref<1x32xf32, #tpu.memory_space<vmem>>, %arg4: memref<16x32xf32, #tpu.memory_space<vmem>>) attributes {dimension_semantics = [#tpu.dimension_semantics<parallel>], iteration_bounds = array<i64: 1>, scalar_prefetch = 0 : i64, scratch_operands = 0 : i64, tpu.core_type = #tpu.core_type<tc>, window_params = [{transform_indices = @transform_0, window_bounds = array<i64: 16, 32>}, {pipeline_mode = #tpu.pipeline_mode<synchronous>, transform_indices = @transform_1, window_bounds = array<i64: 1, 32>}, {pipeline_mode = #tpu.pipeline_mode<synchronous>, transform_indices = @transform_2, window_bounds = array<i64: 1, 32>}, {transform_indices = @transform_3, window_bounds = array<i64: 16, 32>}]} {
    %c0 = arith.constant 0 : index
    %c0_0 = arith.constant 0 : index
    %0 = vector.load %arg1[%c0, %c0_0] : memref<16x32xf32, #tpu.memory_space<vmem>>, vector<16x32xf32>
    %cst = arith.constant dense<0.000000e+00> : vector<16xf32>
    %1 = vector.multi_reduction <add>, %0, %cst [1] : vector<16x32xf32> to vector<16xf32>
    %2 = vector.shape_cast %1 : vector<16xf32> to vector<16x1xf32>
    %cst_1 = arith.constant 3.200000e+01 : f32
    %3 = vector.broadcast %cst_1 : f32 to vector<16x1xf32>
    %4 = arith.divf %2, %3 : vector<16x1xf32>
    %5 = vector.broadcast %4 : vector<16x1xf32> to vector<16x32xf32>
    %6 = arith.subf %0, %5 : vector<16x32xf32>
    %7 = arith.mulf %6, %6 : vector<16x32xf32>
    %cst_2 = arith.constant dense<0.000000e+00> : vector<16xf32>
    %8 = vector.multi_reduction <add>, %7, %cst_2 [1] : vector<16x32xf32> to vector<16xf32>
    %9 = vector.shape_cast %8 : vector<16xf32> to vector<16x1xf32>
    %cst_3 = arith.constant 3.200000e+01 : f32
    %10 = vector.broadcast %cst_3 : f32 to vector<16x1xf32>
    %11 = arith.divf %9, %10 : vector<16x1xf32>
    %cst_4 = arith.constant 9.99999974E-6 : f32
    %12 = vector.broadcast %cst_4 : f32 to vector<16x1xf32>
    %13 = arith.addf %11, %12 : vector<16x1xf32>
    %14 = math.rsqrt %13 : vector<16x1xf32>
    %15 = vector.broadcast %14 : vector<16x1xf32> to vector<16x32xf32>
    %16 = arith.mulf %6, %15 : vector<16x32xf32>
    %c0_5 = arith.constant 0 : index
    %c0_6 = arith.constant 0 : index
    %17 = vector.load %arg2[%c0_5, %c0_6] : memref<1x32xf32, #tpu.memory_space<vmem>>, vector<1x32xf32>
    %18 = vector.broadcast %17 : vector<1x32xf32> to vector<16x32xf32>
    %19 = arith.mulf %16, %18 : vector<16x32xf32>
    %c0_7 = arith.constant 0 : index
    %c0_8 = arith.constant 0 : index
    %20 = vector.load %arg3[%c0_7, %c0_8] : memref<1x32xf32, #tpu.memory_space<vmem>>, vector<1x32xf32>
    %21 = vector.broadcast %20 : vector<1x32xf32> to vector<16x32xf32>
    %22 = arith.addf %19, %21 : vector<16x32xf32>
    %c0_9 = arith.constant 0 : index
    %c0_10 = arith.constant 0 : index
    %23 = vector.load %arg4[%c0_9, %c0_10] : memref<16x32xf32, #tpu.memory_space<vmem>>, vector<16x32xf32>
    tpu.vector_store %arg4[%c0_9, %c0_10], %22 {strides = array<i32>} : memref<16x32xf32, #tpu.memory_space<vmem>>, vector<16x32xf32>,
    return
  }
  func.func @transform_0(%arg0: i32) -> (i32, i32) {
    %c0_i32 = arith.constant 0 : i32
    %c0_i32_0 = arith.constant 0 : i32
    return %arg0, %c0_i32 : i32, i32
  }
  func.func @transform_1(%arg0: i32) -> (i32, i32) {
    %c0_i32 = arith.constant 0 : i32
    %c0_i32_0 = arith.constant 0 : i32
    %c0_i32_1 = arith.constant 0 : i32
    return %c0_i32, %c0_i32_0 : i32, i32
  }
  func.func @transform_2(%arg0: i32) -> (i32, i32) {
    %c0_i32 = arith.constant 0 : i32
    %c0_i32_0 = arith.constant 0 : i32
    %c0_i32_1 = arith.constant 0 : i32
    return %c0_i32, %c0_i32_0 : i32, i32
  }
  func.func @transform_3(%arg0: i32) -> (i32, i32) {
    %c0_i32 = arith.constant 0 : i32
    %c0_i32_0 = arith.constant 0 : i32
    return %arg0, %c0_i32 : i32, i32
  }
}

</mosaic_0001>

<llo_original>
// kernel: _lambda_.16
$region0: #{_lambda_.16}
  #allocation0 [shape = 'u32[]', space=smem, size = 0x4, offset = 0x4, fixed_abs, tag = 'smem constant byte address 0x4 - core index']
  #allocation1 [shape = 'u32[144,128]{1,0:T(1,128)}', space=vmem, size = 0x12000, scoped, tag = 'internal scratch']
  #allocation2 [shape = 'f32[16,96]{1,0:T(8,128)}', space=vmem, size = 0x2000, scoped, tag = 'scratch operand']
  %s0 = inlined_call_operand.vmem [shape: f32[16,32], index: 0, kind: input, shape index: {}]
  %s1 = inlined_call_operand.vmem [shape: f32[32,96], index: 1, kind: input, shape index: {}]
  %s2 = inlined_call_operand.vmem [shape: f32[1,96], index: 2, kind: input, shape index: {}]
  %s3 = inlined_call_operand.vmem [shape: f32[16,96], index: 3, kind: output, shape index: {}]
  %s4 = sld [smem:[#allocation0]]
  $region30: #{_lambda_.16} parent=0
    _
  %s6 = ssub.s32 1, %s4
  %s7 = scalar_select 0, %s6, %s4
  // Predicated region
  $region2: #{_lambda_.16} parent=0 // pred_check
    _
  $region3: #{_lambda_.16} parent=0 // pred_check_branch
    %9 = sbr.rel (0) target = $region5
  $region4: #{_lambda_.16} parent=0 // pred_region
    _
  $region5: #{_lambda_.16} parent=0 // pred_fallthru
    _
  // Predicated region
  $region6: #{_lambda_.16} parent=0 // pred_check
    _
  $region7: #{_lambda_.16} parent=0 // pred_check_branch
    %11 = sbr.rel (0) target = $region9
  $region8: #{_lambda_.16} parent=0 // pred_region
    _
  $region9: #{_lambda_.16} parent=0 // pred_fallthru
    _
  // Predicated region
  $region10: #{_lambda_.16} parent=0 // pred_check
    _
  $region11: #{_lambda_.16} parent=0 // pred_check_branch
    %13 = sbr.rel (0) target = $region13
  $region12: #{_lambda_.16} parent=0 // pred_region
    _
  $region13: #{_lambda_.16} parent=0 // pred_fallthru
    _
  %p14 = scmp.eq.s32.totalorder 0, 0
  // Predicated region
  $region14: #{_lambda_.16} parent=0 // pred_check
    %p15 = pneg %p14
  $region15: #{_lambda_.16} parent=0 // pred_check_branch
    %17 = sbr.rel (%p15) target = $region17
  $region16: #{_lambda_.16} parent=0 // pred_region
    %vm18 = vcmask 785408
    %19 = vst.msk [vmem:[#allocation2] sm:$0xff] %vm18, 0.0
    %20 = vst.msk [vmem:[#allocation2 + $0x8] sm:$0xff] %vm18, 0.0
  $region17: #{_lambda_.16} parent=0 // pred_fallthru
    _
  %v21 = vld [vmem:[#allocation2] sm:$0xff]
  %v22 = vld [vmem:[#allocation2 + $0x8] sm:$0xff]
  %v23 = vld [vmem:[%s0] sm:$0xff]
  %v24 = vld [vmem:[%s0 + $0x8] sm:$0xff]
  %v25 = vld [vmem:[%s1] sm:$0xff]
  %v26 = vld [vmem:[%s1 + $0x8] sm:$0xff]
  %v27 = vld [vmem:[%s1 + $0x10] sm:$0xff]
  %v28 = vld [vmem:[%s1 + $0x18] sm:$0xff]
  %vm29 = vcmask 261120
  %v31 = vsel %vm29, %v23, 0
  %v34 = vsel %vm29, %v24, 0
  %36 = vmatprep.subr.mxu0 0.0
  %37 = vmatpush1.msra.mxu0 0.0
  %38 = vmatprep.subr.mxu0 0.0
  %39 = vmatpush1.msra.mxu0 0.0
  %40 = vmatprep.subr.mxu0 0.0
  %41 = vmatpush1.msra.mxu0 0.0
  %42 = vmatprep.subr.mxu0 0.0
  %43 = vmatpush1.msra.mxu0 0.0
  %44 = vmatprep.subr.mxu0 0.0
  %45 = vmatpush1.msra.mxu0 0.0
  %46 = vmatprep.subr.mxu0 0.0
  %47 = vmatpush1.msra.mxu0 0.0
  %48 = vmatprep.subr.mxu0 0.0
  %49 = vmatpush1.msra.mxu0 0.0
  %50 = vmatprep.subr.mxu0 0.0
  %51 = vmatpush1.msra.mxu0 0.0
  %52 = vmatprep.subr.mxu0 0.0
  %53 = vmatpush1.msra.mxu0 0.0
  %54 = vmatprep.subr.mxu0 0.0
  %55 = vmatpush1.msra.mxu0 0.0
  %56 = vmatprep.subr.mxu0 0.0
  %57 = vmatpush1.msra.mxu0 0.0
  %58 = vmatprep.subr.mxu0 0.0
  %59 = vmatpush1.msra.mxu0 0.0
  %60 = vmatprep.subr.mxu0 0.0
  %61 = vmatpush1.msra.mxu0 %v28
  %62 = vmatprep.subr.mxu0 0.0
  %63 = vmatpush1.msra.mxu0 %v27
  %64 = vmatprep.subr.mxu0 0.0
  %65 = vmatpush1.msra.mxu0 %v26
  %66 = vmatprep.subr.mxu0 0.0
  %67 = vmatpush1.msra.mxu0 %v25
  %68 = vmatprep.subr.mxu0 0.0
  %69 = vmatpush2.msra.mxu0 0.0
  %70 = vmatprep.subr.mxu0 0.0
  %71 = vmatpush2.msra.mxu0 0.0
  %72 = vmatprep.subr.mxu0 0.0
  %73 = vmatpush2.msra.mxu0 0.0
  %74 = vmatprep.subr.mxu0 0.0
  %75 = vmatpush2.msra.mxu0 0.0
  %76 = vmatprep.subr.mxu0 0.0
  %77 = vmatpush2.msra.mxu0 0.0
  %78 = vmatprep.subr.mxu0 0.0
  %79 = vmatpush2.msra.mxu0 0.0
  %80 = vmatprep.subr.mxu0 0.0
  %81 = vmatpush2.msra.mxu0 0.0
  %82 = vmatprep.subr.mxu0 0.0
  %83 = vmatpush2.msra.mxu0 0.0
  %84 = vmatprep.subr.mxu0 0.0
  %85 = vmatpush2.msra.mxu0 0.0
  %86 = vmatprep.subr.mxu0 0.0
  %87 = vmatpush2.msra.mxu0 0.0
  %88 = vmatprep.subr.mxu0 0.0
  %89 = vmatpush2.msra.mxu0 0.0
  %90 = vmatprep.subr.mxu0 0.0
  %91 = vmatpush2.msra.mxu0 0.0
  %92 = vmatprep.subr.mxu0 0.0
  %93 = vmatpush2.msra.mxu0 0.0
  %94 = vmatprep.subr.mxu0 0.0
  %95 = vmatpush2.msra.mxu0 0.0
  %96 = vmatprep.subr.mxu0 0.0
  %97 = vmatpush2.msra.mxu0 0.0
  %98 = vmatprep.subr.mxu0 0.0
  %99 = vmatpush2.msra.mxu0 0.0
  %100 = vmatprep.mubr.f32.mxu0 0.0
  %101 = vmatmul.mubr.f32.gmra.mxu0 %v31
  %v102 = vpop.f32.mrf.mxu0
  %v103 = vadd.f32 0.0, %v102
  %v104 = vpop.f32.mrf.mxu0
  %105 = vmatprep.mubr.f32.mxu0 0.0
  %106 = vmatmul.mubr.f32.gmra.mxu0 %v34
  %v107 = vpop.f32.mrf.mxu0
  %v108 = vadd.f32 0.0, %v107
  %v109 = vpop.f32.mrf.mxu0
  %110 = vdwg.mxu0
  %v111 = vadd.f32 %v21, %v103
  %v112 = vadd.f32 %v22, %v108
  %vm113 = vcmask 785408
  %114 = vst.msk [vmem:[#allocation2] sm:$0xff] %vm113, %v111
  %115 = vst.msk [vmem:[#allocation2 + $0x8] sm:$0xff] %vm113, %v112
  // Predicated region
  $region18: #{_lambda_.16} parent=0 // pred_check
    %p116 = pneg %p14
  $region19: #{_lambda_.16} parent=0 // pred_check_branch
    %118 = sbr.rel (%p116) target = $region21
  $region20: #{_lambda_.16} parent=0 // pred_region
    %v119 = vld [vmem:[#allocation2] sm:$0xff]
    %v120 = vld [vmem:[#allocation2 + $0x8] sm:$0xff]
    %v121 = vld [vmem:[%s2] sm:$0x1]
    %v123 = vlaneseq
    %v124 = vshrl.u32 %v123, 7
    %v125 = vsub.s32 0, %v124
    %v126 = vrot.slane %v121, %v125
    %v128 = vadd.f32 %v119, %v126
    %v129 = vadd.f32 %v120, %v126
    %130 = vst.msk [vmem:[%s3] sm:$0xff] %vm113, %v128
    %131 = vst.msk [vmem:[%s3 + $0x8] sm:$0xff] %vm113, %v129
  $region21: #{_lambda_.16} parent=0 // pred_fallthru
    _
  // Predicated region
  $region22: #{_lambda_.16} parent=0 // pred_check
    _
  $region23: #{_lambda_.16} parent=0 // pred_check_branch
    %133 = sbr.rel (0) target = $region25
  $region24: #{_lambda_.16} parent=0 // pred_region
    _
  $region25: #{_lambda_.16} parent=0 // pred_fallthru
    _
  // Predicated region
  $region26: #{_lambda_.16} parent=0 // pred_check
    _
  $region27: #{_lambda_.16} parent=0 // pred_check_branch
    %135 = sbr.rel (0) target = $region29
  $region28: #{_lambda_.16} parent=0 // pred_region
    _
  $region29: #{_lambda_.16} parent=0 // pred_fallthru
    _

// kernel: _lambda_.19
$region0: #{_lambda_.19}
  #allocation0 [shape = 'u32[]', space=smem, size = 0x4, offset = 0x4, fixed_abs, tag = 'smem constant byte address 0x4 - core index']
  #allocation1 [shape = 'u32[144,128]{1,0:T(1,128)}', space=vmem, size = 0x12000, scoped, tag = 'internal scratch']
  #allocation2 [shape = 'f32[16,256]{1,0:T(8,128)}', space=vmem, size = 0x4000, scoped, tag = 'scratch operand']
  %s0 = inlined_call_operand.vmem [shape: f32[16,32], index: 0, kind: input, shape index: {}]
  %s1 = inlined_call_operand.vmem [shape: f32[32,2048], index: 1, kind: input, shape index: {}]
  %s2 = inlined_call_operand.vmem [shape: f32[1,2048], index: 2, kind: input, shape index: {}]
  %s3 = inlined_call_operand.vmem [shape: f32[16,2048], index: 3, kind: output, shape index: {}]
  %s4 = sld [smem:[#allocation0]]
  $region95: #{_lambda_.19} parent=0
    _
  %s6 = ssub.s32 1, %s4
  %s7 = scalar_select 0, %s6, %s4
  $region1: #{_lambda_.19} parent=0
    #allocation3 [shape = 'u8[65536]{0}', space=vmem, size = 0x10000, scoped, tag = 'input window, operand 1']
    #allocation4 [shape = 'u8[32768]{0}', space=vmem, size = 0x8000, scoped, tag = 'output window, operand 0']
    loop: start=0, step=1, limit=10
    $region2: #{_lambda_.19} parent=1 // loop_pre_header
      _
    $region3: #{_lambda_.19} parent=1 // loop_header
      %s9 = sphi 0, %s13
      %p10 = scmp.ge.s32.totalorder %s9, 10
      %s16 = sphi 0, %s35
      %s17 = sphi 0, %s31
      %s18 = sphi 0, %s27
      %s19 = sphi 0, %s16
      %s20 = sphi 0, %s17
      %s21 = sphi 0, %s18
      %s22 = sphi 0, %s19
      %s23 = sphi 0, %s20
      %s24 = sphi 0, %s21
      %s40 = sphi 0, %s42
      %s43 = sphi 0, %s40
      %s44 = sphi 0, %s43
      %s60 = sphi 0, %s44
      %s68 = sphi 0, %s70
      %s71 = sphi 0, %s68
      %s72 = sphi 0, %s71
      %s88 = sphi 0, %s72
      %s94 = sphi 0, %s96
      %s97 = sphi 0, %s94
      %s98 = sphi 0, %s97
      %s114 = sphi 0, %s98
      %s122 = sphi 0, %s124
      %s125 = sphi 0, %s122
      %s126 = sphi 0, %s125
      %s142 = sphi 0, %s126
    $region4: #{_lambda_.19} parent=1 // loop_header_branch
      %12 = sbr.rel (%p10) target = $region8
    $region5: #{_lambda_.19} parent=1 // loop_body
      %s14 = ssub.s32 %s9, 1
      %s15 = ssub.s32 %s9, 2
      %s25 = sadd.s32 1, %s18
      %p26 = scmp.ge.s32.totalorder %s25, 1
      %s27 = scalar_select %p26, 0, %s25
      %s28 = sadd.s32 1, %s17
      %s29 = scalar_select %p26, %s28, %s17
      %p30 = scmp.ge.s32.totalorder %s29, 8
      %s31 = scalar_select %p30, 0, %s29
      %s32 = sadd.s32 1, %s16
      %s33 = scalar_select %p30, %s32, %s16
      %p34 = scmp.ge.s32.totalorder %s33, 1
      %s35 = scalar_select %p34, 0, %s33
      %s36 = ssub.s32 %s16, %s35
      %s37 = ssub.s32 %s18, %s27
      %s38 = sor.u32 %s36, %s37
      %p39 = scmp.eq.s32.totalorder %s38, 0
      %s41 = sadd.s32 %s40, 1
      %s42 = scalar_select %p39, %s40, %s41
      %p45 = pneg %p39
      %p46 = scmp.eq.s32.totalorder %s9, 7
      %p47 = por %p45, %p46
      %p48 = scmp.ne.s32.totalorder %s40, %s43
      %p49 = scmp.eq.s32.totalorder %s9, 0
      %p50 = por %p48, %p49
      %p51 = scmp.ne.s32.totalorder %s40, %s43
      %p52 = scmp.eq.s32.totalorder %s14, 7
      %p53 = por %p51, %p52
      %p54 = scmp.ne.s32.totalorder %s43, %s44
      %p55 = scmp.eq.s32.totalorder %s14, 0
      %p56 = por %p54, %p55
      %p57 = scmp.ne.s32.totalorder %s43, %s44
      %p58 = scmp.eq.s32.totalorder %s15, 7
      %p59 = por %p57, %p58
      %p61 = scmp.ne.s32.totalorder %s44, %s60
      %p62 = scmp.eq.s32.totalorder %s15, 0
      %p63 = por %p61, %p62
      %s64 = ssub.s32 %s18, %s27
      %s65 = ssub.s32 %s17, %s31
      %s66 = sor.u32 %s64, %s65
      %p67 = scmp.eq.s32.totalorder %s66, 0
      %s69 = sadd.s32 %s68, 1
      %s70 = scalar_select %p67, %s68, %s69
      %p73 = pneg %p67
      %p74 = scmp.eq.s32.totalorder %s9, 7
      %p75 = por %p73, %p74
      %p76 = scmp.ne.s32.totalorder %s68, %s71
      %p77 = scmp.eq.s32.totalorder %s9, 0
      %p78 = por %p76, %p77
      %p79 = scmp.ne.s32.totalorder %s68, %s71
      %p80 = scmp.eq.s32.totalorder %s14, 7
      %p81 = por %p79, %p80
      %p82 = scmp.ne.s32.totalorder %s71, %s72
      %p83 = scmp.eq.s32.totalorder %s14, 0
      %p84 = por %p82, %p83
      %p85 = scmp.ne.s32.totalorder %s71, %s72
      %p86 = scmp.eq.s32.totalorder %s15, 7
      %p87 = por %p85, %p86
      %p89 = scmp.ne.s32.totalorder %s72, %s88
      %p90 = scmp.eq.s32.totalorder %s15, 0
      %p91 = por %p89, %p90
      %s92 = ssub.s32 %s17, %s31
      %p93 = scmp.eq.s32.totalorder %s92, 0
      %s95 = sadd.s32 %s94, 1
      %s96 = scalar_select %p93, %s94, %s95
      %p99 = pneg %p93
      %p100 = scmp.eq.s32.totalorder %s9, 7
      %p101 = por %p99, %p100
      %p102 = scmp.ne.s32.totalorder %s94, %s97
      %p103 = scmp.eq.s32.totalorder %s9, 0
      %p104 = por %p102, %p103
      %p105 = scmp.ne.s32.totalorder %s94, %s97
      %p106 = scmp.eq.s32.totalorder %s14, 7
      %p107 = por %p105, %p106
      %p108 = scmp.ne.s32.totalorder %s97, %s98
      %p109 = scmp.eq.s32.totalorder %s14, 0
      %p110 = por %p108, %p109
      %p111 = scmp.ne.s32.totalorder %s97, %s98
      %p112 = scmp.eq.s32.totalorder %s15, 7
      %p113 = por %p111, %p112
      %p115 = scmp.ne.s32.totalorder %s98, %s114
      %p116 = scmp.eq.s32.totalorder %s15, 0
      %p117 = por %p115, %p116
      %s118 = ssub.s32 %s16, %s35
      %s119 = ssub.s32 %s17, %s31
      %s120 = sor.u32 %s118, %s119
      %p121 = scmp.eq.s32.totalorder %s120, 0
      %s123 = sadd.s32 %s122, 1
      %s124 = scalar_select %p121, %s122, %s123
      %p127 = pneg %p121
      %p128 = scmp.eq.s32.totalorder %s9, 7
      %p129 = por %p127, %p128
      %p130 = scmp.ne.s32.totalorder %s122, %s125
      %p131 = scmp.eq.s32.totalorder %s9, 0
      %p132 = por %p130, %p131
      %p133 = scmp.ne.s32.totalorder %s122, %s125
      %p134 = scmp.eq.s32.totalorder %s14, 7
      %p135 = por %p133, %p134
      %p136 = scmp.ne.s32.totalorder %s125, %s126
      %p137 = scmp.eq.s32.totalorder %s14, 0
      %p138 = por %p136, %p137
      %p139 = scmp.ne.s32.totalorder %s125, %s126
      %p140 = scmp.eq.s32.totalorder %s15, 7
      %p141 = por %p139, %p140
      %p143 = scmp.ne.s32.totalorder %s126, %s142
      %p144 = scmp.eq.s32.totalorder %s15, 0
      %p145 = por %p143, %p144
      %p146 = scmp.le.s32.totalorder 1, %s9
      %p147 = scmp.lt.s32.totalorder %s9, 9
      %p148 = pnand %p146, %p147
      %p149 = pneg %p148
      // Predicated region
      $region9: #{_lambda_.19} parent=5 // pred_check
        _
      $region10: #{_lambda_.19} parent=5 // pred_check_branch
        %151 = sbr.rel (%p148) target = $region12
      $region11: #{_lambda_.19} parent=5 // pred_region
        %s152 = ssub.s32 %s9, 1
        // Predicated region
        $region13: #{_lambda_.19} parent=11 // pred_check
          %p153 = pneg %p56
        $region14: #{_lambda_.19} parent=11 // pred_check_branch
          %155 = sbr.rel (%p153) target = $region16
        $region15: #{_lambda_.19} parent=11 // pred_region
          %s156 = smul.u32 2, %s19
          %p157 = scmp.lt.s32.totalorder %s156, 1
          %s158 = scalar_select %p157, %s156, 1
          %p159 = scmp.lt.s32.totalorder %s21, 0
          %s160 = scalar_select %p159, %s21, 0
          %s161 = sadd.s32 %s160, %s158
          %s162 = smul.addr %s161, 8
          %s163 = scalar_lea.vmem %s0, %s162
          %s164 = smul.u32 2, %s19
        $region16: #{_lambda_.19} parent=11 // pred_fallthru
          _
      $region12: #{_lambda_.19} parent=5 // pred_fallthru
        _
      %p165 = scmp.lt.s32.totalorder %s9, 8
      // Predicated region
      $region17: #{_lambda_.19} parent=5 // pred_check
        %p166 = pneg %p165
      $region18: #{_lambda_.19} parent=5 // pred_check_branch
        %168 = sbr.rel (%p166) target = $region20
      $region19: #{_lambda_.19} parent=5 // pred_region
        // Predicated region
        $region21: #{_lambda_.19} parent=19 // pred_check
          %p169 = pneg %p78
        $region22: #{_lambda_.19} parent=19 // pred_check_branch
          %171 = sbr.rel (%p169) target = $region24
        $region23: #{_lambda_.19} parent=19 // pred_region
          %s172 = sand.u32 %s68, 1
          %s173 = sand.u32 %s68, 1
          %s174 = smul.addr %s173, 64
          %s175 = scalar_lea.vmem [#allocation3], %s174
          %s176 = smul.u32 4, %s18
          %s177 = smul.u32 2, %s17
          %s178 = smul.addr %s176, 16
          %s179 = sadd.s32 %s177, %s178
          %s180 = smul.addr %s179, 8
          %s181 = scalar_lea.vmem %s1, %s180
          // Predicated region
          $region25: #{_lambda_.19} parent=23 // pred_check
            _
          $region26: #{_lambda_.19} parent=23 // pred_check_branch
            %183 = sbr.rel (0) target = $region28
          $region27: #{_lambda_.19} parent=23 // pred_region
            // Predicated region
            $region29: #{_lambda_.19} parent=27 // pred_check
              _
            $region30: #{_lambda_.19} parent=27 // pred_check_branch
              %185 = sbr.rel (0) target = $region32
            $region31: #{_lambda_.19} parent=27 // pred_region
              loop: start=0, step=1, limit=1
              $region33: #{_lambda_.19} parent=31 // loop_pre_header
                _
              $region34: #{_lambda_.19} parent=31 // loop_header
                %s187 = sphi 0, %s191
                %p188 = scmp.ge.s32.totalorder %s187, 1
                %s192 = sphi %s181, %s181
                %s193 = sphi %s175, %s175
              $region35: #{_lambda_.19} parent=31 // loop_header_branch
                %190 = sbr.rel (%p188) target = $region39
              $region36: #{_lambda_.19} parent=31 // loop_body
                %v194 = vld [vmem:[%s192] sm:$0xff]
                %195 = vst [vmem:[%s193] sm:$0xff] %v194
                %v196 = vld [vmem:[%s192 + $0x8] sm:$0xff]
                %197 = vst [vmem:[%s193 + $0x8] sm:$0xff] %v196
                %v198 = vld [vmem:[%s192 + $0x80] sm:$0xff]
                %199 = vst [vmem:[%s193 + $0x10] sm:$0xff] %v198
                %v200 = vld [vmem:[%s192 + $0x88] sm:$0xff]
                %201 = vst [vmem:[%s193 + $0x18] sm:$0xff] %v200
                %v202 = vld [vmem:[%s192 + $0x100] sm:$0xff]
                %203 = vst [vmem:[%s193 + $0x20] sm:$0xff] %v202
                %v204 = vld [vmem:[%s192 + $0x108] sm:$0xff]
                %205 = vst [vmem:[%s193 + $0x28] sm:$0xff] %v204
                %v206 = vld [vmem:[%s192 + $0x180] sm:$0xff]
                %207 = vst [vmem:[%s193 + $0x30] sm:$0xff] %v206
                %v208 = vld [vmem:[%s192 + $0x188] sm:$0xff]
                %209 = vst [vmem:[%s193 + $0x38] sm:$0xff] %v208
              $region37: #{_lambda_.19} parent=31 // loop_footer
                %s191 = sadd.s32 1, %s187
              $region38: #{_lambda_.19} parent=31 // loop_footer_branch
                %186 = sbr.rel target = $region34
              $region39: #{_lambda_.19} parent=31 // loop_exit
                _
            $region32: #{_lambda_.19} parent=27 // pred_fallthru
              _
            // Predicated region
            $region40: #{_lambda_.19} parent=27 // pred_check
              _
            $region41: #{_lambda_.19} parent=27 // pred_check_branch
              %211 = sbr.rel target = $region43
            $region42: #{_lambda_.19} parent=27 // pred_region
              _
            $region43: #{_lambda_.19} parent=27 // pred_fallthru
              _
          $region28: #{_lambda_.19} parent=23 // pred_fallthru
            _
          %212 = vnop
        $region24: #{_lambda_.19} parent=19 // pred_fallthru
          _
        // Predicated region
        $region44: #{_lambda_.19} parent=19 // pred_check
          %p213 = pneg %p104
        $region45: #{_lambda_.19} parent=19 // pred_check_branch
          %215 = sbr.rel (%p213) target = $region47
        $region46: #{_lambda_.19} parent=19 // pred_region
          %s216 = smul.u32 2, %s17
          %p217 = scmp.lt.s32.totalorder %s216, 15
          %s218 = scalar_select %p217, %s216, 15
          %s219 = scalar_lea.vmem %s2, %s218
          %s220 = smul.u32 2, %s17
        $region47: #{_lambda_.19} parent=19 // pred_fallthru
          _
      $region20: #{_lambda_.19} parent=5 // pred_fallthru
        _
      %p221 = scmp.le.s32.totalorder 1, %s9
      %p222 = scmp.lt.s32.totalorder %s9, 9
      %p223 = pnand %p221, %p222
      %p224 = pneg %p223
      // Predicated region
      $region48: #{_lambda_.19} parent=5 // pred_check
        _
      $region49: #{_lambda_.19} parent=5 // pred_check_branch
        %226 = sbr.rel (%p223) target = $region51
      $region50: #{_lambda_.19} parent=5 // pred_region
        %s227 = ssub.s32 %s9, 1
        %s228 = sand.u32 %s71, 1
        %s229 = sand.u32 %s71, 1
        %s230 = smul.addr %s229, 64
        %s231 = scalar_lea.vmem [#allocation3], %s230
        // Predicated region
        $region52: #{_lambda_.19} parent=50 // pred_check
          %p232 = pneg %p84
        $region53: #{_lambda_.19} parent=50 // pred_check_branch
          %234 = sbr.rel (%p232) target = $region55
        $region54: #{_lambda_.19} parent=50 // pred_region
          _
        $region55: #{_lambda_.19} parent=50 // pred_fallthru
          _
        %s235 = smul.u32 2, %s19
        %p236 = scmp.lt.s32.totalorder %s235, 1
        %s237 = scalar_select %p236, %s235, 1
        %p238 = scmp.lt.s32.totalorder %s21, 0
        %s239 = scalar_select %p238, %s21, 0
        %s240 = sadd.s32 %s239, %s237
        %s241 = smul.addr %s240, 8
        %s242 = scalar_lea.vmem %s0, %s241
        %p243 = pneg %p56
        %p244 = pneg %p53
        %s245 = sand.u32 %s71, 1
        %s246 = sand.u32 %s71, 1
        %s247 = smul.addr %s246, 64
        %s248 = scalar_lea.vmem [#allocation3], %s247
        %p249 = pneg %p84
        %p250 = pneg %p81
        %s251 = smul.u32 2, %s20
        %p252 = scmp.lt.s32.totalorder %s251, 15
        %s253 = scalar_select %p252, %s251, 15
        %s254 = scalar_lea.vmem %s2, %s253
        %p255 = pneg %p110
        %p256 = pneg %p107
        %p257 = pneg %p138
        %p258 = pneg %p135
        %s259 = sand.u32 %s125, 1
        %s260 = sand.u32 %s125, 1
        %s261 = smul.addr %s260, 32
        %s262 = scalar_lea.vmem [#allocation4], %s261
        %s263 = smul.u32 2, %s19
        %p264 = scmp.lt.s32.totalorder %s263, 1
        %s265 = scalar_select %p264, %s263, 1
        %p266 = scmp.lt.s32.totalorder %s21, 0
        %s267 = scalar_select %p266, %s21, 0
        %s268 = sadd.s32 %s267, %s265
        %s269 = smul.addr %s268, 8
        %s270 = scalar_lea.vmem %s0, %s269
        %s271 = smul.u32 2, %s19
        %s272 = smul.u32 4, %s21
        %s273 = smul.u32 2, %s20
        %s274 = smul.u32 2, %s20
        %p275 = scmp.lt.s32.totalorder %s274, 15
        %s276 = scalar_select %p275, %s274, 15
        %s277 = scalar_lea.vmem %s2, %s276
        %s278 = smul.u32 2, %s20
        %s279 = smul.u32 2, %s19
        %s280 = smul.u32 2, %s20
        %p281 = scmp.eq.s32.totalorder %s21, 0
        // Predicated region
        $region56: #{_lambda_.19} parent=50 // pred_check
          %p282 = pneg %p281
        $region57: #{_lambda_.19} parent=50 // pred_check_branch
          %284 = sbr.rel (%p282) target = $region59
        $region58: #{_lambda_.19} parent=50 // pred_region
          %285 = vst [vmem:[#allocation2] sm:$0xff] 0.0
          %286 = vst [vmem:[#allocation2 + $0x8] sm:$0xff] 0.0
          %287 = vst [vmem:[#allocation2 + $0x10] sm:$0xff] 0.0
          %288 = vst [vmem:[#allocation2 + $0x18] sm:$0xff] 0.0
        $region59: #{_lambda_.19} parent=50 // pred_fallthru
          _
        %v289 = vld [vmem:[#allocation2] sm:$0xff]
        %v290 = vld [vmem:[#allocation2 + $0x8] sm:$0xff]
        %v291 = vld [vmem:[#allocation2 + $0x10] sm:$0xff]
        %v292 = vld [vmem:[#allocation2 + $0x18] sm:$0xff]
        %v293 = vld [vmem:[%s270] sm:$0xff]
        %v294 = vld [vmem:[%s270 + $0x8] sm:$0xff]
        %v295 = vld [vmem:[%s231] sm:$0xff]
        %v296 = vld [vmem:[%s231 + $0x8] sm:$0xff]
        %v297 = vld [vmem:[%s231 + $0x10] sm:$0xff]
        %v298 = vld [vmem:[%s231 + $0x18] sm:$0xff]
        %v299 = vld [vmem:[%s231 + $0x20] sm:$0xff]
        %v300 = vld [vmem:[%s231 + $0x28] sm:$0xff]
        %v301 = vld [vmem:[%s231 + $0x30] sm:$0xff]
        %v302 = vld [vmem:[%s231 + $0x38] sm:$0xff]
        %vm303 = vcmask 261120
        %v305 = vsel %vm303, %v293, 0
        %v308 = vsel %vm303, %v294, 0
        %310 = vmatprep.subr.mxu0 0.0
        %311 = vmatpush1.msra.mxu0 0.0
        %312 = vmatprep.subr.mxu0 0.0
        %313 = vmatpush1.msra.mxu0 0.0
        %314 = vmatprep.subr.mxu0 0.0
        %315 = vmatpush1.msra.mxu0 0.0
        %316 = vmatprep.subr.mxu0 0.0
        %317 = vmatpush1.msra.mxu0 0.0
        %318 = vmatprep.subr.mxu0 0.0
        %319 = vmatpush1.msra.mxu0 0.0
        %320 = vmatprep.subr.mxu0 0.0
        %321 = vmatpush1.msra.mxu0 0.0
        %322 = vmatprep.subr.mxu0 0.0
        %323 = vmatpush1.msra.mxu0 0.0
        %324 = vmatprep.subr.mxu0 0.0
        %325 = vmatpush1.msra.mxu0 0.0
        %326 = vmatprep.subr.mxu0 0.0
        %327 = vmatpush1.msra.mxu0 0.0
        %328 = vmatprep.subr.mxu0 0.0
        %329 = vmatpush1.msra.mxu0 0.0
        %330 = vmatprep.subr.mxu0 0.0
        %331 = vmatpush1.msra.mxu0 0.0
        %332 = vmatprep.subr.mxu0 0.0
        %333 = vmatpush1.msra.mxu0 0.0
        %334 = vmatprep.subr.mxu0 %v302
        %335 = vmatpush1.msra.mxu0 %v301
        %336 = vmatprep.subr.mxu0 %v300
        %337 = vmatpush1.msra.mxu0 %v299
        %338 = vmatprep.subr.mxu0 %v298
        %339 = vmatpush1.msra.mxu0 %v297
        %340 = vmatprep.subr.mxu0 %v296
        %341 = vmatpush1.msra.mxu0 %v295
        %342 = vmatprep.subr.mxu0 0.0
        %343 = vmatpush2.msra.mxu0 0.0
        %344 = vmatprep.subr.mxu0 0.0
        %345 = vmatpush2.msra.mxu0 0.0
        %346 = vmatprep.subr.mxu0 0.0
        %347 = vmatpush2.msra.mxu0 0.0
        %348 = vmatprep.subr.mxu0 0.0
        %349 = vmatpush2.msra.mxu0 0.0
        %350 = vmatprep.subr.mxu0 0.0
        %351 = vmatpush2.msra.mxu0 0.0
        %352 = vmatprep.subr.mxu0 0.0
        %353 = vmatpush2.msra.mxu0 0.0
        %354 = vmatprep.subr.mxu0 0.0
        %355 = vmatpush2.msra.mxu0 0.0
        %356 = vmatprep.subr.mxu0 0.0
        %357 = vmatpush2.msra.mxu0 0.0
        %358 = vmatprep.subr.mxu0 0.0
        %359 = vmatpush2.msra.mxu0 0.0
        %360 = vmatprep.subr.mxu0 0.0
        %361 = vmatpush2.msra.mxu0 0.0
        %362 = vmatprep.subr.mxu0 0.0
        %363 = vmatpush2.msra.mxu0 0.0
        %364 = vmatprep.subr.mxu0 0.0
        %365 = vmatpush2.msra.mxu0 0.0
        %366 = vmatprep.subr.mxu0 0.0
        %367 = vmatpush2.msra.mxu0 0.0
        %368 = vmatprep.subr.mxu0 0.0
        %369 = vmatpush2.msra.mxu0 0.0
        %370 = vmatprep.subr.mxu0 0.0
        %371 = vmatpush2.msra.mxu0 0.0
        %372 = vmatprep.subr.mxu0 0.0
        %373 = vmatpush2.msra.mxu0 0.0
        %374 = vmatprep.mubr.f32.mxu0 0.0
        %375 = vmatmul.mubr.f32.gmra.mxu0 %v305
        %v376 = vpop.f32.mrf.mxu0
        %v377 = vadd.f32 0.0, %v376
        %v378 = vpop.f32.mrf.mxu0
        %v379 = vadd.f32 0.0, %v378
        %380 = vmatprep.mubr.f32.mxu0 0.0
        %381 = vmatmul.mubr.f32.gmra.mxu0 %v308
        %v382 = vpop.f32.mrf.mxu0
        %v383 = vadd.f32 0.0, %v382
        %v384 = vpop.f32.mrf.mxu0
        %v385 = vadd.f32 0.0, %v384
        %386 = vdwg.mxu0
        %v387 = vadd.f32 %v289, %v377
        %v388 = vadd.f32 %v290, %v379
        %v389 = vadd.f32 %v291, %v383
        %v390 = vadd.f32 %v292, %v385
        %391 = vst [vmem:[#allocation2] sm:$0xff] %v387
        %392 = vst [vmem:[#allocation2 + $0x8] sm:$0xff] %v388
        %393 = vst [vmem:[#allocation2 + $0x10] sm:$0xff] %v389
        %394 = vst [vmem:[#allocation2 + $0x18] sm:$0xff] %v390
        // Predicated region
        $region60: #{_lambda_.19} parent=50 // pred_check
          %p395 = pneg %p281
        $region61: #{_lambda_.19} parent=50 // pred_check_branch
          %397 = sbr.rel (%p395) target = $region63
        $region62: #{_lambda_.19} parent=50 // pred_region
          %v398 = vld [vmem:[#allocation2] sm:$0xff]
          %v399 = vld [vmem:[#allocation2 + $0x8] sm:$0xff]
          %v400 = vld [vmem:[#allocation2 + $0x10] sm:$0xff]
          %v401 = vld [vmem:[#allocation2 + $0x18] sm:$0xff]
          %v402 = vld [vmem:[%s277] sm:$0x3]
          %v404 = vlaneseq
          %v405 = vshrl.u32 %v404, 7
          %v406 = vsub.s32 0, %v405
          %v407 = vrot.slane %v402, %v406
          %v408 = vlaneseq
          %v409 = vshrl.u32 %v408, 7
          %v410 = vsub.s32 1, %v409
          %v411 = vrot.slane %v402, %v410
          %v414 = vadd.f32 %v398, %v407
          %v415 = vadd.f32 %v399, %v411
          %v416 = vadd.f32 %v400, %v407
          %v417 = vadd.f32 %v401, %v411
          %v418 = vmax.f32 %v414, 0.0
          %v419 = vmax.f32 %v415, 0.0
          %v420 = vmax.f32 %v416, 0.0
          %v421 = vmax.f32 %v417, 0.0
          %422 = vst [vmem:[%s262] sm:$0xff] %v418
          %423 = vst [vmem:[%s262 + $0x8] sm:$0xff] %v419
          %424 = vst [vmem:[%s262 + $0x10] sm:$0xff] %v420
          %425 = vst [vmem:[%s262 + $0x18] sm:$0xff] %v421
        $region63: #{_lambda_.19} parent=50 // pred_fallthru
          _
        %s426 = sand.u32 %s125, 1
        %s427 = sand.u32 %s125, 1
        %s428 = smul.addr %s427, 32
        %s429 = scalar_lea.vmem [#allocation4], %s428
        // Predicated region
        $region64: #{_lambda_.19} parent=50 // pred_check
          %p430 = pneg %p135
        $region65: #{_lambda_.19} parent=50 // pred_check_branch
          %432 = sbr.rel (%p430) target = $region67
        $region66: #{_lambda_.19} parent=50 // pred_region
          %s433 = smul.u32 2, %s19
          %s434 = smul.u32 2, %s20
          %s435 = smul.addr %s433, 16
          %s436 = sadd.s32 %s434, %s435
          %s437 = smul.addr %s436, 8
          %s438 = scalar_lea.vmem %s3, %s437
          // Predicated region
          $region68: #{_lambda_.19} parent=66 // pred_check
            _
          $region69: #{_lambda_.19} parent=66 // pred_check_branch
            %440 = sbr.rel (0) target = $region71
          $region70: #{_lambda_.19} parent=66 // pred_region
            // Predicated region
            $region72: #{_lambda_.19} parent=70 // pred_check
              _
            $region73: #{_lambda_.19} parent=70 // pred_check_branch
              %442 = sbr.rel (0) target = $region75
            $region74: #{_lambda_.19} parent=70 // pred_region
              loop: start=0, step=1, limit=1
              $region76: #{_lambda_.19} parent=74 // loop_pre_header
                _
              $region77: #{_lambda_.19} parent=74 // loop_header
                %s444 = sphi 0, %s448
                %p445 = scmp.ge.s32.totalorder %s444, 1
                %s449 = sphi %s429, %s429
                %s450 = sphi %s438, %s438
              $region78: #{_lambda_.19} parent=74 // loop_header_branch
                %447 = sbr.rel (%p445) target = $region82
              $region79: #{_lambda_.19} parent=74 // loop_body
                %v451 = vld [vmem:[%s449] sm:$0xff]
                %452 = vst [vmem:[%s450] sm:$0xff] %v451
                %v453 = vld [vmem:[%s449 + $0x8] sm:$0xff]
                %454 = vst [vmem:[%s450 + $0x8] sm:$0xff] %v453
                %v455 = vld [vmem:[%s449 + $0x10] sm:$0xff]
                %456 = vst [vmem:[%s450 + $0x80] sm:$0xff] %v455
                %v457 = vld [vmem:[%s449 + $0x18] sm:$0xff]
                %458 = vst [vmem:[%s450 + $0x88] sm:$0xff] %v457
              $region80: #{_lambda_.19} parent=74 // loop_footer
                %s448 = sadd.s32 1, %s444
              $region81: #{_lambda_.19} parent=74 // loop_footer_branch
                %443 = sbr.rel target = $region77
              $region82: #{_lambda_.19} parent=74 // loop_exit
                _
            $region75: #{_lambda_.19} parent=70 // pred_fallthru
              _
            // Predicated region
            $region83: #{_lambda_.19} parent=70 // pred_check
              _
            $region84: #{_lambda_.19} parent=70 // pred_check_branch
              %460 = sbr.rel target = $region86
            $region85: #{_lambda_.19} parent=70 // pred_region
              _
            $region86: #{_lambda_.19} parent=70 // pred_fallthru
              _
          $region71: #{_lambda_.19} parent=66 // pred_fallthru
            _
          %461 = vnop
        $region67: #{_lambda_.19} parent=50 // pred_fallthru
          _
      $region51: #{_lambda_.19} parent=5 // pred_fallthru
        _
      %p462 = scmp.le.s32.totalorder 2, %s9
      // Predicated region
      $region87: #{_lambda_.19} parent=5 // pred_check
        %p463 = pneg %p462
      $region88: #{_lambda_.19} parent=5 // pred_check_branch
        %465 = sbr.rel (%p463) target = $region90
      $region89: #{_lambda_.19} parent=5 // pred_region
        %s466 = ssub.s32 %s9, 2
        // Predicated region
        $region91: #{_lambda_.19} parent=89 // pred_check
          %p467 = pneg %p141
        $region92: #{_lambda_.19} parent=89 // pred_check_branch
          %469 = sbr.rel (%p467) target = $region94
        $region93: #{_lambda_.19} parent=89 // pred_region
          %s470 = sand.u32 %s126, 1
          %s471 = sand.u32 %s126, 1
          %s472 = smul.addr %s471, 32
          %s473 = scalar_lea.vmem [#allocation4], %s472
        $region94: #{_lambda_.19} parent=89 // pred_fallthru
          _
      $region90: #{_lambda_.19} parent=5 // pred_fallthru
        _
    $region6: #{_lambda_.19} parent=1 // loop_footer
      %s13 = sadd.s32 1, %s9
    $region7: #{_lambda_.19} parent=1 // loop_footer_branch
      %8 = sbr.rel target = $region3
    $region8: #{_lambda_.19} parent=1 // loop_exit
      _

// kernel: _lambda_.18
$region0: #{_lambda_.18}
  #allocation0 [shape = 'u32[]', space=smem, size = 0x4, offset = 0x4, fixed_abs, tag = 'smem constant byte address 0x4 - core index']
  #allocation1 [shape = 'u32[144,128]{1,0:T(1,128)}', space=vmem, size = 0x12000, scoped, tag = 'internal scratch']
  #allocation2 [shape = 'f32[16,32]{1,0:T(8,128)}', space=vmem, size = 0x2000, scoped, tag = 'scratch operand']
  %s0 = inlined_call_operand.vmem [shape: f32[16,32], index: 0, kind: input, shape index: {}]
  %s1 = inlined_call_operand.vmem [shape: f32[32,32], index: 1, kind: input, shape index: {}]
  %s2 = inlined_call_operand.vmem [shape: f32[1,32], index: 2, kind: input, shape index: {}]
  %s3 = inlined_call_operand.vmem [shape: f32[16,32], index: 3, kind: input, shape index: {}]
  %s4 = inlined_call_operand.vmem [shape: f32[1,32], index: 4, kind: input, shape index: {}]
  %s5 = inlined_call_operand.vmem [shape: f32[1,32], index: 5, kind: input, shape index: {}]
  %s6 = inlined_call_operand.vmem [shape: f32[16,32], index: 6, kind: output, shape index: {}]
  %s7 = sld [smem:[#allocation0]]
  $region42: #{_lambda_.18} parent=0
    _
  %s9 = ssub.s32 1, %s7
  %s10 = scalar_select 0, %s9, %s7
  // Predicated region
  $region2: #{_lambda_.18} parent=0 // pred_check
    _
  $region3: #{_lambda_.18} parent=0 // pred_check_branch
    %12 = sbr.rel (0) target = $region5
  $region4: #{_lambda_.18} parent=0 // pred_region
    _
  $region5: #{_lambda_.18} parent=0 // pred_fallthru
    _
  // Predicated region
  $region6: #{_lambda_.18} parent=0 // pred_check
    _
  $region7: #{_lambda_.18} parent=0 // pred_check_branch
    %14 = sbr.rel (0) target = $region9
  $region8: #{_lambda_.18} parent=0 // pred_region
    _
  $region9: #{_lambda_.18} parent=0 // pred_fallthru
    _
  // Predicated region
  $region10: #{_lambda_.18} parent=0 // pred_check
    _
  $region11: #{_lambda_.18} parent=0 // pred_check_branch
    %16 = sbr.rel (0) target = $region13
  $region12: #{_lambda_.18} parent=0 // pred_region
    _
  $region13: #{_lambda_.18} parent=0 // pred_fallthru
    _
  // Predicated region
  $region14: #{_lambda_.18} parent=0 // pred_check
    _
  $region15: #{_lambda_.18} parent=0 // pred_check_branch
    %18 = sbr.rel (0) target = $region17
  $region16: #{_lambda_.18} parent=0 // pred_region
    _
  $region17: #{_lambda_.18} parent=0 // pred_fallthru
    _
  // Predicated region
  $region18: #{_lambda_.18} parent=0 // pred_check
    _
  $region19: #{_lambda_.18} parent=0 // pred_check_branch
    %20 = sbr.rel (0) target = $region21
  $region20: #{_lambda_.18} parent=0 // pred_region
    _
  $region21: #{_lambda_.18} parent=0 // pred_fallthru
    _
  // Predicated region
  $region22: #{_lambda_.18} parent=0 // pred_check
    _
  $region23: #{_lambda_.18} parent=0 // pred_check_branch
    %22 = sbr.rel (0) target = $region25
  $region24: #{_lambda_.18} parent=0 // pred_region
    _
  $region25: #{_lambda_.18} parent=0 // pred_fallthru
    _
  %p23 = scmp.eq.s32.totalorder 0, 0
  // Predicated region
  $region26: #{_lambda_.18} parent=0 // pred_check
    %p24 = pneg %p23
  $region27: #{_lambda_.18} parent=0 // pred_check_branch
    %26 = sbr.rel (%p24) target = $region29
  $region28: #{_lambda_.18} parent=0 // pred_region
    %vm27 = vcmask 261120
    %28 = vst.msk [vmem:[#allocation2] sm:$0xff] %vm27, 0.0
    %29 = vst.msk [vmem:[#allocation2 + $0x8] sm:$0xff] %vm27, 0.0
  $region29: #{_lambda_.18} parent=0 // pred_fallthru
    _
  %v30 = vld [vmem:[#allocation2] sm:$0xff]
  %v31 = vld [vmem:[#allocation2 + $0x8] sm:$0xff]
  %v32 = vld [vmem:[%s0] sm:$0xff]
  %v33 = vld [vmem:[%s0 + $0x8] sm:$0xff]
  %v34 = vld [vmem:[%s1] sm:$0xff]
  %v35 = vld [vmem:[%s1 + $0x8] sm:$0xff]
  %v36 = vld [vmem:[%s1 + $0x10] sm:$0xff]
  %v37 = vld [vmem:[%s1 + $0x18] sm:$0xff]
  %vm38 = vcmask 261120
  %v40 = vsel %vm38, %v32, 0
  %v43 = vsel %vm38, %v33, 0
  %45 = vmatprep.subr.mxu0 0.0
  %46 = vmatpush1.msra.mxu0 0.0
  %47 = vmatprep.subr.mxu0 0.0
  %48 = vmatpush1.msra.mxu0 0.0
  %49 = vmatprep.subr.mxu0 0.0
  %50 = vmatpush1.msra.mxu0 0.0
  %51 = vmatprep.subr.mxu0 0.0
  %52 = vmatpush1.msra.mxu0 0.0
  %53 = vmatprep.subr.mxu0 0.0
  %54 = vmatpush1.msra.mxu0 0.0
  %55 = vmatprep.subr.mxu0 0.0
  %56 = vmatpush1.msra.mxu0 0.0
  %57 = vmatprep.subr.mxu0 0.0
  %58 = vmatpush1.msra.mxu0 0.0
  %59 = vmatprep.subr.mxu0 0.0
  %60 = vmatpush1.msra.mxu0 0.0
  %61 = vmatprep.subr.mxu0 0.0
  %62 = vmatpush1.msra.mxu0 0.0
  %63 = vmatprep.subr.mxu0 0.0
  %64 = vmatpush1.msra.mxu0 0.0
  %65 = vmatprep.subr.mxu0 0.0
  %66 = vmatpush1.msra.mxu0 0.0
  %67 = vmatprep.subr.mxu0 0.0
  %68 = vmatpush1.msra.mxu0 0.0
  %69 = vmatprep.subr.mxu0 0.0
  %70 = vmatpush1.msra.mxu0 %v37
  %71 = vmatprep.subr.mxu0 0.0
  %72 = vmatpush1.msra.mxu0 %v36
  %73 = vmatprep.subr.mxu0 0.0
  %74 = vmatpush1.msra.mxu0 %v35
  %75 = vmatprep.subr.mxu0 0.0
  %76 = vmatpush1.msra.mxu0 %v34
  %77 = vmatprep.subr.mxu0 0.0
  %78 = vmatpush2.msra.mxu0 0.0
  %79 = vmatprep.subr.mxu0 0.0
  %80 = vmatpush2.msra.mxu0 0.0
  %81 = vmatprep.subr.mxu0 0.0
  %82 = vmatpush2.msra.mxu0 0.0
  %83 = vmatprep.subr.mxu0 0.0
  %84 = vmatpush2.msra.mxu0 0.0
  %85 = vmatprep.subr.mxu0 0.0
  %86 = vmatpush2.msra.mxu0 0.0
  %87 = vmatprep.subr.mxu0 0.0
  %88 = vmatpush2.msra.mxu0 0.0
  %89 = vmatprep.subr.mxu0 0.0
  %90 = vmatpush2.msra.mxu0 0.0
  %91 = vmatprep.subr.mxu0 0.0
  %92 = vmatpush2.msra.mxu0 0.0
  %93 = vmatprep.subr.mxu0 0.0
  %94 = vmatpush2.msra.mxu0 0.0
  %95 = vmatprep.subr.mxu0 0.0
  %96 = vmatpush2.msra.mxu0 0.0
  %97 = vmatprep.subr.mxu0 0.0
  %98 = vmatpush2.msra.mxu0 0.0
  %99 = vmatprep.subr.mxu0 0.0
  %100 = vmatpush2.msra.mxu0 0.0
  %101 = vmatprep.subr.mxu0 0.0
  %102 = vmatpush2.msra.mxu0 0.0
  %103 = vmatprep.subr.mxu0 0.0
  %104 = vmatpush2.msra.mxu0 0.0
  %105 = vmatprep.subr.mxu0 0.0
  %106 = vmatpush2.msra.mxu0 0.0
  %107 = vmatprep.subr.mxu0 0.0
  %108 = vmatpush2.msra.mxu0 0.0
  %109 = vmatprep.mubr.f32.mxu0 0.0
  %110 = vmatmul.mubr.f32.gmra.mxu0 %v40
  %v111 = vpop.f32.mrf.mxu0
  %v112 = vadd.f32 0.0, %v111
  %v113 = vpop.f32.mrf.mxu0
  %114 = vmatprep.mubr.f32.mxu0 0.0
  %115 = vmatmul.mubr.f32.gmra.mxu0 %v43
  %v116 = vpop.f32.mrf.mxu0
  %v117 = vadd.f32 0.0, %v116
  %v118 = vpop.f32.mrf.mxu0
  %119 = vdwg.mxu0
  %v120 = vadd.f32 %v30, %v112
  %v121 = vadd.f32 %v31, %v117
  %122 = vst.msk [vmem:[#allocation2] sm:$0xff] %vm38, %v120
  %123 = vst.msk [vmem:[#allocation2 + $0x8] sm:$0xff] %vm38, %v121
  // Predicated region
  $region30: #{_lambda_.18} parent=0 // pred_check
    %p124 = pneg %p23
  $region31: #{_lambda_.18} parent=0 // pred_check_branch
    %126 = sbr.rel (%p124) target = $region33
  $region32: #{_lambda_.18} parent=0 // pred_region
    %v127 = vld [vmem:[#allocation2] sm:$0xff]
    %v128 = vld [vmem:[#allocation2 + $0x8] sm:$0xff]
    %v129 = vld [vmem:[%s2] sm:$0x1]
    %v131 = vlaneseq
    %v132 = vshrl.u32 %v131, 7
    %v133 = vsub.s32 0, %v132
    %v134 = vrot.slane %v129, %v133
    %v136 = vadd.f32 %v127, %v134
    %v137 = vadd.f32 %v128, %v134
    %v138 = vld [vmem:[%s3] sm:$0xff]
    %v139 = vld [vmem:[%s3 + $0x8] sm:$0xff]
    %v140 = vadd.f32 %v136, %v138
    %v141 = vadd.f32 %v137, %v139
    %v142 = vsel %vm38, %v140, 0.0
    %143 = vadd.xlane.f32.xlu0 %v142
    %v144 = vpop.xlane.xlu0 %143
    %v145 = vsel %vm38, %v141, 0.0
    %146 = vadd.xlane.f32.xlu0 %v145
    %v147 = vpop.xlane.xlu0 %146
    %v148 = vrcp.pop 32.0
    %v149 = vmul.f32 %v144, %v148
    %v150 = vmul.f32 %v147, %v148
    %v151 = vsub.f32 %v140, %v149
    %v152 = vsub.f32 %v141, %v150
    %v153 = vmul.f32 %v151, %v151
    %v154 = vmul.f32 %v152, %v152
    %v155 = vsel %vm38, %v153, 0.0
    %156 = vadd.xlane.f32.xlu0 %v155
    %v157 = vpop.xlane.xlu0 %156
    %v158 = vsel %vm38, %v154, 0.0
    %159 = vadd.xlane.f32.xlu0 %v158
    %v160 = vpop.xlane.xlu0 %159
    %v161 = vmul.f32 %v157, %v148
    %v162 = vmul.f32 %v160, %v148
    %v163 = vadd.f32 %v161, 1e-05
    %v164 = vadd.f32 %v162, 1e-05
    %v165 = vrsqrt.pop %v163
    %v166 = vrsqrt.pop %v164
    %v167 = vmul.f32 %v151, %v165
    %v168 = vmul.f32 %v152, %v166
    %v169 = vld [vmem:[%s4] sm:$0x1]
    %v171 = vlaneseq
    %v172 = vshrl.u32 %v171, 7
    %v173 = vsub.s32 0, %v172
    %v174 = vrot.slane %v169, %v173
    %v176 = vmul.f32 %v167, %v174
    %v177 = vmul.f32 %v168, %v174
    %v178 = vld [vmem:[%s5] sm:$0x1]
    %v180 = vlaneseq
    %v181 = vshrl.u32 %v180, 7
    %v182 = vsub.s32 0, %v181
    %v183 = vrot.slane %v178, %v182
    %v185 = vadd.f32 %v176, %v183
    %v186 = vadd.f32 %v177, %v183
    %187 = vst.msk [vmem:[%s6] sm:$0xff] %vm38, %v185
    %188 = vst.msk [vmem:[%s6 + $0x8] sm:$0xff] %vm38, %v186
  $region33: #{_lambda_.18} parent=0 // pred_fallthru
    _
  // Predicated region
  $region34: #{_lambda_.18} parent=0 // pred_check
    _
  $region35: #{_lambda_.18} parent=0 // pred_check_branch
    %190 = sbr.rel (0) target = $region37
  $region36: #{_lambda_.18} parent=0 // pred_region
    _
  $region37: #{_lambda_.18} parent=0 // pred_fallthru
    _
  // Predicated region
  $region38: #{_lambda_.18} parent=0 // pred_check
    _
  $region39: #{_lambda_.18} parent=0 // pred_check_branch
    %192 = sbr.rel (0) target = $region41
  $region40: #{_lambda_.18} parent=0 // pred_region
    _
  $region41: #{_lambda_.18} parent=0 // pred_fallthru
    _

// kernel: _lambda_.17
$region0: #{_lambda_.17}
  #allocation0 [shape = 'u32[]', space=smem, size = 0x4, offset = 0x4, fixed_abs, tag = 'smem constant byte address 0x4 - core index']
  #allocation1 [shape = 'u32[144,128]{1,0:T(1,128)}', space=vmem, size = 0x12000, scoped, tag = 'internal scratch']
  #allocation2 [shape = 'f32[8,8,1]{2,1,0:T(8,128)}', space=vmem, size = 0x8000, scoped, tag = 'scratch operand']
  #allocation3 [shape = 'f32[8,8,1]{2,1,0:T(8,128)}', space=vmem, size = 0x8000, scoped, tag = 'scratch operand']
  #allocation4 [shape = 'f32[8,8,8]{2,1,0:T(8,128)}', space=vmem, size = 0x8000, scoped, tag = 'scratch operand']
  %s0 = inlined_call_operand.vmem [shape: f32[8,8,8], index: 0, kind: input, shape index: {}]
  %s1 = inlined_call_operand.vmem [shape: f32[8,8,8], index: 1, kind: input, shape index: {}]
  %s2 = inlined_call_operand.vmem [shape: f32[8,8,8], index: 2, kind: input, shape index: {}]
  %s3 = inlined_call_operand.vmem [shape: f32[8,8,8], index: 3, kind: output, shape index: {}]
  %s4 = sld [smem:[#allocation0]]
  $region30: #{_lambda_.17} parent=0
    _
  %s6 = ssub.s32 1, %s4
  %s7 = scalar_select 0, %s6, %s4
  // Predicated region
  $region2: #{_lambda_.17} parent=0 // pred_check
    _
  $region3: #{_lambda_.17} parent=0 // pred_check_branch
    %9 = sbr.rel (0) target = $region5
  $region4: #{_lambda_.17} parent=0 // pred_region
    _
  $region5: #{_lambda_.17} parent=0 // pred_fallthru
    _
  // Predicated region
  $region6: #{_lambda_.17} parent=0 // pred_check
    _
  $region7: #{_lambda_.17} parent=0 // pred_check_branch
    %11 = sbr.rel (0) target = $region9
  $region8: #{_lambda_.17} parent=0 // pred_region
    _
  $region9: #{_lambda_.17} parent=0 // pred_fallthru
    _
  // Predicated region
  $region10: #{_lambda_.17} parent=0 // pred_check
    _
  $region11: #{_lambda_.17} parent=0 // pred_check_branch
    %13 = sbr.rel (0) target = $region13
  $region12: #{_lambda_.17} parent=0 // pred_region
    _
  $region13: #{_lambda_.17} parent=0 // pred_fallthru
    _
  %p14 = scmp.eq.s32.totalorder 0, 0
  // Predicated region
  $region14: #{_lambda_.17} parent=0 // pred_check
    %p15 = pneg %p14
  $region15: #{_lambda_.17} parent=0 // pred_check_branch
    %17 = sbr.rel (%p15) target = $region17
  $region16: #{_lambda_.17} parent=0 // pred_region
    %vm18 = vcmask 7168
    %19 = vst.msk [vmem:[#allocation2] sm:$0xff] %vm18, -inf
    %20 = vst.msk [vmem:[#allocation2 + $0x8] sm:$0xff] %vm18, -inf
    %21 = vst.msk [vmem:[#allocation2 + $0x10] sm:$0xff] %vm18, -inf
    %22 = vst.msk [vmem:[#allocation2 + $0x18] sm:$0xff] %vm18, -inf
    %23 = vst.msk [vmem:[#allocation2 + $0x20] sm:$0xff] %vm18, -inf
    %24 = vst.msk [vmem:[#allocation2 + $0x28] sm:$0xff] %vm18, -inf
    %25 = vst.msk [vmem:[#allocation2 + $0x30] sm:$0xff] %vm18, -inf
    %26 = vst.msk [vmem:[#allocation2 + $0x38] sm:$0xff] %vm18, -inf
    %27 = vst.msk [vmem:[#allocation3] sm:$0xff] %vm18, 0.0
    %28 = vst.msk [vmem:[#allocation3 + $0x8] sm:$0xff] %vm18, 0.0
    %29 = vst.msk [vmem:[#allocation3 + $0x10] sm:$0xff] %vm18, 0.0
    %30 = vst.msk [vmem:[#allocation3 + $0x18] sm:$0xff] %vm18, 0.0
    %31 = vst.msk [vmem:[#allocation3 + $0x20] sm:$0xff] %vm18, 0.0
    %32 = vst.msk [vmem:[#allocation3 + $0x28] sm:$0xff] %vm18, 0.0
    %33 = vst.msk [vmem:[#allocation3 + $0x30] sm:$0xff] %vm18, 0.0
    %34 = vst.msk [vmem:[#allocation3 + $0x38] sm:$0xff] %vm18, 0.0
    %vm35 = vcmask 64512
    %36 = vst.msk [vmem:[#allocation4] sm:$0xff] %vm35, 0.0
    %37 = vst.msk [vmem:[#allocation4 + $0x8] sm:$0xff] %vm35, 0.0
    %38 = vst.msk [vmem:[#allocation4 + $0x10] sm:$0xff] %vm35, 0.0
    %39 = vst.msk [vmem:[#allocation4 + $0x18] sm:$0xff] %vm35, 0.0
    %40 = vst.msk [vmem:[#allocation4 + $0x20] sm:$0xff] %vm35, 0.0
    %41 = vst.msk [vmem:[#allocation4 + $0x28] sm:$0xff] %vm35, 0.0
    %42 = vst.msk [vmem:[#allocation4 + $0x30] sm:$0xff] %vm35, 0.0
    %43 = vst.msk [vmem:[#allocation4 + $0x38] sm:$0xff] %vm35, 0.0
  $region17: #{_lambda_.17} parent=0 // pred_fallthru
    _
  %v44 = vld [vmem:[%s0] sm:$0xff]
  %v45 = vld [vmem:[%s0 + $0x8] sm:$0xff]
  %v46 = vld [vmem:[%s0 + $0x10] sm:$0xff]
  %v47 = vld [vmem:[%s0 + $0x18] sm:$0xff]
  %v48 = vld [vmem:[%s0 + $0x20] sm:$0xff]
  %v49 = vld [vmem:[%s0 + $0x28] sm:$0xff]
  %v50 = vld [vmem:[%s0 + $0x30] sm:$0xff]
  %v51 = vld [vmem:[%s0 + $0x38] sm:$0xff]
  %v52 = vmul.f32 %v44, 0.35355338
  %v53 = vmul.f32 %v45, 0.35355338
  %v54 = vmul.f32 %v46, 0.35355338
  %v55 = vmul.f32 %v47, 0.35355338
  %v56 = vmul.f32 %v48, 0.35355338
  %v57 = vmul.f32 %v49, 0.35355338
  %v58 = vmul.f32 %v50, 0.35355338
  %v59 = vmul.f32 %v51, 0.35355338
  %v60 = vld [vmem:[%s1] sm:$0xff]
  %v61 = vld [vmem:[%s1 + $0x8] sm:$0xff]
  %v62 = vld [vmem:[%s1 + $0x10] sm:$0xff]
  %v63 = vld [vmem:[%s1 + $0x18] sm:$0xff]
  %v64 = vld [vmem:[%s1 + $0x20] sm:$0xff]
  %v65 = vld [vmem:[%s1 + $0x28] sm:$0xff]
  %v66 = vld [vmem:[%s1 + $0x30] sm:$0xff]
  %v67 = vld [vmem:[%s1 + $0x38] sm:$0xff]
  %vm68 = vcmask 64512
  %v70 = vsel %vm68, %v52, 0
  %v73 = vsel %vm68, %v60, 0
  %75 = vmatprep.subr.mxu0 0.0
  %76 = vmatpush1.xpose.msra.mxu0 0.0
  %77 = vmatprep.subr.mxu0 0.0
  %78 = vmatpush1.xpose.msra.mxu0 0.0
  %79 = vmatprep.subr.mxu0 0.0
  %80 = vmatpush1.xpose.msra.mxu0 0.0
  %81 = vmatprep.subr.mxu0 0.0
  %82 = vmatpush1.xpose.msra.mxu0 0.0
  %83 = vmatprep.subr.mxu0 0.0
  %84 = vmatpush1.xpose.msra.mxu0 0.0
  %85 = vmatprep.subr.mxu0 0.0
  %86 = vmatpush1.xpose.msra.mxu0 0.0
  %87 = vmatprep.subr.mxu0 0.0
  %88 = vmatpush1.xpose.msra.mxu0 0.0
  %89 = vmatprep.subr.mxu0 0.0
  %90 = vmatpush1.xpose.msra.mxu0 0.0
  %91 = vmatprep.subr.mxu0 0.0
  %92 = vmatpush1.xpose.msra.mxu0 0.0
  %93 = vmatprep.subr.mxu0 0.0
  %94 = vmatpush1.xpose.msra.mxu0 0.0
  %95 = vmatprep.subr.mxu0 0.0
  %96 = vmatpush1.xpose.msra.mxu0 0.0
  %97 = vmatprep.subr.mxu0 0.0
  %98 = vmatpush1.xpose.msra.mxu0 0.0
  %99 = vmatprep.subr.mxu0 0.0
  %100 = vmatpush1.xpose.msra.mxu0 0.0
  %101 = vmatprep.subr.mxu0 0.0
  %102 = vmatpush1.xpose.msra.mxu0 0.0
  %103 = vmatprep.subr.mxu0 0.0
  %104 = vmatpush1.xpose.msra.mxu0 0.0
  %105 = vmatprep.subr.mxu0 0.0
  %106 = vmatpush1.xpose.msra.mxu0 %v73
  %107 = vmatprep.subr.mxu0 0.0
  %108 = vmatpush2.xpose.msra.mxu0 0.0
  %109 = vmatprep.subr.mxu0 0.0
  %110 = vmatpush2.xpose.msra.mxu0 0.0
  %111 = vmatprep.subr.mxu0 0.0
  %112 = vmatpush2.xpose.msra.mxu0 0.0
  %113 = vmatprep.subr.mxu0 0.0
  %114 = vmatpush2.xpose.msra.mxu0 0.0
  %115 = vmatprep.subr.mxu0 0.0
  %116 = vmatpush2.xpose.msra.mxu0 0.0
  %117 = vmatprep.subr.mxu0 0.0
  %118 = vmatpush2.xpose.msra.mxu0 0.0
  %119 = vmatprep.subr.mxu0 0.0
  %120 = vmatpush2.xpose.msra.mxu0 0.0
  %121 = vmatprep.subr.mxu0 0.0
  %122 = vmatpush2.xpose.msra.mxu0 0.0
  %123 = vmatprep.subr.mxu0 0.0
  %124 = vmatpush2.xpose.msra.mxu0 0.0
  %125 = vmatprep.subr.mxu0 0.0
  %126 = vmatpush2.xpose.msra.mxu0 0.0
  %127 = vmatprep.subr.mxu0 0.0
  %128 = vmatpush2.xpose.msra.mxu0 0.0
  %129 = vmatprep.subr.mxu0 0.0
  %130 = vmatpush2.xpose.msra.mxu0 0.0
  %131 = vmatprep.subr.mxu0 0.0
  %132 = vmatpush2.xpose.msra.mxu0 0.0
  %133 = vmatprep.subr.mxu0 0.0
  %134 = vmatpush2.xpose.msra.mxu0 0.0
  %135 = vmatprep.subr.mxu0 0.0
  %136 = vmatpush2.xpose.msra.mxu0 0.0
  %137 = vmatprep.subr.mxu0 0.0
  %138 = vmatpush2.xpose.msra.mxu0 0.0
  %139 = vmatprep.mubr.f32.mxu0 0.0
  %140 = vmatmul.mubr.f32.gmra.mxu0 %v70
  %v141 = vpop.f32.mrf.mxu0
  %v142 = vadd.f32 0.0, %v141
  %v143 = vpop.f32.mrf.mxu0
  %144 = vdwg.mxu0
  %v146 = vsel %vm68, %v53, 0
  %v149 = vsel %vm68, %v61, 0
  %151 = vmatprep.subr.mxu0 0.0
  %152 = vmatpush1.xpose.msra.mxu0 0.0
  %153 = vmatprep.subr.mxu0 0.0
  %154 = vmatpush1.xpose.msra.mxu0 0.0
  %155 = vmatprep.subr.mxu0 0.0
  %156 = vmatpush1.xpose.msra.mxu0 0.0
  %157 = vmatprep.subr.mxu0 0.0
  %158 = vmatpush1.xpose.msra.mxu0 0.0
  %159 = vmatprep.subr.mxu0 0.0
  %160 = vmatpush1.xpose.msra.mxu0 0.0
  %161 = vmatprep.subr.mxu0 0.0
  %162 = vmatpush1.xpose.msra.mxu0 0.0
  %163 = vmatprep.subr.mxu0 0.0
  %164 = vmatpush1.xpose.msra.mxu0 0.0
  %165 = vmatprep.subr.mxu0 0.0
  %166 = vmatpush1.xpose.msra.mxu0 0.0
  %167 = vmatprep.subr.mxu0 0.0
  %168 = vmatpush1.xpose.msra.mxu0 0.0
  %169 = vmatprep.subr.mxu0 0.0
  %170 = vmatpush1.xpose.msra.mxu0 0.0
  %171 = vmatprep.subr.mxu0 0.0
  %172 = vmatpush1.xpose.msra.mxu0 0.0
  %173 = vmatprep.subr.mxu0 0.0
  %174 = vmatpush1.xpose.msra.mxu0 0.0
  %175 = vmatprep.subr.mxu0 0.0
  %176 = vmatpush1.xpose.msra.mxu0 0.0
  %177 = vmatprep.subr.mxu0 0.0
  %178 = vmatpush1.xpose.msra.mxu0 0.0
  %179 = vmatprep.subr.mxu0 0.0
  %180 = vmatpush1.xpose.msra.mxu0 0.0
  %181 = vmatprep.subr.mxu0 0.0
  %182 = vmatpush1.xpose.msra.mxu0 %v149
  %183 = vmatprep.subr.mxu0 0.0
  %184 = vmatpush2.xpose.msra.mxu0 0.0
  %185 = vmatprep.subr.mxu0 0.0
  %186 = vmatpush2.xpose.msra.mxu0 0.0
  %187 = vmatprep.subr.mxu0 0.0
  %188 = vmatpush2.xpose.msra.mxu0 0.0
  %189 = vmatprep.subr.mxu0 0.0
  %190 = vmatpush2.xpose.msra.mxu0 0.0
  %191 = vmatprep.subr.mxu0 0.0
  %192 = vmatpush2.xpose.msra.mxu0 0.0
  %193 = vmatprep.subr.mxu0 0.0
  %194 = vmatpush2.xpose.msra.mxu0 0.0
  %195 = vmatprep.subr.mxu0 0.0
  %196 = vmatpush2.xpose.msra.mxu0 0.0
  %197 = vmatprep.subr.mxu0 0.0
  %198 = vmatpush2.xpose.msra.mxu0 0.0
  %199 = vmatprep.subr.mxu0 0.0
  %200 = vmatpush2.xpose.msra.mxu0 0.0
  %201 = vmatprep.subr.mxu0 0.0
  %202 = vmatpush2.xpose.msra.mxu0 0.0
  %203 = vmatprep.subr.mxu0 0.0
  %204 = vmatpush2.xpose.msra.mxu0 0.0
  %205 = vmatprep.subr.mxu0 0.0
  %206 = vmatpush2.xpose.msra.mxu0 0.0
  %207 = vmatprep.subr.mxu0 0.0
  %208 = vmatpush2.xpose.msra.mxu0 0.0
  %209 = vmatprep.subr.mxu0 0.0
  %210 = vmatpush2.xpose.msra.mxu0 0.0
  %211 = vmatprep.subr.mxu0 0.0
  %212 = vmatpush2.xpose.msra.mxu0 0.0
  %213 = vmatprep.subr.mxu0 0.0
  %214 = vmatpush2.xpose.msra.mxu0 0.0
  %215 = vmatprep.mubr.f32.mxu0 0.0
  %216 = vmatmul.mubr.f32.gmra.mxu0 %v146
  %v217 = vpop.f32.mrf.mxu0
  %v218 = vadd.f32 0.0, %v217
  %v219 = vpop.f32.mrf.mxu0
  %220 = vdwg.mxu0
  %v222 = vsel %vm68, %v54, 0
  %v225 = vsel %vm68, %v62, 0
  %227 = vmatprep.subr.mxu0 0.0
  %228 = vmatpush1.xpose.msra.mxu0 0.0
  %229 = vmatprep.subr.mxu0 0.0
  %230 = vmatpush1.xpose.msra.mxu0 0.0
  %231 = vmatprep.subr.mxu0 0.0
  %232 = vmatpush1.xpose.msra.mxu0 0.0
  %233 = vmatprep.subr.mxu0 0.0
  %234 = vmatpush1.xpose.msra.mxu0 0.0
  %235 = vmatprep.subr.mxu0 0.0
  %236 = vmatpush1.xpose.msra.mxu0 0.0
  %237 = vmatprep.subr.mxu0 0.0
  %238 = vmatpush1.xpose.msra.mxu0 0.0
  %239 = vmatprep.subr.mxu0 0.0
  %240 = vmatpush1.xpose.msra.mxu0 0.0
  %241 = vmatprep.subr.mxu0 0.0
  %242 = vmatpush1.xpose.msra.mxu0 0.0
  %243 = vmatprep.subr.mxu0 0.0
  %244 = vmatpush1.xpose.msra.mxu0 0.0
  %245 = vmatprep.subr.mxu0 0.0
  %246 = vmatpush1.xpose.msra.mxu0 0.0
  %247 = vmatprep.subr.mxu0 0.0
  %248 = vmatpush1.xpose.msra.mxu0 0.0
  %249 = vmatprep.subr.mxu0 0.0
  %250 = vmatpush1.xpose.msra.mxu0 0.0
  %251 = vmatprep.subr.mxu0 0.0
  %252 = vmatpush1.xpose.msra.mxu0 0.0
  %253 = vmatprep.subr.mxu0 0.0
  %254 = vmatpush1.xpose.msra.mxu0 0.0
  %255 = vmatprep.subr.mxu0 0.0
  %256 = vmatpush1.xpose.msra.mxu0 0.0
  %257 = vmatprep.subr.mxu0 0.0
  %258 = vmatpush1.xpose.msra.mxu0 %v225
  %259 = vmatprep.subr.mxu0 0.0
  %260 = vmatpush2.xpose.msra.mxu0 0.0
  %261 = vmatprep.subr.mxu0 0.0
  %262 = vmatpush2.xpose.msra.mxu0 0.0
  %263 = vmatprep.subr.mxu0 0.0
  %264 = vmatpush2.xpose.msra.mxu0 0.0
  %265 = vmatprep.subr.mxu0 0.0
  %266 = vmatpush2.xpose.msra.mxu0 0.0
  %267 = vmatprep.subr.mxu0 0.0
  %268 = vmatpush2.xpose.msra.mxu0 0.0
  %269 = vmatprep.subr.mxu0 0.0
  %270 = vmatpush2.xpose.msra.mxu0 0.0
  %271 = vmatprep.subr.mxu0 0.0
  %272 = vmatpush2.xpose.msra.mxu0 0.0
  %273 = vmatprep.subr.mxu0 0.0
  %274 = vmatpush2.xpose.msra.mxu0 0.0
  %275 = vmatprep.subr.mxu0 0.0
  %276 = vmatpush2.xpose.msra.mxu0 0.0
  %277 = vmatprep.subr.mxu0 0.0
  %278 = vmatpush2.xpose.msra.mxu0 0.0
  %279 = vmatprep.subr.mxu0 0.0
  %280 = vmatpush2.xpose.msra.mxu0 0.0
  %281 = vmatprep.subr.mxu0 0.0
  %282 = vmatpush2.xpose.msra.mxu0 0.0
  %283 = vmatprep.subr.mxu0 0.0
  %284 = vmatpush2.xpose.msra.mxu0 0.0
  %285 = vmatprep.subr.mxu0 0.0
  %286 = vmatpush2.xpose.msra.mxu0 0.0
  %287 = vmatprep.subr.mxu0 0.0
  %288 = vmatpush2.xpose.msra.mxu0 0.0
  %289 = vmatprep.subr.mxu0 0.0
  %290 = vmatpush2.xpose.msra.mxu0 0.0
  %291 = vmatprep.mubr.f32.mxu0 0.0
  %292 = vmatmul.mubr.f32.gmra.mxu0 %v222
  %v293 = vpop.f32.mrf.mxu0
  %v294 = vadd.f32 0.0, %v293
  %v295 = vpop.f32.mrf.mxu0
  %296 = vdwg.mxu0
  %v298 = vsel %vm68, %v55, 0
  %v301 = vsel %vm68, %v63, 0
  %303 = vmatprep.subr.mxu0 0.0
  %304 = vmatpush1.xpose.msra.mxu0 0.0
  %305 = vmatprep.subr.mxu0 0.0
  %306 = vmatpush1.xpose.msra.mxu0 0.0
  %307 = vmatprep.subr.mxu0 0.0
  %308 = vmatpush1.xpose.msra.mxu0 0.0
  %309 = vmatprep.subr.mxu0 0.0
  %310 = vmatpush1.xpose.msra.mxu0 0.0
  %311 = vmatprep.subr.mxu0 0.0
  %312 = vmatpush1.xpose.msra.mxu0 0.0
  %313 = vmatprep.subr.mxu0 0.0
  %314 = vmatpush1.xpose.msra.mxu0 0.0
  %315 = vmatprep.subr.mxu0 0.0
  %316 = vmatpush1.xpose.msra.mxu0 0.0
  %317 = vmatprep.subr.mxu0 0.0
  %318 = vmatpush1.xpose.msra.mxu0 0.0
  %319 = vmatprep.subr.mxu0 0.0
  %320 = vmatpush1.xpose.msra.mxu0 0.0
  %321 = vmatprep.subr.mxu0 0.0
  %322 = vmatpush1.xpose.msra.mxu0 0.0
  %323 = vmatprep.subr.mxu0 0.0
  %324 = vmatpush1.xpose.msra.mxu0 0.0
  %325 = vmatprep.subr.mxu0 0.0
  %326 = vmatpush1.xpose.msra.mxu0 0.0
  %327 = vmatprep.subr.mxu0 0.0
  %328 = vmatpush1.xpose.msra.mxu0 0.0
  %329 = vmatprep.subr.mxu0 0.0
  %330 = vmatpush1.xpose.msra.mxu0 0.0
  %331 = vmatprep.subr.mxu0 0.0
  %332 = vmatpush1.xpose.msra.mxu0 0.0
  %333 = vmatprep.subr.mxu0 0.0
  %334 = vmatpush1.xpose.msra.mxu0 %v301
  %335 = vmatprep.subr.mxu0 0.0
  %336 = vmatpush2.xpose.msra.mxu0 0.0
  %337 = vmatprep.subr.mxu0 0.0
  %338 = vmatpush2.xpose.msra.mxu0 0.0
  %339 = vmatprep.subr.mxu0 0.0
  %340 = vmatpush2.xpose.msra.mxu0 0.0
  %341 = vmatprep.subr.mxu0 0.0
  %342 = vmatpush2.xpose.msra.mxu0 0.0
  %343 = vmatprep.subr.mxu0 0.0
  %344 = vmatpush2.xpose.msra.mxu0 0.0
  %345 = vmatprep.subr.mxu0 0.0
  %346 = vmatpush2.xpose.msra.mxu0 0.0
  %347 = vmatprep.subr.mxu0 0.0
  %348 = vmatpush2.xpose.msra.mxu0 0.0
  %349 = vmatprep.subr.mxu0 0.0
  %350 = vmatpush2.xpose.msra.mxu0 0.0
  %351 = vmatprep.subr.mxu0 0.0
  %352 = vmatpush2.xpose.msra.mxu0 0.0
  %353 = vmatprep.subr.mxu0 0.0
  %354 = vmatpush2.xpose.msra.mxu0 0.0
  %355 = vmatprep.subr.mxu0 0.0
  %356 = vmatpush2.xpose.msra.mxu0 0.0
  %357 = vmatprep.subr.mxu0 0.0
  %358 = vmatpush2.xpose.msra.mxu0 0.0
  %359 = vmatprep.subr.mxu0 0.0
  %360 = vmatpush2.xpose.msra.mxu0 0.0
  %361 = vmatprep.subr.mxu0 0.0
  %362 = vmatpush2.xpose.msra.mxu0 0.0
  %363 = vmatprep.subr.mxu0 0.0
  %364 = vmatpush2.xpose.msra.mxu0 0.0
  %365 = vmatprep.subr.mxu0 0.0
  %366 = vmatpush2.xpose.msra.mxu0 0.0
  %367 = vmatprep.mubr.f32.mxu0 0.0
  %368 = vmatmul.mubr.f32.gmra.mxu0 %v298
  %v369 = vpop.f32.mrf.mxu0
  %v370 = vadd.f32 0.0, %v369
  %v371 = vpop.f32.mrf.mxu0
  %372 = vdwg.mxu0
  %v374 = vsel %vm68, %v56, 0
  %v377 = vsel %vm68, %v64, 0
  %379 = vmatprep.subr.mxu0 0.0
  %380 = vmatpush1.xpose.msra.mxu0 0.0
  %381 = vmatprep.subr.mxu0 0.0
  %382 = vmatpush1.xpose.msra.mxu0 0.0
  %383 = vmatprep.subr.mxu0 0.0
  %384 = vmatpush1.xpose.msra.mxu0 0.0
  %385 = vmatprep.subr.mxu0 0.0
  %386 = vmatpush1.xpose.msra.mxu0 0.0
  %387 = vmatprep.subr.mxu0 0.0
  %388 = vmatpush1.xpose.msra.mxu0 0.0
  %389 = vmatprep.subr.mxu0 0.0
  %390 = vmatpush1.xpose.msra.mxu0 0.0
  %391 = vmatprep.subr.mxu0 0.0
  %392 = vmatpush1.xpose.msra.mxu0 0.0
  %393 = vmatprep.subr.mxu0 0.0
  %394 = vmatpush1.xpose.msra.mxu0 0.0
  %395 = vmatprep.subr.mxu0 0.0
  %396 = vmatpush1.xpose.msra.mxu0 0.0
  %397 = vmatprep.subr.mxu0 0.0
  %398 = vmatpush1.xpose.msra.mxu0 0.0
  %399 = vmatprep.subr.mxu0 0.0
  %400 = vmatpush1.xpose.msra.mxu0 0.0
  %401 = vmatprep.subr.mxu0 0.0
  %402 = vmatpush1.xpose.msra.mxu0 0.0
  %403 = vmatprep.subr.mxu0 0.0
  %404 = vmatpush1.xpose.msra.mxu0 0.0
  %405 = vmatprep.subr.mxu0 0.0
  %406 = vmatpush1.xpose.msra.mxu0 0.0
  %407 = vmatprep.subr.mxu0 0.0
  %408 = vmatpush1.xpose.msra.mxu0 0.0
  %409 = vmatprep.subr.mxu0 0.0
  %410 = vmatpush1.xpose.msra.mxu0 %v377
  %411 = vmatprep.subr.mxu0 0.0
  %412 = vmatpush2.xpose.msra.mxu0 0.0
  %413 = vmatprep.subr.mxu0 0.0
  %414 = vmatpush2.xpose.msra.mxu0 0.0
  %415 = vmatprep.subr.mxu0 0.0
  %416 = vmatpush2.xpose.msra.mxu0 0.0
  %417 = vmatprep.subr.mxu0 0.0
  %418 = vmatpush2.xpose.msra.mxu0 0.0
  %419 = vmatprep.subr.mxu0 0.0
  %420 = vmatpush2.xpose.msra.mxu0 0.0
  %421 = vmatprep.subr.mxu0 0.0
  %422 = vmatpush2.xpose.msra.mxu0 0.0
  %423 = vmatprep.subr.mxu0 0.0
  %424 = vmatpush2.xpose.msra.mxu0 0.0
  %425 = vmatprep.subr.mxu0 0.0
  %426 = vmatpush2.xpose.msra.mxu0 0.0
  %427 = vmatprep.subr.mxu0 0.0
  %428 = vmatpush2.xpose.msra.mxu0 0.0
  %429 = vmatprep.subr.mxu0 0.0
  %430 = vmatpush2.xpose.msra.mxu0 0.0
  %431 = vmatprep.subr.mxu0 0.0
  %432 = vmatpush2.xpose.msra.mxu0 0.0
  %433 = vmatprep.subr.mxu0 0.0
  %434 = vmatpush2.xpose.msra.mxu0 0.0
  %435 = vmatprep.subr.mxu0 0.0
  %436 = vmatpush2.xpose.msra.mxu0 0.0
  %437 = vmatprep.subr.mxu0 0.0
  %438 = vmatpush2.xpose.msra.mxu0 0.0
  %439 = vmatprep.subr.mxu0 0.0
  %440 = vmatpush2.xpose.msra.mxu0 0.0
  %441 = vmatprep.subr.mxu0 0.0
  %442 = vmatpush2.xpose.msra.mxu0 0.0
  %443 = vmatprep.mubr.f32.mxu0 0.0
  %444 = vmatmul.mubr.f32.gmra.mxu0 %v374
  %v445 = vpop.f32.mrf.mxu0
  %v446 = vadd.f32 0.0, %v445
  %v447 = vpop.f32.mrf.mxu0
  %448 = vdwg.mxu0
  %v450 = vsel %vm68, %v57, 0
  %v453 = vsel %vm68, %v65, 0
  %455 = vmatprep.subr.mxu0 0.0
  %456 = vmatpush1.xpose.msra.mxu0 0.0
  %457 = vmatprep.subr.mxu0 0.0
  %458 = vmatpush1.xpose.msra.mxu0 0.0
  %459 = vmatprep.subr.mxu0 0.0
  %460 = vmatpush1.xpose.msra.mxu0 0.0
  %461 = vmatprep.subr.mxu0 0.0
  %462 = vmatpush1.xpose.msra.mxu0 0.0
  %463 = vmatprep.subr.mxu0 0.0
  %464 = vmatpush1.xpose.msra.mxu0 0.0
  %465 = vmatprep.subr.mxu0 0.0
  %466 = vmatpush1.xpose.msra.mxu0 0.0
  %467 = vmatprep.subr.mxu0 0.0
  %468 = vmatpush1.xpose.msra.mxu0 0.0
  %469 = vmatprep.subr.mxu0 0.0
  %470 = vmatpush1.xpose.msra.mxu0 0.0
  %471 = vmatprep.subr.mxu0 0.0
  %472 = vmatpush1.xpose.msra.mxu0 0.0
  %473 = vmatprep.subr.mxu0 0.0
  %474 = vmatpush1.xpose.msra.mxu0 0.0
  %475 = vmatprep.subr.mxu0 0.0
  %476 = vmatpush1.xpose.msra.mxu0 0.0
  %477 = vmatprep.subr.mxu0 0.0
  %478 = vmatpush1.xpose.msra.mxu0 0.0
  %479 = vmatprep.subr.mxu0 0.0
  %480 = vmatpush1.xpose.msra.mxu0 0.0
  %481 = vmatprep.subr.mxu0 0.0
  %482 = vmatpush1.xpose.msra.mxu0 0.0
  %483 = vmatprep.subr.mxu0 0.0
  %484 = vmatpush1.xpose.msra.mxu0 0.0
  %485 = vmatprep.subr.mxu0 0.0
  %486 = vmatpush1.xpose.msra.mxu0 %v453
  %487 = vmatprep.subr.mxu0 0.0
  %488 = vmatpush2.xpose.msra.mxu0 0.0
  %489 = vmatprep.subr.mxu0 0.0
  %490 = vmatpush2.xpose.msra.mxu0 0.0
  %491 = vmatprep.subr.mxu0 0.0
  %492 = vmatpush2.xpose.msra.mxu0 0.0
  %493 = vmatprep.subr.mxu0 0.0
  %494 = vmatpush2.xpose.msra.mxu0 0.0
  %495 = vmatprep.subr.mxu0 0.0
  %496 = vmatpush2.xpose.msra.mxu0 0.0
  %497 = vmatprep.subr.mxu0 0.0
  %498 = vmatpush2.xpose.msra.mxu0 0.0
  %499 = vmatprep.subr.mxu0 0.0
  %500 = vmatpush2.xpose.msra.mxu0 0.0
  %501 = vmatprep.subr.mxu0 0.0
  %502 = vmatpush2.xpose.msra.mxu0 0.0
  %503 = vmatprep.subr.mxu0 0.0
  %504 = vmatpush2.xpose.msra.mxu0 0.0
  %505 = vmatprep.subr.mxu0 0.0
  %506 = vmatpush2.xpose.msra.mxu0 0.0
  %507 = vmatprep.subr.mxu0 0.0
  %508 = vmatpush2.xpose.msra.mxu0 0.0
  %509 = vmatprep.subr.mxu0 0.0
  %510 = vmatpush2.xpose.msra.mxu0 0.0
  %511 = vmatprep.subr.mxu0 0.0
  %512 = vmatpush2.xpose.msra.mxu0 0.0
  %513 = vmatprep.subr.mxu0 0.0
  %514 = vmatpush2.xpose.msra.mxu0 0.0
  %515 = vmatprep.subr.mxu0 0.0
  %516 = vmatpush2.xpose.msra.mxu0 0.0
  %517 = vmatprep.subr.mxu0 0.0
  %518 = vmatpush2.xpose.msra.mxu0 0.0
  %519 = vmatprep.mubr.f32.mxu0 0.0
  %520 = vmatmul.mubr.f32.gmra.mxu0 %v450
  %v521 = vpop.f32.mrf.mxu0
  %v522 = vadd.f32 0.0, %v521
  %v523 = vpop.f32.mrf.mxu0
  %524 = vdwg.mxu0
  %v526 = vsel %vm68, %v58, 0
  %v529 = vsel %vm68, %v66, 0
  %531 = vmatprep.subr.mxu0 0.0
  %532 = vmatpush1.xpose.msra.mxu0 0.0
  %533 = vmatprep.subr.mxu0 0.0
  %534 = vmatpush1.xpose.msra.mxu0 0.0
  %535 = vmatprep.subr.mxu0 0.0
  %536 = vmatpush1.xpose.msra.mxu0 0.0
  %537 = vmatprep.subr.mxu0 0.0
  %538 = vmatpush1.xpose.msra.mxu0 0.0
  %539 = vmatprep.subr.mxu0 0.0
  %540 = vmatpush1.xpose.msra.mxu0 0.0
  %541 = vmatprep.subr.mxu0 0.0
  %542 = vmatpush1.xpose.msra.mxu0 0.0
  %543 = vmatprep.subr.mxu0 0.0
  %544 = vmatpush1.xpose.msra.mxu0 0.0
  %545 = vmatprep.subr.mxu0 0.0
  %546 = vmatpush1.xpose.msra.mxu0 0.0
  %547 = vmatprep.subr.mxu0 0.0
  %548 = vmatpush1.xpose.msra.mxu0 0.0
  %549 = vmatprep.subr.mxu0 0.0
  %550 = vmatpush1.xpose.msra.mxu0 0.0
  %551 = vmatprep.subr.mxu0 0.0
  %552 = vmatpush1.xpose.msra.mxu0 0.0
  %553 = vmatprep.subr.mxu0 0.0
  %554 = vmatpush1.xpose.msra.mxu0 0.0
  %555 = vmatprep.subr.mxu0 0.0
  %556 = vmatpush1.xpose.msra.mxu0 0.0
  %557 = vmatprep.subr.mxu0 0.0
  %558 = vmatpush1.xpose.msra.mxu0 0.0
  %559 = vmatprep.subr.mxu0 0.0
  %560 = vmatpush1.xpose.msra.mxu0 0.0
  %561 = vmatprep.subr.mxu0 0.0
  %562 = vmatpush1.xpose.msra.mxu0 %v529
  %563 = vmatprep.subr.mxu0 0.0
  %564 = vmatpush2.xpose.msra.mxu0 0.0
  %565 = vmatprep.subr.mxu0 0.0
  %566 = vmatpush2.xpose.msra.mxu0 0.0
  %567 = vmatprep.subr.mxu0 0.0
  %568 = vmatpush2.xpose.msra.mxu0 0.0
  %569 = vmatprep.subr.mxu0 0.0
  %570 = vmatpush2.xpose.msra.mxu0 0.0
  %571 = vmatprep.subr.mxu0 0.0
  %572 = vmatpush2.xpose.msra.mxu0 0.0
  %573 = vmatprep.subr.mxu0 0.0
  %574 = vmatpush2.xpose.msra.mxu0 0.0
  %575 = vmatprep.subr.mxu0 0.0
  %576 = vmatpush2.xpose.msra.mxu0 0.0
  %577 = vmatprep.subr.mxu0 0.0
  %578 = vmatpush2.xpose.msra.mxu0 0.0
  %579 = vmatprep.subr.mxu0 0.0
  %580 = vmatpush2.xpose.msra.mxu0 0.0
  %581 = vmatprep.subr.mxu0 0.0
  %582 = vmatpush2.xpose.msra.mxu0 0.0
  %583 = vmatprep.subr.mxu0 0.0
  %584 = vmatpush2.xpose.msra.mxu0 0.0
  %585 = vmatprep.subr.mxu0 0.0
  %586 = vmatpush2.xpose.msra.mxu0 0.0
  %587 = vmatprep.subr.mxu0 0.0
  %588 = vmatpush2.xpose.msra.mxu0 0.0
  %589 = vmatprep.subr.mxu0 0.0
  %590 = vmatpush2.xpose.msra.mxu0 0.0
  %591 = vmatprep.subr.mxu0 0.0
  %592 = vmatpush2.xpose.msra.mxu0 0.0
  %593 = vmatprep.subr.mxu0 0.0
  %594 = vmatpush2.xpose.msra.mxu0 0.0
  %595 = vmatprep.mubr.f32.mxu0 0.0
  %596 = vmatmul.mubr.f32.gmra.mxu0 %v526
  %v597 = vpop.f32.mrf.mxu0
  %v598 = vadd.f32 0.0, %v597
  %v599 = vpop.f32.mrf.mxu0
  %600 = vdwg.mxu0
  %v602 = vsel %vm68, %v59, 0
  %v605 = vsel %vm68, %v67, 0
  %607 = vmatprep.subr.mxu0 0.0
  %608 = vmatpush1.xpose.msra.mxu0 0.0
  %609 = vmatprep.subr.mxu0 0.0
  %610 = vmatpush1.xpose.msra.mxu0 0.0
  %611 = vmatprep.subr.mxu0 0.0
  %612 = vmatpush1.xpose.msra.mxu0 0.0
  %613 = vmatprep.subr.mxu0 0.0
  %614 = vmatpush1.xpose.msra.mxu0 0.0
  %615 = vmatprep.subr.mxu0 0.0
  %616 = vmatpush1.xpose.msra.mxu0 0.0
  %617 = vmatprep.subr.mxu0 0.0
  %618 = vmatpush1.xpose.msra.mxu0 0.0
  %619 = vmatprep.subr.mxu0 0.0
  %620 = vmatpush1.xpose.msra.mxu0 0.0
  %621 = vmatprep.subr.mxu0 0.0
  %622 = vmatpush1.xpose.msra.mxu0 0.0
  %623 = vmatprep.subr.mxu0 0.0
  %624 = vmatpush1.xpose.msra.mxu0 0.0
  %625 = vmatprep.subr.mxu0 0.0
  %626 = vmatpush1.xpose.msra.mxu0 0.0
  %627 = vmatprep.subr.mxu0 0.0
  %628 = vmatpush1.xpose.msra.mxu0 0.0
  %629 = vmatprep.subr.mxu0 0.0
  %630 = vmatpush1.xpose.msra.mxu0 0.0
  %631 = vmatprep.subr.mxu0 0.0
  %632 = vmatpush1.xpose.msra.mxu0 0.0
  %633 = vmatprep.subr.mxu0 0.0
  %634 = vmatpush1.xpose.msra.mxu0 0.0
  %635 = vmatprep.subr.mxu0 0.0
  %636 = vmatpush1.xpose.msra.mxu0 0.0
  %637 = vmatprep.subr.mxu0 0.0
  %638 = vmatpush1.xpose.msra.mxu0 %v605
  %639 = vmatprep.subr.mxu0 0.0
  %640 = vmatpush2.xpose.msra.mxu0 0.0
  %641 = vmatprep.subr.mxu0 0.0
  %642 = vmatpush2.xpose.msra.mxu0 0.0
  %643 = vmatprep.subr.mxu0 0.0
  %644 = vmatpush2.xpose.msra.mxu0 0.0
  %645 = vmatprep.subr.mxu0 0.0
  %646 = vmatpush2.xpose.msra.mxu0 0.0
  %647 = vmatprep.subr.mxu0 0.0
  %648 = vmatpush2.xpose.msra.mxu0 0.0
  %649 = vmatprep.subr.mxu0 0.0
  %650 = vmatpush2.xpose.msra.mxu0 0.0
  %651 = vmatprep.subr.mxu0 0.0
  %652 = vmatpush2.xpose.msra.mxu0 0.0
  %653 = vmatprep.subr.mxu0 0.0
  %654 = vmatpush2.xpose.msra.mxu0 0.0
  %655 = vmatprep.subr.mxu0 0.0
  %656 = vmatpush2.xpose.msra.mxu0 0.0
  %657 = vmatprep.subr.mxu0 0.0
  %658 = vmatpush2.xpose.msra.mxu0 0.0
  %659 = vmatprep.subr.mxu0 0.0
  %660 = vmatpush2.xpose.msra.mxu0 0.0
  %661 = vmatprep.subr.mxu0 0.0
  %662 = vmatpush2.xpose.msra.mxu0 0.0
  %663 = vmatprep.subr.mxu0 0.0
  %664 = vmatpush2.xpose.msra.mxu0 0.0
  %665 = vmatprep.subr.mxu0 0.0
  %666 = vmatpush2.xpose.msra.mxu0 0.0
  %667 = vmatprep.subr.mxu0 0.0
  %668 = vmatpush2.xpose.msra.mxu0 0.0
  %669 = vmatprep.subr.mxu0 0.0
  %670 = vmatpush2.xpose.msra.mxu0 0.0
  %671 = vmatprep.mubr.f32.mxu0 0.0
  %672 = vmatmul.mubr.f32.gmra.mxu0 %v602
  %v673 = vpop.f32.mrf.mxu0
  %v674 = vadd.f32 0.0, %v673
  %v675 = vpop.f32.mrf.mxu0
  %676 = vdwg.mxu0
  %v677 = vld [vmem:[#allocation2] sm:$0xff]
  %v678 = vld [vmem:[#allocation2 + $0x8] sm:$0xff]
  %v679 = vld [vmem:[#allocation2 + $0x10] sm:$0xff]
  %v680 = vld [vmem:[#allocation2 + $0x18] sm:$0xff]
  %v681 = vld [vmem:[#allocation2 + $0x20] sm:$0xff]
  %v682 = vld [vmem:[#allocation2 + $0x28] sm:$0xff]
  %v683 = vld [vmem:[#allocation2 + $0x30] sm:$0xff]
  %v684 = vld [vmem:[#allocation2 + $0x38] sm:$0xff]
  %v685 = vsel %vm68, %v142, -inf
  %686 = vmax.xlane.f32.xlu0 %v685
  %v687 = vpop.xlane.xlu0 %686
  %v688 = vsel %vm68, %v218, -inf
  %689 = vmax.xlane.f32.xlu0 %v688
  %v690 = vpop.xlane.xlu0 %689
  %v691 = vsel %vm68, %v294, -inf
  %692 = vmax.xlane.f32.xlu0 %v691
  %v693 = vpop.xlane.xlu0 %692
  %v694 = vsel %vm68, %v370, -inf
  %695 = vmax.xlane.f32.xlu0 %v694
  %v696 = vpop.xlane.xlu0 %695
  %v697 = vsel %vm68, %v446, -inf
  %698 = vmax.xlane.f32.xlu0 %v697
  %v699 = vpop.xlane.xlu0 %698
  %v700 = vsel %vm68, %v522, -inf
  %701 = vmax.xlane.f32.xlu0 %v700
  %v702 = vpop.xlane.xlu0 %701
  %v703 = vsel %vm68, %v598, -inf
  %704 = vmax.xlane.f32.xlu0 %v703
  %v705 = vpop.xlane.xlu0 %704
  %v706 = vsel %vm68, %v674, -inf
  %707 = vmax.xlane.f32.xlu0 %v706
  %v708 = vpop.xlane.xlu0 %707
  %v709 = vmax.f32 %v677, %v687
  %v710 = vmax.f32 %v678, %v690
  %v711 = vmax.f32 %v679, %v693
  %v712 = vmax.f32 %v680, %v696
  %v713 = vmax.f32 %v681, %v699
  %v714 = vmax.f32 %v682, %v702
  %v715 = vmax.f32 %v683, %v705
  %v716 = vmax.f32 %v684, %v708
  %v717 = vsub.f32 %v677, %v709
  %v718 = vsub.f32 %v678, %v710
  %v719 = vsub.f32 %v679, %v711
  %v720 = vsub.f32 %v680, %v712
  %v721 = vsub.f32 %v681, %v713
  %v722 = vsub.f32 %v682, %v714
  %v723 = vsub.f32 %v683, %v715
  %v724 = vsub.f32 %v684, %v716
  %v725 = vmul.f32 %v717, 1.442695
  %v726 = vpow.pop %v725
  %v727 = vmul.f32 %v718, 1.442695
  %v728 = vpow.pop %v727
  %v729 = vmul.f32 %v719, 1.442695
  %v730 = vpow.pop %v729
  %v731 = vmul.f32 %v720, 1.442695
  %v732 = vpow.pop %v731
  %v733 = vmul.f32 %v721, 1.442695
  %v734 = vpow.pop %v733
  %v735 = vmul.f32 %v722, 1.442695
  %v736 = vpow.pop %v735
  %v737 = vmul.f32 %v723, 1.442695
  %v738 = vpow.pop %v737
  %v739 = vmul.f32 %v724, 1.442695
  %v740 = vpow.pop %v739
  %742 = vset.pattern.permute.xlu0 0
  %743 = vperm.xlu0 %742, %v709
  %v744 = vpop.permute.xlu0 %743
  %747 = vset.pattern.permute.xlu0 0
  %748 = vperm.xlu0 %747, %v710
  %v749 = vpop.permute.xlu0 %748
  %752 = vset.pattern.permute.xlu0 0
  %753 = vperm.xlu0 %752, %v711
  %v754 = vpop.permute.xlu0 %753
  %757 = vset.pattern.permute.xlu0 0
  %758 = vperm.xlu0 %757, %v712
  %v759 = vpop.permute.xlu0 %758
  %762 = vset.pattern.permute.xlu0 0
  %763 = vperm.xlu0 %762, %v713
  %v764 = vpop.permute.xlu0 %763
  %767 = vset.pattern.permute.xlu0 0
  %768 = vperm.xlu0 %767, %v714
  %v769 = vpop.permute.xlu0 %768
  %772 = vset.pattern.permute.xlu0 0
  %773 = vperm.xlu0 %772, %v715
  %v774 = vpop.permute.xlu0 %773
  %777 = vset.pattern.permute.xlu0 0
  %778 = vperm.xlu0 %777, %v716
  %v779 = vpop.permute.xlu0 %778
  %v781 = vsub.f32 %v142, %v744
  %v782 = vsub.f32 %v218, %v749
  %v783 = vsub.f32 %v294, %v754
  %v784 = vsub.f32 %v370, %v759
  %v785 = vsub.f32 %v446, %v764
  %v786 = vsub.f32 %v522, %v769
  %v787 = vsub.f32 %v598, %v774
  %v788 = vsub.f32 %v674, %v779
  %v789 = vmul.f32 %v781, 1.442695
  %v790 = vpow.pop %v789
  %v791 = vmul.f32 %v782, 1.442695
  %v792 = vpow.pop %v791
  %v793 = vmul.f32 %v783, 1.442695
  %v794 = vpow.pop %v793
  %v795 = vmul.f32 %v784, 1.442695
  %v796 = vpow.pop %v795
  %v797 = vmul.f32 %v785, 1.442695
  %v798 = vpow.pop %v797
  %v799 = vmul.f32 %v786, 1.442695
  %v800 = vpow.pop %v799
  %v801 = vmul.f32 %v787, 1.442695
  %v802 = vpow.pop %v801
  %v803 = vmul.f32 %v788, 1.442695
  %v804 = vpow.pop %v803
  %v805 = vld [vmem:[#allocation3] sm:$0xff]
  %v806 = vld [vmem:[#allocation3 + $0x8] sm:$0xff]
  %v807 = vld [vmem:[#allocation3 + $0x10] sm:$0xff]
  %v808 = vld [vmem:[#allocation3 + $0x18] sm:$0xff]
  %v809 = vld [vmem:[#allocation3 + $0x20] sm:$0xff]
  %v810 = vld [vmem:[#allocation3 + $0x28] sm:$0xff]
  %v811 = vld [vmem:[#allocation3 + $0x30] sm:$0xff]
  %v812 = vld [vmem:[#allocation3 + $0x38] sm:$0xff]
  %v813 = vmul.f32 %v726, %v805
  %v814 = vmul.f32 %v728, %v806
  %v815 = vmul.f32 %v730, %v807
  %v816 = vmul.f32 %v732, %v808
  %v817 = vmul.f32 %v734, %v809
  %v818 = vmul.f32 %v736, %v810
  %v819 = vmul.f32 %v738, %v811
  %v820 = vmul.f32 %v740, %v812
  %v821 = vsel %vm68, %v790, 0.0
  %822 = vadd.xlane.f32.xlu0 %v821
  %v823 = vpop.xlane.xlu0 %822
  %v824 = vsel %vm68, %v792, 0.0
  %825 = vadd.xlane.f32.xlu0 %v824
  %v826 = vpop.xlane.xlu0 %825
  %v827 = vsel %vm68, %v794, 0.0
  %828 = vadd.xlane.f32.xlu0 %v827
  %v829 = vpop.xlane.xlu0 %828
  %v830 = vsel %vm68, %v796, 0.0
  %831 = vadd.xlane.f32.xlu0 %v830
  %v832 = vpop.xlane.xlu0 %831
  %v833 = vsel %vm68, %v798, 0.0
  %834 = vadd.xlane.f32.xlu0 %v833
  %v835 = vpop.xlane.xlu0 %834
  %v836 = vsel %vm68, %v800, 0.0
  %837 = vadd.xlane.f32.xlu0 %v836
  %v838 = vpop.xlane.xlu0 %837
  %v839 = vsel %vm68, %v802, 0.0
  %840 = vadd.xlane.f32.xlu0 %v839
  %v841 = vpop.xlane.xlu0 %840
  %v842 = vsel %vm68, %v804, 0.0
  %843 = vadd.xlane.f32.xlu0 %v842
  %v844 = vpop.xlane.xlu0 %843
  %v845 = vadd.f32 %v813, %v823
  %v846 = vadd.f32 %v814, %v826
  %v847 = vadd.f32 %v815, %v829
  %v848 = vadd.f32 %v816, %v832
  %v849 = vadd.f32 %v817, %v835
  %v850 = vadd.f32 %v818, %v838
  %v851 = vadd.f32 %v819, %v841
  %v852 = vadd.f32 %v820, %v844
  %vm853 = vcmask 7168
  %854 = vst.msk [vmem:[#allocation3] sm:$0xff] %vm853, %v845
  %855 = vst.msk [vmem:[#allocation3 + $0x8] sm:$0xff] %vm853, %v846
  %856 = vst.msk [vmem:[#allocation3 + $0x10] sm:$0xff] %vm853, %v847
  %857 = vst.msk [vmem:[#allocation3 + $0x18] sm:$0xff] %vm853, %v848
  %858 = vst.msk [vmem:[#allocation3 + $0x20] sm:$0xff] %vm853, %v849
  %859 = vst.msk [vmem:[#allocation3 + $0x28] sm:$0xff] %vm853, %v850
  %860 = vst.msk [vmem:[#allocation3 + $0x30] sm:$0xff] %vm853, %v851
  %861 = vst.msk [vmem:[#allocation3 + $0x38] sm:$0xff] %vm853, %v852
  %v862 = vld [vmem:[#allocation4] sm:$0xff]
  %v863 = vld [vmem:[#allocation4 + $0x8] sm:$0xff]
  %v864 = vld [vmem:[#allocation4 + $0x10] sm:$0xff]
  %v865 = vld [vmem:[#allocation4 + $0x18] sm:$0xff]
  %v866 = vld [vmem:[#allocation4 + $0x20] sm:$0xff]
  %v867 = vld [vmem:[#allocation4 + $0x28] sm:$0xff]
  %v868 = vld [vmem:[#allocation4 + $0x30] sm:$0xff]
  %v869 = vld [vmem:[#allocation4 + $0x38] sm:$0xff]
  %871 = vset.pattern.permute.xlu0 0
  %872 = vperm.xlu0 %871, %v726
  %v873 = vpop.permute.xlu0 %872
  %876 = vset.pattern.permute.xlu0 0
  %877 = vperm.xlu0 %876, %v728
  %v878 = vpop.permute.xlu0 %877
  %881 = vset.pattern.permute.xlu0 0
  %882 = vperm.xlu0 %881, %v730
  %v883 = vpop.permute.xlu0 %882
  %886 = vset.pattern.permute.xlu0 0
  %887 = vperm.xlu0 %886, %v732
  %v888 = vpop.permute.xlu0 %887
  %891 = vset.pattern.permute.xlu0 0
  %892 = vperm.xlu0 %891, %v734
  %v893 = vpop.permute.xlu0 %892
  %896 = vset.pattern.permute.xlu0 0
  %897 = vperm.xlu0 %896, %v736
  %v898 = vpop.permute.xlu0 %897
  %901 = vset.pattern.permute.xlu0 0
  %902 = vperm.xlu0 %901, %v738
  %v903 = vpop.permute.xlu0 %902
  %906 = vset.pattern.permute.xlu0 0
  %907 = vperm.xlu0 %906, %v740
  %v908 = vpop.permute.xlu0 %907
  %v910 = vmul.f32 %v873, %v862
  %v911 = vmul.f32 %v878, %v863
  %v912 = vmul.f32 %v883, %v864
  %v913 = vmul.f32 %v888, %v865
  %v914 = vmul.f32 %v893, %v866
  %v915 = vmul.f32 %v898, %v867
  %v916 = vmul.f32 %v903, %v868
  %v917 = vmul.f32 %v908, %v869
  %v918 = vld [vmem:[%s2] sm:$0xff]
  %v919 = vld [vmem:[%s2 + $0x8] sm:$0xff]
  %v920 = vld [vmem:[%s2 + $0x10] sm:$0xff]
  %v921 = vld [vmem:[%s2 + $0x18] sm:$0xff]
  %v922 = vld [vmem:[%s2 + $0x20] sm:$0xff]
  %v923 = vld [vmem:[%s2 + $0x28] sm:$0xff]
  %v924 = vld [vmem:[%s2 + $0x30] sm:$0xff]
  %v925 = vld [vmem:[%s2 + $0x38] sm:$0xff]
  %v927 = vsel %vm68, %v790, 0
  %929 = vmatprep.subr.mxu0 0.0
  %930 = vmatpush1.msra.mxu0 0.0
  %931 = vmatprep.subr.mxu0 0.0
  %932 = vmatpush1.msra.mxu0 0.0
  %933 = vmatprep.subr.mxu0 0.0
  %934 = vmatpush1.msra.mxu0 0.0
  %935 = vmatprep.subr.mxu0 0.0
  %936 = vmatpush1.msra.mxu0 0.0
  %937 = vmatprep.subr.mxu0 0.0
  %938 = vmatpush1.msra.mxu0 0.0
  %939 = vmatprep.subr.mxu0 0.0
  %940 = vmatpush1.msra.mxu0 0.0
  %941 = vmatprep.subr.mxu0 0.0
  %942 = vmatpush1.msra.mxu0 0.0
  %943 = vmatprep.subr.mxu0 0.0
  %944 = vmatpush1.msra.mxu0 0.0
  %945 = vmatprep.subr.mxu0 0.0
  %946 = vmatpush1.msra.mxu0 0.0
  %947 = vmatprep.subr.mxu0 0.0
  %948 = vmatpush1.msra.mxu0 0.0
  %949 = vmatprep.subr.mxu0 0.0
  %950 = vmatpush1.msra.mxu0 0.0
  %951 = vmatprep.subr.mxu0 0.0
  %952 = vmatpush1.msra.mxu0 0.0
  %953 = vmatprep.subr.mxu0 0.0
  %954 = vmatpush1.msra.mxu0 0.0
  %955 = vmatprep.subr.mxu0 0.0
  %956 = vmatpush1.msra.mxu0 0.0
  %957 = vmatprep.subr.mxu0 0.0
  %958 = vmatpush1.msra.mxu0 0.0
  %959 = vmatprep.subr.mxu0 0.0
  %960 = vmatpush1.msra.mxu0 %v918
  %961 = vmatprep.subr.mxu0 0.0
  %962 = vmatpush2.msra.mxu0 0.0
  %963 = vmatprep.subr.mxu0 0.0
  %964 = vmatpush2.msra.mxu0 0.0
  %965 = vmatprep.subr.mxu0 0.0
  %966 = vmatpush2.msra.mxu0 0.0
  %967 = vmatprep.subr.mxu0 0.0
  %968 = vmatpush2.msra.mxu0 0.0
  %969 = vmatprep.subr.mxu0 0.0
  %970 = vmatpush2.msra.mxu0 0.0
  %971 = vmatprep.subr.mxu0 0.0
  %972 = vmatpush2.msra.mxu0 0.0
  %973 = vmatprep.subr.mxu0 0.0
  %974 = vmatpush2.msra.mxu0 0.0
  %975 = vmatprep.subr.mxu0 0.0
  %976 = vmatpush2.msra.mxu0 0.0
  %977 = vmatprep.subr.mxu0 0.0
  %978 = vmatpush2.msra.mxu0 0.0
  %979 = vmatprep.subr.mxu0 0.0
  %980 = vmatpush2.msra.mxu0 0.0
  %981 = vmatprep.subr.mxu0 0.0
  %982 = vmatpush2.msra.mxu0 0.0
  %983 = vmatprep.subr.mxu0 0.0
  %984 = vmatpush2.msra.mxu0 0.0
  %985 = vmatprep.subr.mxu0 0.0
  %986 = vmatpush2.msra.mxu0 0.0
  %987 = vmatprep.subr.mxu0 0.0
  %988 = vmatpush2.msra.mxu0 0.0
  %989 = vmatprep.subr.mxu0 0.0
  %990 = vmatpush2.msra.mxu0 0.0
  %991 = vmatprep.subr.mxu0 0.0
  %992 = vmatpush2.msra.mxu0 0.0
  %993 = vmatprep.mubr.f32.mxu0 0.0
  %994 = vmatmul.mubr.f32.gmra.mxu0 %v927
  %v995 = vpop.f32.mrf.mxu0
  %v996 = vadd.f32 0.0, %v995
  %v997 = vpop.f32.mrf.mxu0
  %998 = vdwg.mxu0
  %v1000 = vsel %vm68, %v792, 0
  %1002 = vmatprep.subr.mxu0 0.0
  %1003 = vmatpush1.msra.mxu0 0.0
  %1004 = vmatprep.subr.mxu0 0.0
  %1005 = vmatpush1.msra.mxu0 0.0
  %1006 = vmatprep.subr.mxu0 0.0
  %1007 = vmatpush1.msra.mxu0 0.0
  %1008 = vmatprep.subr.mxu0 0.0
  %1009 = vmatpush1.msra.mxu0 0.0
  %1010 = vmatprep.subr.mxu0 0.0
  %1011 = vmatpush1.msra.mxu0 0.0
  %1012 = vmatprep.subr.mxu0 0.0
  %1013 = vmatpush1.msra.mxu0 0.0
  %1014 = vmatprep.subr.mxu0 0.0
  %1015 = vmatpush1.msra.mxu0 0.0
  %1016 = vmatprep.subr.mxu0 0.0
  %1017 = vmatpush1.msra.mxu0 0.0
  %1018 = vmatprep.subr.mxu0 0.0
  %1019 = vmatpush1.msra.mxu0 0.0
  %1020 = vmatprep.subr.mxu0 0.0
  %1021 = vmatpush1.msra.mxu0 0.0
  %1022 = vmatprep.subr.mxu0 0.0
  %1023 = vmatpush1.msra.mxu0 0.0
  %1024 = vmatprep.subr.mxu0 0.0
  %1025 = vmatpush1.msra.mxu0 0.0
  %1026 = vmatprep.subr.mxu0 0.0
  %1027 = vmatpush1.msra.mxu0 0.0
  %1028 = vmatprep.subr.mxu0 0.0
  %1029 = vmatpush1.msra.mxu0 0.0
  %1030 = vmatprep.subr.mxu0 0.0
  %1031 = vmatpush1.msra.mxu0 0.0
  %1032 = vmatprep.subr.mxu0 0.0
  %1033 = vmatpush1.msra.mxu0 %v919
  %1034 = vmatprep.subr.mxu0 0.0
  %1035 = vmatpush2.msra.mxu0 0.0
  %1036 = vmatprep.subr.mxu0 0.0
  %1037 = vmatpush2.msra.mxu0 0.0
  %1038 = vmatprep.subr.mxu0 0.0
  %1039 = vmatpush2.msra.mxu0 0.0
  %1040 = vmatprep.subr.mxu0 0.0
  %1041 = vmatpush2.msra.mxu0 0.0
  %1042 = vmatprep.subr.mxu0 0.0
  %1043 = vmatpush2.msra.mxu0 0.0
  %1044 = vmatprep.subr.mxu0 0.0
  %1045 = vmatpush2.msra.mxu0 0.0
  %1046 = vmatprep.subr.mxu0 0.0
  %1047 = vmatpush2.msra.mxu0 0.0
  %1048 = vmatprep.subr.mxu0 0.0
  %1049 = vmatpush2.msra.mxu0 0.0
  %1050 = vmatprep.subr.mxu0 0.0
  %1051 = vmatpush2.msra.mxu0 0.0
  %1052 = vmatprep.subr.mxu0 0.0
  %1053 = vmatpush2.msra.mxu0 0.0
  %1054 = vmatprep.subr.mxu0 0.0
  %1055 = vmatpush2.msra.mxu0 0.0
  %1056 = vmatprep.subr.mxu0 0.0
  %1057 = vmatpush2.msra.mxu0 0.0
  %1058 = vmatprep.subr.mxu0 0.0
  %1059 = vmatpush2.msra.mxu0 0.0
  %1060 = vmatprep.subr.mxu0 0.0
  %1061 = vmatpush2.msra.mxu0 0.0
  %1062 = vmatprep.subr.mxu0 0.0
  %1063 = vmatpush2.msra.mxu0 0.0
  %1064 = vmatprep.subr.mxu0 0.0
  %1065 = vmatpush2.msra.mxu0 0.0
  %1066 = vmatprep.mubr.f32.mxu0 0.0
  %1067 = vmatmul.mubr.f32.gmra.mxu0 %v1000
  %v1068 = vpop.f32.mrf.mxu0
  %v1069 = vadd.f32 0.0, %v1068
  %v1070 = vpop.f32.mrf.mxu0
  %1071 = vdwg.mxu0
  %v1073 = vsel %vm68, %v794, 0
  %1075 = vmatprep.subr.mxu0 0.0
  %1076 = vmatpush1.msra.mxu0 0.0
  %1077 = vmatprep.subr.mxu0 0.0
  %1078 = vmatpush1.msra.mxu0 0.0
  %1079 = vmatprep.subr.mxu0 0.0
  %1080 = vmatpush1.msra.mxu0 0.0
  %1081 = vmatprep.subr.mxu0 0.0
  %1082 = vmatpush1.msra.mxu0 0.0
  %1083 = vmatprep.subr.mxu0 0.0
  %1084 = vmatpush1.msra.mxu0 0.0
  %1085 = vmatprep.subr.mxu0 0.0
  %1086 = vmatpush1.msra.mxu0 0.0
  %1087 = vmatprep.subr.mxu0 0.0
  %1088 = vmatpush1.msra.mxu0 0.0
  %1089 = vmatprep.subr.mxu0 0.0
  %1090 = vmatpush1.msra.mxu0 0.0
  %1091 = vmatprep.subr.mxu0 0.0
  %1092 = vmatpush1.msra.mxu0 0.0
  %1093 = vmatprep.subr.mxu0 0.0
  %1094 = vmatpush1.msra.mxu0 0.0
  %1095 = vmatprep.subr.mxu0 0.0
  %1096 = vmatpush1.msra.mxu0 0.0
  %1097 = vmatprep.subr.mxu0 0.0
  %1098 = vmatpush1.msra.mxu0 0.0
  %1099 = vmatprep.subr.mxu0 0.0
  %1100 = vmatpush1.msra.mxu0 0.0
  %1101 = vmatprep.subr.mxu0 0.0
  %1102 = vmatpush1.msra.mxu0 0.0
  %1103 = vmatprep.subr.mxu0 0.0
  %1104 = vmatpush1.msra.mxu0 0.0
  %1105 = vmatprep.subr.mxu0 0.0
  %1106 = vmatpush1.msra.mxu0 %v920
  %1107 = vmatprep.subr.mxu0 0.0
  %1108 = vmatpush2.msra.mxu0 0.0
  %1109 = vmatprep.subr.mxu0 0.0
  %1110 = vmatpush2.msra.mxu0 0.0
  %1111 = vmatprep.subr.mxu0 0.0
  %1112 = vmatpush2.msra.mxu0 0.0
  %1113 = vmatprep.subr.mxu0 0.0
  %1114 = vmatpush2.msra.mxu0 0.0
  %1115 = vmatprep.subr.mxu0 0.0
  %1116 = vmatpush2.msra.mxu0 0.0
  %1117 = vmatprep.subr.mxu0 0.0
  %1118 = vmatpush2.msra.mxu0 0.0
  %1119 = vmatprep.subr.mxu0 0.0
  %1120 = vmatpush2.msra.mxu0 0.0
  %1121 = vmatprep.subr.mxu0 0.0
  %1122 = vmatpush2.msra.mxu0 0.0
  %1123 = vmatprep.subr.mxu0 0.0
  %1124 = vmatpush2.msra.mxu0 0.0
  %1125 = vmatprep.subr.mxu0 0.0
  %1126 = vmatpush2.msra.mxu0 0.0
  %1127 = vmatprep.subr.mxu0 0.0
  %1128 = vmatpush2.msra.mxu0 0.0
  %1129 = vmatprep.subr.mxu0 0.0
  %1130 = vmatpush2.msra.mxu0 0.0
  %1131 = vmatprep.subr.mxu0 0.0
  %1132 = vmatpush2.msra.mxu0 0.0
  %1133 = vmatprep.subr.mxu0 0.0
  %1134 = vmatpush2.msra.mxu0 0.0
  %1135 = vmatprep.subr.mxu0 0.0
  %1136 = vmatpush2.msra.mxu0 0.0
  %1137 = vmatprep.subr.mxu0 0.0
  %1138 = vmatpush2.msra.mxu0 0.0
  %1139 = vmatprep.mubr.f32.mxu0 0.0
  %1140 = vmatmul.mubr.f32.gmra.mxu0 %v1073
  %v1141 = vpop.f32.mrf.mxu0
  %v1142 = vadd.f32 0.0, %v1141
  %v1143 = vpop.f32.mrf.mxu0
  %1144 = vdwg.mxu0
  %v1146 = vsel %vm68, %v796, 0
  %1148 = vmatprep.subr.mxu0 0.0
  %1149 = vmatpush1.msra.mxu0 0.0
  %1150 = vmatprep.subr.mxu0 0.0
  %1151 = vmatpush1.msra.mxu0 0.0
  %1152 = vmatprep.subr.mxu0 0.0
  %1153 = vmatpush1.msra.mxu0 0.0
  %1154 = vmatprep.subr.mxu0 0.0
  %1155 = vmatpush1.msra.mxu0 0.0
  %1156 = vmatprep.subr.mxu0 0.0
  %1157 = vmatpush1.msra.mxu0 0.0
  %1158 = vmatprep.subr.mxu0 0.0
  %1159 = vmatpush1.msra.mxu0 0.0
  %1160 = vmatprep.subr.mxu0 0.0
  %1161 = vmatpush1.msra.mxu0 0.0
  %1162 = vmatprep.subr.mxu0 0.0
  %1163 = vmatpush1.msra.mxu0 0.0
  %1164 = vmatprep.subr.mxu0 0.0
  %1165 = vmatpush1.msra.mxu0 0.0
  %1166 = vmatprep.subr.mxu0 0.0
  %1167 = vmatpush1.msra.mxu0 0.0
  %1168 = vmatprep.subr.mxu0 0.0
  %1169 = vmatpush1.msra.mxu0 0.0
  %1170 = vmatprep.subr.mxu0 0.0
  %1171 = vmatpush1.msra.mxu0 0.0
  %1172 = vmatprep.subr.mxu0 0.0
  %1173 = vmatpush1.msra.mxu0 0.0
  %1174 = vmatprep.subr.mxu0 0.0
  %1175 = vmatpush1.msra.mxu0 0.0
  %1176 = vmatprep.subr.mxu0 0.0
  %1177 = vmatpush1.msra.mxu0 0.0
  %1178 = vmatprep.subr.mxu0 0.0
  %1179 = vmatpush1.msra.mxu0 %v921
  %1180 = vmatprep.subr.mxu0 0.0
  %1181 = vmatpush2.msra.mxu0 0.0
  %1182 = vmatprep.subr.mxu0 0.0
  %1183 = vmatpush2.msra.mxu0 0.0
  %1184 = vmatprep.subr.mxu0 0.0
  %1185 = vmatpush2.msra.mxu0 0.0
  %1186 = vmatprep.subr.mxu0 0.0
  %1187 = vmatpush2.msra.mxu0 0.0
  %1188 = vmatprep.subr.mxu0 0.0
  %1189 = vmatpush2.msra.mxu0 0.0
  %1190 = vmatprep.subr.mxu0 0.0
  %1191 = vmatpush2.msra.mxu0 0.0
  %1192 = vmatprep.subr.mxu0 0.0
  %1193 = vmatpush2.msra.mxu0 0.0
  %1194 = vmatprep.subr.mxu0 0.0
  %1195 = vmatpush2.msra.mxu0 0.0
  %1196 = vmatprep.subr.mxu0 0.0
  %1197 = vmatpush2.msra.mxu0 0.0
  %1198 = vmatprep.subr.mxu0 0.0
  %1199 = vmatpush2.msra.mxu0 0.0
  %1200 = vmatprep.subr.mxu0 0.0
  %1201 = vmatpush2.msra.mxu0 0.0
  %1202 = vmatprep.subr.mxu0 0.0
  %1203 = vmatpush2.msra.mxu0 0.0
  %1204 = vmatprep.subr.mxu0 0.0
  %1205 = vmatpush2.msra.mxu0 0.0
  %1206 = vmatprep.subr.mxu0 0.0
  %1207 = vmatpush2.msra.mxu0 0.0
  %1208 = vmatprep.subr.mxu0 0.0
  %1209 = vmatpush2.msra.mxu0 0.0
  %1210 = vmatprep.subr.mxu0 0.0
  %1211 = vmatpush2.msra.mxu0 0.0
  %1212 = vmatprep.mubr.f32.mxu0 0.0
  %1213 = vmatmul.mubr.f32.gmra.mxu0 %v1146
  %v1214 = vpop.f32.mrf.mxu0
  %v1215 = vadd.f32 0.0, %v1214
  %v1216 = vpop.f32.mrf.mxu0
  %1217 = vdwg.mxu0
  %v1219 = vsel %vm68, %v798, 0
  %1221 = vmatprep.subr.mxu0 0.0
  %1222 = vmatpush1.msra.mxu0 0.0
  %1223 = vmatprep.subr.mxu0 0.0
  %1224 = vmatpush1.msra.mxu0 0.0
  %1225 = vmatprep.subr.mxu0 0.0
  %1226 = vmatpush1.msra.mxu0 0.0
  %1227 = vmatprep.subr.mxu0 0.0
  %1228 = vmatpush1.msra.mxu0 0.0
  %1229 = vmatprep.subr.mxu0 0.0
  %1230 = vmatpush1.msra.mxu0 0.0
  %1231 = vmatprep.subr.mxu0 0.0
  %1232 = vmatpush1.msra.mxu0 0.0
  %1233 = vmatprep.subr.mxu0 0.0
  %1234 = vmatpush1.msra.mxu0 0.0
  %1235 = vmatprep.subr.mxu0 0.0
  %1236 = vmatpush1.msra.mxu0 0.0
  %1237 = vmatprep.subr.mxu0 0.0
  %1238 = vmatpush1.msra.mxu0 0.0
  %1239 = vmatprep.subr.mxu0 0.0
  %1240 = vmatpush1.msra.mxu0 0.0
  %1241 = vmatprep.subr.mxu0 0.0
  %1242 = vmatpush1.msra.mxu0 0.0
  %1243 = vmatprep.subr.mxu0 0.0
  %1244 = vmatpush1.msra.mxu0 0.0
  %1245 = vmatprep.subr.mxu0 0.0
  %1246 = vmatpush1.msra.mxu0 0.0
  %1247 = vmatprep.subr.mxu0 0.0
  %1248 = vmatpush1.msra.mxu0 0.0
  %1249 = vmatprep.subr.mxu0 0.0
  %1250 = vmatpush1.msra.mxu0 0.0
  %1251 = vmatprep.subr.mxu0 0.0
  %1252 = vmatpush1.msra.mxu0 %v922
  %1253 = vmatprep.subr.mxu0 0.0
  %1254 = vmatpush2.msra.mxu0 0.0
  %1255 = vmatprep.subr.mxu0 0.0
  %1256 = vmatpush2.msra.mxu0 0.0
  %1257 = vmatprep.subr.mxu0 0.0
  %1258 = vmatpush2.msra.mxu0 0.0
  %1259 = vmatprep.subr.mxu0 0.0
  %1260 = vmatpush2.msra.mxu0 0.0
  %1261 = vmatprep.subr.mxu0 0.0
  %1262 = vmatpush2.msra.mxu0 0.0
  %1263 = vmatprep.subr.mxu0 0.0
  %1264 = vmatpush2.msra.mxu0 0.0
  %1265 = vmatprep.subr.mxu0 0.0
  %1266 = vmatpush2.msra.mxu0 0.0
  %1267 = vmatprep.subr.mxu0 0.0
  %1268 = vmatpush2.msra.mxu0 0.0
  %1269 = vmatprep.subr.mxu0 0.0
  %1270 = vmatpush2.msra.mxu0 0.0
  %1271 = vmatprep.subr.mxu0 0.0
  %1272 = vmatpush2.msra.mxu0 0.0
  %1273 = vmatprep.subr.mxu0 0.0
  %1274 = vmatpush2.msra.mxu0 0.0
  %1275 = vmatprep.subr.mxu0 0.0
  %1276 = vmatpush2.msra.mxu0 0.0
  %1277 = vmatprep.subr.mxu0 0.0
  %1278 = vmatpush2.msra.mxu0 0.0
  %1279 = vmatprep.subr.mxu0 0.0
  %1280 = vmatpush2.msra.mxu0 0.0
  %1281 = vmatprep.subr.mxu0 0.0
  %1282 = vmatpush2.msra.mxu0 0.0
  %1283 = vmatprep.subr.mxu0 0.0
  %1284 = vmatpush2.msra.mxu0 0.0
  %1285 = vmatprep.mubr.f32.mxu0 0.0
  %1286 = vmatmul.mubr.f32.gmra.mxu0 %v1219
  %v1287 = vpop.f32.mrf.mxu0
  %v1288 = vadd.f32 0.0, %v1287
  %v1289 = vpop.f32.mrf.mxu0
  %1290 = vdwg.mxu0
  %v1292 = vsel %vm68, %v800, 0
  %1294 = vmatprep.subr.mxu0 0.0
  %1295 = vmatpush1.msra.mxu0 0.0
  %1296 = vmatprep.subr.mxu0 0.0
  %1297 = vmatpush1.msra.mxu0 0.0
  %1298 = vmatprep.subr.mxu0 0.0
  %1299 = vmatpush1.msra.mxu0 0.0
  %1300 = vmatprep.subr.mxu0 0.0
  %1301 = vmatpush1.msra.mxu0 0.0
  %1302 = vmatprep.subr.mxu0 0.0
  %1303 = vmatpush1.msra.mxu0 0.0
  %1304 = vmatprep.subr.mxu0 0.0
  %1305 = vmatpush1.msra.mxu0 0.0
  %1306 = vmatprep.subr.mxu0 0.0
  %1307 = vmatpush1.msra.mxu0 0.0
  %1308 = vmatprep.subr.mxu0 0.0
  %1309 = vmatpush1.msra.mxu0 0.0
  %1310 = vmatprep.subr.mxu0 0.0
  %1311 = vmatpush1.msra.mxu0 0.0
  %1312 = vmatprep.subr.mxu0 0.0
  %1313 = vmatpush1.msra.mxu0 0.0
  %1314 = vmatprep.subr.mxu0 0.0
  %1315 = vmatpush1.msra.mxu0 0.0
  %1316 = vmatprep.subr.mxu0 0.0
  %1317 = vmatpush1.msra.mxu0 0.0
  %1318 = vmatprep.subr.mxu0 0.0
  %1319 = vmatpush1.msra.mxu0 0.0
  %1320 = vmatprep.subr.mxu0 0.0
  %1321 = vmatpush1.msra.mxu0 0.0
  %1322 = vmatprep.subr.mxu0 0.0
  %1323 = vmatpush1.msra.mxu0 0.0
  %1324 = vmatprep.subr.mxu0 0.0
  %1325 = vmatpush1.msra.mxu0 %v923
  %1326 = vmatprep.subr.mxu0 0.0
  %1327 = vmatpush2.msra.mxu0 0.0
  %1328 = vmatprep.subr.mxu0 0.0
  %1329 = vmatpush2.msra.mxu0 0.0
  %1330 = vmatprep.subr.mxu0 0.0
  %1331 = vmatpush2.msra.mxu0 0.0
  %1332 = vmatprep.subr.mxu0 0.0
  %1333 = vmatpush2.msra.mxu0 0.0
  %1334 = vmatprep.subr.mxu0 0.0
  %1335 = vmatpush2.msra.mxu0 0.0
  %1336 = vmatprep.subr.mxu0 0.0
  %1337 = vmatpush2.msra.mxu0 0.0
  %1338 = vmatprep.subr.mxu0 0.0
  %1339 = vmatpush2.msra.mxu0 0.0
  %1340 = vmatprep.subr.mxu0 0.0
  %1341 = vmatpush2.msra.mxu0 0.0
  %1342 = vmatprep.subr.mxu0 0.0
  %1343 = vmatpush2.msra.mxu0 0.0
  %1344 = vmatprep.subr.mxu0 0.0
  %1345 = vmatpush2.msra.mxu0 0.0
  %1346 = vmatprep.subr.mxu0 0.0
  %1347 = vmatpush2.msra.mxu0 0.0
  %1348 = vmatprep.subr.mxu0 0.0
  %1349 = vmatpush2.msra.mxu0 0.0
  %1350 = vmatprep.subr.mxu0 0.0
  %1351 = vmatpush2.msra.mxu0 0.0
  %1352 = vmatprep.subr.mxu0 0.0
  %1353 = vmatpush2.msra.mxu0 0.0
  %1354 = vmatprep.subr.mxu0 0.0
  %1355 = vmatpush2.msra.mxu0 0.0
  %1356 = vmatprep.subr.mxu0 0.0
  %1357 = vmatpush2.msra.mxu0 0.0
  %1358 = vmatprep.mubr.f32.mxu0 0.0
  %1359 = vmatmul.mubr.f32.gmra.mxu0 %v1292
  %v1360 = vpop.f32.mrf.mxu0
  %v1361 = vadd.f32 0.0, %v1360
  %v1362 = vpop.f32.mrf.mxu0
  %1363 = vdwg.mxu0
  %v1365 = vsel %vm68, %v802, 0
  %1367 = vmatprep.subr.mxu0 0.0
  %1368 = vmatpush1.msra.mxu0 0.0
  %1369 = vmatprep.subr.mxu0 0.0
  %1370 = vmatpush1.msra.mxu0 0.0
  %1371 = vmatprep.subr.mxu0 0.0
  %1372 = vmatpush1.msra.mxu0 0.0
  %1373 = vmatprep.subr.mxu0 0.0
  %1374 = vmatpush1.msra.mxu0 0.0
  %1375 = vmatprep.subr.mxu0 0.0
  %1376 = vmatpush1.msra.mxu0 0.0
  %1377 = vmatprep.subr.mxu0 0.0
  %1378 = vmatpush1.msra.mxu0 0.0
  %1379 = vmatprep.subr.mxu0 0.0
  %1380 = vmatpush1.msra.mxu0 0.0
  %1381 = vmatprep.subr.mxu0 0.0
  %1382 = vmatpush1.msra.mxu0 0.0
  %1383 = vmatprep.subr.mxu0 0.0
  %1384 = vmatpush1.msra.mxu0 0.0
  %1385 = vmatprep.subr.mxu0 0.0
  %1386 = vmatpush1.msra.mxu0 0.0
  %1387 = vmatprep.subr.mxu0 0.0
  %1388 = vmatpush1.msra.mxu0 0.0
  %1389 = vmatprep.subr.mxu0 0.0
  %1390 = vmatpush1.msra.mxu0 0.0
  %1391 = vmatprep.subr.mxu0 0.0
  %1392 = vmatpush1.msra.mxu0 0.0
  %1393 = vmatprep.subr.mxu0 0.0
  %1394 = vmatpush1.msra.mxu0 0.0
  %1395 = vmatprep.subr.mxu0 0.0
  %1396 = vmatpush1.msra.mxu0 0.0
  %1397 = vmatprep.subr.mxu0 0.0
  %1398 = vmatpush1.msra.mxu0 %v924
  %1399 = vmatprep.subr.mxu0 0.0
  %1400 = vmatpush2.msra.mxu0 0.0
  %1401 = vmatprep.subr.mxu0 0.0
  %1402 = vmatpush2.msra.mxu0 0.0
  %1403 = vmatprep.subr.mxu0 0.0
  %1404 = vmatpush2.msra.mxu0 0.0
  %1405 = vmatprep.subr.mxu0 0.0
  %1406 = vmatpush2.msra.mxu0 0.0
  %1407 = vmatprep.subr.mxu0 0.0
  %1408 = vmatpush2.msra.mxu0 0.0
  %1409 = vmatprep.subr.mxu0 0.0
  %1410 = vmatpush2.msra.mxu0 0.0
  %1411 = vmatprep.subr.mxu0 0.0
  %1412 = vmatpush2.msra.mxu0 0.0
  %1413 = vmatprep.subr.mxu0 0.0
  %1414 = vmatpush2.msra.mxu0 0.0
  %1415 = vmatprep.subr.mxu0 0.0
  %1416 = vmatpush2.msra.mxu0 0.0
  %1417 = vmatprep.subr.mxu0 0.0
  %1418 = vmatpush2.msra.mxu0 0.0
  %1419 = vmatprep.subr.mxu0 0.0
  %1420 = vmatpush2.msra.mxu0 0.0
  %1421 = vmatprep.subr.mxu0 0.0
  %1422 = vmatpush2.msra.mxu0 0.0
  %1423 = vmatprep.subr.mxu0 0.0
  %1424 = vmatpush2.msra.mxu0 0.0
  %1425 = vmatprep.subr.mxu0 0.0
  %1426 = vmatpush2.msra.mxu0 0.0
  %1427 = vmatprep.subr.mxu0 0.0
  %1428 = vmatpush2.msra.mxu0 0.0
  %1429 = vmatprep.subr.mxu0 0.0
  %1430 = vmatpush2.msra.mxu0 0.0
  %1431 = vmatprep.mubr.f32.mxu0 0.0
  %1432 = vmatmul.mubr.f32.gmra.mxu0 %v1365
  %v1433 = vpop.f32.mrf.mxu0
  %v1434 = vadd.f32 0.0, %v1433
  %v1435 = vpop.f32.mrf.mxu0
  %1436 = vdwg.mxu0
  %v1438 = vsel %vm68, %v804, 0
  %1440 = vmatprep.subr.mxu0 0.0
  %1441 = vmatpush1.msra.mxu0 0.0
  %1442 = vmatprep.subr.mxu0 0.0
  %1443 = vmatpush1.msra.mxu0 0.0
  %1444 = vmatprep.subr.mxu0 0.0
  %1445 = vmatpush1.msra.mxu0 0.0
  %1446 = vmatprep.subr.mxu0 0.0
  %1447 = vmatpush1.msra.mxu0 0.0
  %1448 = vmatprep.subr.mxu0 0.0
  %1449 = vmatpush1.msra.mxu0 0.0
  %1450 = vmatprep.subr.mxu0 0.0
  %1451 = vmatpush1.msra.mxu0 0.0
  %1452 = vmatprep.subr.mxu0 0.0
  %1453 = vmatpush1.msra.mxu0 0.0
  %1454 = vmatprep.subr.mxu0 0.0
  %1455 = vmatpush1.msra.mxu0 0.0
  %1456 = vmatprep.subr.mxu0 0.0
  %1457 = vmatpush1.msra.mxu0 0.0
  %1458 = vmatprep.subr.mxu0 0.0
  %1459 = vmatpush1.msra.mxu0 0.0
  %1460 = vmatprep.subr.mxu0 0.0
  %1461 = vmatpush1.msra.mxu0 0.0
  %1462 = vmatprep.subr.mxu0 0.0
  %1463 = vmatpush1.msra.mxu0 0.0
  %1464 = vmatprep.subr.mxu0 0.0
  %1465 = vmatpush1.msra.mxu0 0.0
  %1466 = vmatprep.subr.mxu0 0.0
  %1467 = vmatpush1.msra.mxu0 0.0
  %1468 = vmatprep.subr.mxu0 0.0
  %1469 = vmatpush1.msra.mxu0 0.0
  %1470 = vmatprep.subr.mxu0 0.0
  %1471 = vmatpush1.msra.mxu0 %v925
  %1472 = vmatprep.subr.mxu0 0.0
  %1473 = vmatpush2.msra.mxu0 0.0
  %1474 = vmatprep.subr.mxu0 0.0
  %1475 = vmatpush2.msra.mxu0 0.0
  %1476 = vmatprep.subr.mxu0 0.0
  %1477 = vmatpush2.msra.mxu0 0.0
  %1478 = vmatprep.subr.mxu0 0.0
  %1479 = vmatpush2.msra.mxu0 0.0
  %1480 = vmatprep.subr.mxu0 0.0
  %1481 = vmatpush2.msra.mxu0 0.0
  %1482 = vmatprep.subr.mxu0 0.0
  %1483 = vmatpush2.msra.mxu0 0.0
  %1484 = vmatprep.subr.mxu0 0.0
  %1485 = vmatpush2.msra.mxu0 0.0
  %1486 = vmatprep.subr.mxu0 0.0
  %1487 = vmatpush2.msra.mxu0 0.0
  %1488 = vmatprep.subr.mxu0 0.0
  %1489 = vmatpush2.msra.mxu0 0.0
  %1490 = vmatprep.subr.mxu0 0.0
  %1491 = vmatpush2.msra.mxu0 0.0
  %1492 = vmatprep.subr.mxu0 0.0
  %1493 = vmatpush2.msra.mxu0 0.0
  %1494 = vmatprep.subr.mxu0 0.0
  %1495 = vmatpush2.msra.mxu0 0.0
  %1496 = vmatprep.subr.mxu0 0.0
  %1497 = vmatpush2.msra.mxu0 0.0
  %1498 = vmatprep.subr.mxu0 0.0
  %1499 = vmatpush2.msra.mxu0 0.0
  %1500 = vmatprep.subr.mxu0 0.0
  %1501 = vmatpush2.msra.mxu0 0.0
  %1502 = vmatprep.subr.mxu0 0.0
  %1503 = vmatpush2.msra.mxu0 0.0
  %1504 = vmatprep.mubr.f32.mxu0 0.0
  %1505 = vmatmul.mubr.f32.gmra.mxu0 %v1438
  %v1506 = vpop.f32.mrf.mxu0
  %v1507 = vadd.f32 0.0, %v1506
  %v1508 = vpop.f32.mrf.mxu0
  %1509 = vdwg.mxu0
  %v1510 = vadd.f32 %v910, %v996
  %v1511 = vadd.f32 %v911, %v1069
  %v1512 = vadd.f32 %v912, %v1142
  %v1513 = vadd.f32 %v913, %v1215
  %v1514 = vadd.f32 %v914, %v1288
  %v1515 = vadd.f32 %v915, %v1361
  %v1516 = vadd.f32 %v916, %v1434
  %v1517 = vadd.f32 %v917, %v1507
  %1518 = vst.msk [vmem:[#allocation4] sm:$0xff] %vm68, %v1510
  %1519 = vst.msk [vmem:[#allocation4 + $0x8] sm:$0xff] %vm68, %v1511
  %1520 = vst.msk [vmem:[#allocation4 + $0x10] sm:$0xff] %vm68, %v1512
  %1521 = vst.msk [vmem:[#allocation4 + $0x18] sm:$0xff] %vm68, %v1513
  %1522 = vst.msk [vmem:[#allocation4 + $0x20] sm:$0xff] %vm68, %v1514
  %1523 = vst.msk [vmem:[#allocation4 + $0x28] sm:$0xff] %vm68, %v1515
  %1524 = vst.msk [vmem:[#allocation4 + $0x30] sm:$0xff] %vm68, %v1516
  %1525 = vst.msk [vmem:[#allocation4 + $0x38] sm:$0xff] %vm68, %v1517
  %1526 = vst.msk [vmem:[#allocation2] sm:$0xff] %vm853, %v709
  %1527 = vst.msk [vmem:[#allocation2 + $0x8] sm:$0xff] %vm853, %v710
  %1528 = vst.msk [vmem:[#allocation2 + $0x10] sm:$0xff] %vm853, %v711
  %1529 = vst.msk [vmem:[#allocation2 + $0x18] sm:$0xff] %vm853, %v712
  %1530 = vst.msk [vmem:[#allocation2 + $0x20] sm:$0xff] %vm853, %v713
  %1531 = vst.msk [vmem:[#allocation2 + $0x28] sm:$0xff] %vm853, %v714
  %1532 = vst.msk [vmem:[#allocation2 + $0x30] sm:$0xff] %vm853, %v715
  %1533 = vst.msk [vmem:[#allocation2 + $0x38] sm:$0xff] %vm853, %v716
  // Predicated region
  $region18: #{_lambda_.17} parent=0 // pred_check
    %p1534 = pneg %p14
  $region19: #{_lambda_.17} parent=0 // pred_check_branch
    %1536 = sbr.rel (%p1534) target = $region21
  $region20: #{_lambda_.17} parent=0 // pred_region
    %v1537 = vld [vmem:[#allocation4] sm:$0xff]
    %v1538 = vld [vmem:[#allocation4 + $0x8] sm:$0xff]
    %v1539 = vld [vmem:[#allocation4 + $0x10] sm:$0xff]
    %v1540 = vld [vmem:[#allocation4 + $0x18] sm:$0xff]
    %v1541 = vld [vmem:[#allocation4 + $0x20] sm:$0xff]
    %v1542 = vld [vmem:[#allocation4 + $0x28] sm:$0xff]
    %v1543 = vld [vmem:[#allocation4 + $0x30] sm:$0xff]
    %v1544 = vld [vmem:[#allocation4 + $0x38] sm:$0xff]
    %v1545 = vld [vmem:[#allocation3] sm:$0xff]
    %v1546 = vld [vmem:[#allocation3 + $0x8] sm:$0xff]
    %v1547 = vld [vmem:[#allocation3 + $0x10] sm:$0xff]
    %v1548 = vld [vmem:[#allocation3 + $0x18] sm:$0xff]
    %v1549 = vld [vmem:[#allocation3 + $0x20] sm:$0xff]
    %v1550 = vld [vmem:[#allocation3 + $0x28] sm:$0xff]
    %v1551 = vld [vmem:[#allocation3 + $0x30] sm:$0xff]
    %v1552 = vld [vmem:[#allocation3 + $0x38] sm:$0xff]
    %v1553 = vrcp.pop %v1545
    %v1554 = vrcp.pop %v1546
    %v1555 = vrcp.pop %v1547
    %v1556 = vrcp.pop %v1548
    %v1557 = vrcp.pop %v1549
    %v1558 = vrcp.pop %v1550
    %v1559 = vrcp.pop %v1551
    %v1560 = vrcp.pop %v1552
    %1562 = vset.pattern.permute.xlu0 0
    %1563 = vperm.xlu0 %1562, %v1553
    %v1564 = vpop.permute.xlu0 %1563
    %1567 = vset.pattern.permute.xlu0 0
    %1568 = vperm.xlu0 %1567, %v1554
    %v1569 = vpop.permute.xlu0 %1568
    %1572 = vset.pattern.permute.xlu0 0
    %1573 = vperm.xlu0 %1572, %v1555
    %v1574 = vpop.permute.xlu0 %1573
    %1577 = vset.pattern.permute.xlu0 0
    %1578 = vperm.xlu0 %1577, %v1556
    %v1579 = vpop.permute.xlu0 %1578
    %1582 = vset.pattern.permute.xlu0 0
    %1583 = vperm.xlu0 %1582, %v1557
    %v1584 = vpop.permute.xlu0 %1583
    %1587 = vset.pattern.permute.xlu0 0
    %1588 = vperm.xlu0 %1587, %v1558
    %v1589 = vpop.permute.xlu0 %1588
    %1592 = vset.pattern.permute.xlu0 0
    %1593 = vperm.xlu0 %1592, %v1559
    %v1594 = vpop.permute.xlu0 %1593
    %1597 = vset.pattern.permute.xlu0 0
    %1598 = vperm.xlu0 %1597, %v1560
    %v1599 = vpop.permute.xlu0 %1598
    %v1601 = vmul.f32 %v1537, %v1564
    %v1602 = vmul.f32 %v1538, %v1569
    %v1603 = vmul.f32 %v1539, %v1574
    %v1604 = vmul.f32 %v1540, %v1579
    %v1605 = vmul.f32 %v1541, %v1584
    %v1606 = vmul.f32 %v1542, %v1589
    %v1607 = vmul.f32 %v1543, %v1594
    %v1608 = vmul.f32 %v1544, %v1599
    %1609 = vst.msk [vmem:[%s3] sm:$0xff] %vm68, %v1601
    %1610 = vst.msk [vmem:[%s3 + $0x8] sm:$0xff] %vm68, %v1602
    %1611 = vst.msk [vmem:[%s3 + $0x10] sm:$0xff] %vm68, %v1603
    %1612 = vst.msk [vmem:[%s3 + $0x18] sm:$0xff] %vm68, %v1604
    %1613 = vst.msk [vmem:[%s3 + $0x20] sm:$0xff] %vm68, %v1605
    %1614 = vst.msk [vmem:[%s3 + $0x28] sm:$0xff] %vm68, %v1606
    %1615 = vst.msk [vmem:[%s3 + $0x30] sm:$0xff] %vm68, %v1607
    %1616 = vst.msk [vmem:[%s3 + $0x38] sm:$0xff] %vm68, %v1608
  $region21: #{_lambda_.17} parent=0 // pred_fallthru
    _
  // Predicated region
  $region22: #{_lambda_.17} parent=0 // pred_check
    _
  $region23: #{_lambda_.17} parent=0 // pred_check_branch
    %1618 = sbr.rel (0) target = $region25
  $region24: #{_lambda_.17} parent=0 // pred_region
    _
  $region25: #{_lambda_.17} parent=0 // pred_fallthru
    _
  // Predicated region
  $region26: #{_lambda_.17} parent=0 // pred_check
    _
  $region27: #{_lambda_.17} parent=0 // pred_check_branch
    %1620 = sbr.rel (0) target = $region29
  $region28: #{_lambda_.17} parent=0 // pred_region
    _
  $region29: #{_lambda_.17} parent=0 // pred_fallthru
    _

// kernel: _lambda_.21
$region0: #{_lambda_.21}
  #allocation0 [shape = 'u32[]', space=smem, size = 0x4, offset = 0x4, fixed_abs, tag = 'smem constant byte address 0x4 - core index']
  #allocation1 [shape = 'u32[144,128]{1,0:T(1,128)}', space=vmem, size = 0x12000, scoped, tag = 'internal scratch']
  %s0 = inlined_call_operand.vmem [shape: f32[16,32], index: 0, kind: input, shape index: {}]
  %s1 = inlined_call_operand.vmem [shape: f32[1,32], index: 1, kind: input, shape index: {}]
  %s2 = inlined_call_operand.vmem [shape: f32[1,32], index: 2, kind: input, shape index: {}]
  %s3 = inlined_call_operand.vmem [shape: f32[16,32], index: 3, kind: output, shape index: {}]
  %s4 = sld [smem:[#allocation0]]
  $region22: #{_lambda_.21} parent=0
    _
  %s6 = ssub.s32 1, %s4
  %s7 = scalar_select 0, %s6, %s4
  // Predicated region
  $region2: #{_lambda_.21} parent=0 // pred_check
    _
  $region3: #{_lambda_.21} parent=0 // pred_check_branch
    %9 = sbr.rel (0) target = $region5
  $region4: #{_lambda_.21} parent=0 // pred_region
    _
  $region5: #{_lambda_.21} parent=0 // pred_fallthru
    _
  // Predicated region
  $region6: #{_lambda_.21} parent=0 // pred_check
    _
  $region7: #{_lambda_.21} parent=0 // pred_check_branch
    %11 = sbr.rel (0) target = $region9
  $region8: #{_lambda_.21} parent=0 // pred_region
    _
  $region9: #{_lambda_.21} parent=0 // pred_fallthru
    _
  // Predicated region
  $region10: #{_lambda_.21} parent=0 // pred_check
    _
  $region11: #{_lambda_.21} parent=0 // pred_check_branch
    %13 = sbr.rel (0) target = $region13
  $region12: #{_lambda_.21} parent=0 // pred_region
    _
  $region13: #{_lambda_.21} parent=0 // pred_fallthru
    _
  %v14 = vld [vmem:[%s0] sm:$0xff]
  %v15 = vld [vmem:[%s0 + $0x8] sm:$0xff]
  %vm16 = vcmask 261120
  %v17 = vsel %vm16, %v14, 0.0
  %18 = vadd.xlane.f32.xlu0 %v17
  %v19 = vpop.xlane.xlu0 %18
  %v20 = vsel %vm16, %v15, 0.0
  %21 = vadd.xlane.f32.xlu0 %v20
  %v22 = vpop.xlane.xlu0 %21
  %v23 = vrcp.pop 32.0
  %v24 = vmul.f32 %v19, %v23
  %v25 = vmul.f32 %v22, %v23
  %v26 = vsub.f32 %v14, %v24
  %v27 = vsub.f32 %v15, %v25
  %v28 = vmul.f32 %v26, %v26
  %v29 = vmul.f32 %v27, %v27
  %v30 = vsel %vm16, %v28, 0.0
  %31 = vadd.xlane.f32.xlu0 %v30
  %v32 = vpop.xlane.xlu0 %31
  %v33 = vsel %vm16, %v29, 0.0
  %34 = vadd.xlane.f32.xlu0 %v33
  %v35 = vpop.xlane.xlu0 %34
  %v36 = vmul.f32 %v32, %v23
  %v37 = vmul.f32 %v35, %v23
  %v38 = vadd.f32 %v36, 1e-05
  %v39 = vadd.f32 %v37, 1e-05
  %v40 = vrsqrt.pop %v38
  %v41 = vrsqrt.pop %v39
  %v42 = vmul.f32 %v26, %v40
  %v43 = vmul.f32 %v27, %v41
  %v44 = vld [vmem:[%s1] sm:$0x1]
  %v46 = vlaneseq
  %v47 = vshrl.u32 %v46, 7
  %v48 = vsub.s32 0, %v47
  %v49 = vrot.slane %v44, %v48
  %v51 = vmul.f32 %v42, %v49
  %v52 = vmul.f32 %v43, %v49
  %v53 = vld [vmem:[%s2] sm:$0x1]
  %v55 = vlaneseq
  %v56 = vshrl.u32 %v55, 7
  %v57 = vsub.s32 0, %v56
  %v58 = vrot.slane %v53, %v57
  %v60 = vadd.f32 %v51, %v58
  %v61 = vadd.f32 %v52, %v58
  %62 = vst.msk [vmem:[%s3] sm:$0xff] %vm16, %v60
  %63 = vst.msk [vmem:[%s3 + $0x8] sm:$0xff] %vm16, %v61
  // Predicated region
  $region14: #{_lambda_.21} parent=0 // pred_check
    _
  $region15: #{_lambda_.21} parent=0 // pred_check_branch
    %65 = sbr.rel (0) target = $region17
  $region16: #{_lambda_.21} parent=0 // pred_region
    _
  $region17: #{_lambda_.21} parent=0 // pred_fallthru
    _
  // Predicated region
  $region18: #{_lambda_.21} parent=0 // pred_check
    _
  $region19: #{_lambda_.21} parent=0 // pred_check_branch
    %67 = sbr.rel (0) target = $region21
  $region20: #{_lambda_.21} parent=0 // pred_region
    _
  $region21: #{_lambda_.21} parent=0 // pred_fallthru
    _

// kernel: _lambda_.26
$region0: #{_lambda_.26}
  #allocation0 [shape = 'u32[]', space=smem, size = 0x4, offset = 0x4, fixed_abs, tag = 'smem constant byte address 0x4 - core index']
  #allocation1 [shape = 'u32[144,128]{1,0:T(1,128)}', space=vmem, size = 0x12000, scoped, tag = 'internal scratch']
  #allocation2 [shape = 'f32[16,64]{1,0:T(8,128)}', space=vmem, size = 0x2000, scoped, tag = 'scratch operand']
  %s0 = inlined_call_operand.vmem [shape: f32[16,32], index: 0, kind: input, shape index: {}]
  %s1 = inlined_call_operand.vmem [shape: f32[32,64], index: 1, kind: input, shape index: {}]
  %s2 = inlined_call_operand.vmem [shape: f32[1,64], index: 2, kind: input, shape index: {}]
  %s3 = inlined_call_operand.vmem [shape: f32[16,64], index: 3, kind: output, shape index: {}]
  %s4 = sld [smem:[#allocation0]]
  $region30: #{_lambda_.26} parent=0
    _
  %s6 = ssub.s32 1, %s4
  %s7 = scalar_select 0, %s6, %s4
  // Predicated region
  $region2: #{_lambda_.26} parent=0 // pred_check
    _
  $region3: #{_lambda_.26} parent=0 // pred_check_branch
    %9 = sbr.rel (0) target = $region5
  $region4: #{_lambda_.26} parent=0 // pred_region
    _
  $region5: #{_lambda_.26} parent=0 // pred_fallthru
    _
  // Predicated region
  $region6: #{_lambda_.26} parent=0 // pred_check
    _
  $region7: #{_lambda_.26} parent=0 // pred_check_branch
    %11 = sbr.rel (0) target = $region9
  $region8: #{_lambda_.26} parent=0 // pred_region
    _
  $region9: #{_lambda_.26} parent=0 // pred_fallthru
    _
  // Predicated region
  $region10: #{_lambda_.26} parent=0 // pred_check
    _
  $region11: #{_lambda_.26} parent=0 // pred_check_branch
    %13 = sbr.rel (0) target = $region13
  $region12: #{_lambda_.26} parent=0 // pred_region
    _
  $region13: #{_lambda_.26} parent=0 // pred_fallthru
    _
  %p14 = scmp.eq.s32.totalorder 0, 0
  // Predicated region
  $region14: #{_lambda_.26} parent=0 // pred_check
    %p15 = pneg %p14
  $region15: #{_lambda_.26} parent=0 // pred_check_branch
    %17 = sbr.rel (%p15) target = $region17
  $region16: #{_lambda_.26} parent=0 // pred_region
    %vm18 = vcmask 523264
    %19 = vst.msk [vmem:[#allocation2] sm:$0xff] %vm18, 0.0
    %20 = vst.msk [vmem:[#allocation2 + $0x8] sm:$0xff] %vm18, 0.0
  $region17: #{_lambda_.26} parent=0 // pred_fallthru
    _
  %v21 = vld [vmem:[#allocation2] sm:$0xff]
  %v22 = vld [vmem:[#allocation2 + $0x8] sm:$0xff]
  %v23 = vld [vmem:[%s0] sm:$0xff]
  %v24 = vld [vmem:[%s0 + $0x8] sm:$0xff]
  %v25 = vld [vmem:[%s1] sm:$0xff]
  %v26 = vld [vmem:[%s1 + $0x8] sm:$0xff]
  %v27 = vld [vmem:[%s1 + $0x10] sm:$0xff]
  %v28 = vld [vmem:[%s1 + $0x18] sm:$0xff]
  %vm29 = vcmask 261120
  %v31 = vsel %vm29, %v23, 0
  %v34 = vsel %vm29, %v24, 0
  %36 = vmatprep.subr.mxu0 0.0
  %37 = vmatpush1.msra.mxu0 0.0
  %38 = vmatprep.subr.mxu0 0.0
  %39 = vmatpush1.msra.mxu0 0.0
  %40 = vmatprep.subr.mxu0 0.0
  %41 = vmatpush1.msra.mxu0 0.0
  %42 = vmatprep.subr.mxu0 0.0
  %43 = vmatpush1.msra.mxu0 0.0
  %44 = vmatprep.subr.mxu0 0.0
  %45 = vmatpush1.msra.mxu0 0.0
  %46 = vmatprep.subr.mxu0 0.0
  %47 = vmatpush1.msra.mxu0 0.0
  %48 = vmatprep.subr.mxu0 0.0
  %49 = vmatpush1.msra.mxu0 0.0
  %50 = vmatprep.subr.mxu0 0.0
  %51 = vmatpush1.msra.mxu0 0.0
  %52 = vmatprep.subr.mxu0 0.0
  %53 = vmatpush1.msra.mxu0 0.0
  %54 = vmatprep.subr.mxu0 0.0
  %55 = vmatpush1.msra.mxu0 0.0
  %56 = vmatprep.subr.mxu0 0.0
  %57 = vmatpush1.msra.mxu0 0.0
  %58 = vmatprep.subr.mxu0 0.0
  %59 = vmatpush1.msra.mxu0 0.0
  %60 = vmatprep.subr.mxu0 0.0
  %61 = vmatpush1.msra.mxu0 %v28
  %62 = vmatprep.subr.mxu0 0.0
  %63 = vmatpush1.msra.mxu0 %v27
  %64 = vmatprep.subr.mxu0 0.0
  %65 = vmatpush1.msra.mxu0 %v26
  %66 = vmatprep.subr.mxu0 0.0
  %67 = vmatpush1.msra.mxu0 %v25
  %68 = vmatprep.subr.mxu0 0.0
  %69 = vmatpush2.msra.mxu0 0.0
  %70 = vmatprep.subr.mxu0 0.0
  %71 = vmatpush2.msra.mxu0 0.0
  %72 = vmatprep.subr.mxu0 0.0
  %73 = vmatpush2.msra.mxu0 0.0
  %74 = vmatprep.subr.mxu0 0.0
  %75 = vmatpush2.msra.mxu0 0.0
  %76 = vmatprep.subr.mxu0 0.0
  %77 = vmatpush2.msra.mxu0 0.0
  %78 = vmatprep.subr.mxu0 0.0
  %79 = vmatpush2.msra.mxu0 0.0
  %80 = vmatprep.subr.mxu0 0.0
  %81 = vmatpush2.msra.mxu0 0.0
  %82 = vmatprep.subr.mxu0 0.0
  %83 = vmatpush2.msra.mxu0 0.0
  %84 = vmatprep.subr.mxu0 0.0
  %85 = vmatpush2.msra.mxu0 0.0
  %86 = vmatprep.subr.mxu0 0.0
  %87 = vmatpush2.msra.mxu0 0.0
  %88 = vmatprep.subr.mxu0 0.0
  %89 = vmatpush2.msra.mxu0 0.0
  %90 = vmatprep.subr.mxu0 0.0
  %91 = vmatpush2.msra.mxu0 0.0
  %92 = vmatprep.subr.mxu0 0.0
  %93 = vmatpush2.msra.mxu0 0.0
  %94 = vmatprep.subr.mxu0 0.0
  %95 = vmatpush2.msra.mxu0 0.0
  %96 = vmatprep.subr.mxu0 0.0
  %97 = vmatpush2.msra.mxu0 0.0
  %98 = vmatprep.subr.mxu0 0.0
  %99 = vmatpush2.msra.mxu0 0.0
  %100 = vmatprep.mubr.f32.mxu0 0.0
  %101 = vmatmul.mubr.f32.gmra.mxu0 %v31
  %v102 = vpop.f32.mrf.mxu0
  %v103 = vadd.f32 0.0, %v102
  %v104 = vpop.f32.mrf.mxu0
  %105 = vmatprep.mubr.f32.mxu0 0.0
  %106 = vmatmul.mubr.f32.gmra.mxu0 %v34
  %v107 = vpop.f32.mrf.mxu0
  %v108 = vadd.f32 0.0, %v107
  %v109 = vpop.f32.mrf.mxu0
  %110 = vdwg.mxu0
  %v111 = vadd.f32 %v21, %v103
  %v112 = vadd.f32 %v22, %v108
  %vm113 = vcmask 523264
  %114 = vst.msk [vmem:[#allocation2] sm:$0xff] %vm113, %v111
  %115 = vst.msk [vmem:[#allocation2 + $0x8] sm:$0xff] %vm113, %v112
  // Predicated region
  $region18: #{_lambda_.26} parent=0 // pred_check
    %p116 = pneg %p14
  $region19: #{_lambda_.26} parent=0 // pred_check_branch
    %118 = sbr.rel (%p116) target = $region21
  $region20: #{_lambda_.26} parent=0 // pred_region
    %v119 = vld [vmem:[#allocation2] sm:$0xff]
    %v120 = vld [vmem:[#allocation2 + $0x8] sm:$0xff]
    %v121 = vld [vmem:[%s2] sm:$0x1]
    %v123 = vlaneseq
    %v124 = vshrl.u32 %v123, 7
    %v125 = vsub.s32 0, %v124
    %v126 = vrot.slane %v121, %v125
    %v128 = vadd.f32 %v119, %v126
    %v129 = vadd.f32 %v120, %v126
    %130 = vst.msk [vmem:[%s3] sm:$0xff] %vm113, %v128
    %131 = vst.msk [vmem:[%s3 + $0x8] sm:$0xff] %vm113, %v129
  $region21: #{_lambda_.26} parent=0 // pred_fallthru
    _
  // Predicated region
  $region22: #{_lambda_.26} parent=0 // pred_check
    _
  $region23: #{_lambda_.26} parent=0 // pred_check_branch
    %133 = sbr.rel (0) target = $region25
  $region24: #{_lambda_.26} parent=0 // pred_region
    _
  $region25: #{_lambda_.26} parent=0 // pred_fallthru
    _
  // Predicated region
  $region26: #{_lambda_.26} parent=0 // pred_check
    _
  $region27: #{_lambda_.26} parent=0 // pred_check_branch
    %135 = sbr.rel (0) target = $region29
  $region28: #{_lambda_.26} parent=0 // pred_region
    _
  $region29: #{_lambda_.26} parent=0 // pred_fallthru
    _

// kernel: _lambda_.20
$region0: #{_lambda_.20}
  #allocation0 [shape = 'u32[]', space=smem, size = 0x4, offset = 0x4, fixed_abs, tag = 'smem constant byte address 0x4 - core index']
  #allocation1 [shape = 'u32[144,128]{1,0:T(1,128)}', space=vmem, size = 0x12000, scoped, tag = 'internal scratch']
  #allocation2 [shape = 'f32[16,32]{1,0:T(8,128)}', space=vmem, size = 0x2000, scoped, tag = 'scratch operand']
  %s0 = inlined_call_operand.vmem [shape: f32[16,2048], index: 0, kind: input, shape index: {}]
  %s1 = inlined_call_operand.vmem [shape: f32[2048,32], index: 1, kind: input, shape index: {}]
  %s2 = inlined_call_operand.vmem [shape: f32[1,32], index: 2, kind: input, shape index: {}]
  %s3 = inlined_call_operand.vmem [shape: f32[16,32], index: 3, kind: input, shape index: {}]
  %s4 = inlined_call_operand.vmem [shape: f32[1,32], index: 4, kind: input, shape index: {}]
  %s5 = inlined_call_operand.vmem [shape: f32[1,32], index: 5, kind: input, shape index: {}]
  %s6 = inlined_call_operand.vmem [shape: f32[16,32], index: 6, kind: output, shape index: {}]
  %s7 = sld [smem:[#allocation0]]
  $region88: #{_lambda_.20} parent=0
    _
  %s9 = ssub.s32 1, %s7
  %s10 = scalar_select 0, %s9, %s7
  $region1: #{_lambda_.20} parent=0
    #allocation3 [shape = 'u8[65536]{0}', space=vmem, size = 0x10000, scoped, tag = 'input window, operand 0']
    loop: start=0, step=1, limit=6
    $region2: #{_lambda_.20} parent=1 // loop_pre_header
      _
    $region3: #{_lambda_.20} parent=1 // loop_header
      %s12 = sphi 0, %s16
      %p13 = scmp.ge.s32.totalorder %s12, 6
      %s19 = sphi 0, %s31
      %s20 = sphi 0, %s27
      %s21 = sphi 0, %s19
      %s22 = sphi 0, %s20
      %s23 = sphi 0, %s21
      %s24 = sphi 0, %s22
      %s36 = sphi 0, %s38
      %s39 = sphi 0, %s36
      %s40 = sphi 0, %s39
      %s56 = sphi 0, %s40
      %s62 = sphi 0, %s64
      %s65 = sphi 0, %s62
      %s66 = sphi 0, %s65
      %s82 = sphi 0, %s66
      %s86 = sphi 0, %s86
      %s88 = sphi 0, %s86
      %s89 = sphi 0, %s88
      %s103 = sphi 0, %s89
      %s109 = sphi 0, %s111
      %s112 = sphi 0, %s109
      %s113 = sphi 0, %s112
      %s129 = sphi 0, %s113
      %s133 = sphi 0, %s133
      %s135 = sphi 0, %s133
      %s136 = sphi 0, %s135
      %s150 = sphi 0, %s136
      %s154 = sphi 0, %s154
      %s156 = sphi 0, %s154
      %s157 = sphi 0, %s156
      %s171 = sphi 0, %s157
      %s177 = sphi 0, %s179
      %s180 = sphi 0, %s177
      %s181 = sphi 0, %s180
      %s197 = sphi 0, %s181
    $region4: #{_lambda_.20} parent=1 // loop_header_branch
      %15 = sbr.rel (%p13) target = $region8
    $region5: #{_lambda_.20} parent=1 // loop_body
      %s17 = ssub.s32 %s12, 1
      %s18 = ssub.s32 %s12, 2
      %s25 = sadd.s32 1, %s20
      %p26 = scmp.ge.s32.totalorder %s25, 4
      %s27 = scalar_select %p26, 0, %s25
      %s28 = sadd.s32 1, %s19
      %s29 = scalar_select %p26, %s28, %s19
      %p30 = scmp.ge.s32.totalorder %s29, 1
      %s31 = scalar_select %p30, 0, %s29
      %s32 = ssub.s32 %s19, %s31
      %s33 = ssub.s32 %s20, %s27
      %s34 = sor.u32 %s32, %s33
      %p35 = scmp.eq.s32.totalorder %s34, 0
      %s37 = sadd.s32 %s36, 1
      %s38 = scalar_select %p35, %s36, %s37
      %p41 = pneg %p35
      %p42 = scmp.eq.s32.totalorder %s12, 3
      %p43 = por %p41, %p42
      %p44 = scmp.ne.s32.totalorder %s36, %s39
      %p45 = scmp.eq.s32.totalorder %s12, 0
      %p46 = por %p44, %p45
      %p47 = scmp.ne.s32.totalorder %s36, %s39
      %p48 = scmp.eq.s32.totalorder %s17, 3
      %p49 = por %p47, %p48
      %p50 = scmp.ne.s32.totalorder %s39, %s40
      %p51 = scmp.eq.s32.totalorder %s17, 0
      %p52 = por %p50, %p51
      %p53 = scmp.ne.s32.totalorder %s39, %s40
      %p54 = scmp.eq.s32.totalorder %s18, 3
      %p55 = por %p53, %p54
      %p57 = scmp.ne.s32.totalorder %s40, %s56
      %p58 = scmp.eq.s32.totalorder %s18, 0
      %p59 = por %p57, %p58
      %s60 = ssub.s32 %s20, %s27
      %p61 = scmp.eq.s32.totalorder %s60, 0
      %s63 = sadd.s32 %s62, 1
      %s64 = scalar_select %p61, %s62, %s63
      %p67 = pneg %p61
      %p68 = scmp.eq.s32.totalorder %s12, 3
      %p69 = por %p67, %p68
      %p70 = scmp.ne.s32.totalorder %s62, %s65
      %p71 = scmp.eq.s32.totalorder %s12, 0
      %p72 = por %p70, %p71
      %p73 = scmp.ne.s32.totalorder %s62, %s65
      %p74 = scmp.eq.s32.totalorder %s17, 3
      %p75 = por %p73, %p74
      %p76 = scmp.ne.s32.totalorder %s65, %s66
      %p77 = scmp.eq.s32.totalorder %s17, 0
      %p78 = por %p76, %p77
      %p79 = scmp.ne.s32.totalorder %s65, %s66
      %p80 = scmp.eq.s32.totalorder %s18, 3
      %p81 = por %p79, %p80
      %p83 = scmp.ne.s32.totalorder %s66, %s82
      %p84 = scmp.eq.s32.totalorder %s18, 0
      %p85 = por %p83, %p84
      %s87 = sadd.s32 %s86, 1
      %p90 = scmp.eq.s32.totalorder %s12, 3
      %p91 = scmp.ne.s32.totalorder %s86, %s88
      %p92 = scmp.eq.s32.totalorder %s12, 0
      %p93 = por %p91, %p92
      %p94 = scmp.ne.s32.totalorder %s86, %s88
      %p95 = scmp.eq.s32.totalorder %s17, 3
      %p96 = por %p94, %p95
      %p97 = scmp.ne.s32.totalorder %s88, %s89
      %p98 = scmp.eq.s32.totalorder %s17, 0
      %p99 = por %p97, %p98
      %p100 = scmp.ne.s32.totalorder %s88, %s89
      %p101 = scmp.eq.s32.totalorder %s18, 3
      %p102 = por %p100, %p101
      %p104 = scmp.ne.s32.totalorder %s89, %s103
      %p105 = scmp.eq.s32.totalorder %s18, 0
      %p106 = por %p104, %p105
      %s107 = ssub.s32 %s19, %s31
      %p108 = scmp.eq.s32.totalorder %s107, 0
      %s110 = sadd.s32 %s109, 1
      %s111 = scalar_select %p108, %s109, %s110
      %p114 = pneg %p108
      %p115 = scmp.eq.s32.totalorder %s12, 3
      %p116 = por %p114, %p115
      %p117 = scmp.ne.s32.totalorder %s109, %s112
      %p118 = scmp.eq.s32.totalorder %s12, 0
      %p119 = por %p117, %p118
      %p120 = scmp.ne.s32.totalorder %s109, %s112
      %p121 = scmp.eq.s32.totalorder %s17, 3
      %p122 = por %p120, %p121
      %p123 = scmp.ne.s32.totalorder %s112, %s113
      %p124 = scmp.eq.s32.totalorder %s17, 0
      %p125 = por %p123, %p124
      %p126 = scmp.ne.s32.totalorder %s112, %s113
      %p127 = scmp.eq.s32.totalorder %s18, 3
      %p128 = por %p126, %p127
      %p130 = scmp.ne.s32.totalorder %s113, %s129
      %p131 = scmp.eq.s32.totalorder %s18, 0
      %p132 = por %p130, %p131
      %s134 = sadd.s32 %s133, 1
      %p137 = scmp.eq.s32.totalorder %s12, 3
      %p138 = scmp.ne.s32.totalorder %s133, %s135
      %p139 = scmp.eq.s32.totalorder %s12, 0
      %p140 = por %p138, %p139
      %p141 = scmp.ne.s32.totalorder %s133, %s135
      %p142 = scmp.eq.s32.totalorder %s17, 3
      %p143 = por %p141, %p142
      %p144 = scmp.ne.s32.totalorder %s135, %s136
      %p145 = scmp.eq.s32.totalorder %s17, 0
      %p146 = por %p144, %p145
      %p147 = scmp.ne.s32.totalorder %s135, %s136
      %p148 = scmp.eq.s32.totalorder %s18, 3
      %p149 = por %p147, %p148
      %p151 = scmp.ne.s32.totalorder %s136, %s150
      %p152 = scmp.eq.s32.totalorder %s18, 0
      %p153 = por %p151, %p152
      %s155 = sadd.s32 %s154, 1
      %p158 = scmp.eq.s32.totalorder %s12, 3
      %p159 = scmp.ne.s32.totalorder %s154, %s156
      %p160 = scmp.eq.s32.totalorder %s12, 0
      %p161 = por %p159, %p160
      %p162 = scmp.ne.s32.totalorder %s154, %s156
      %p163 = scmp.eq.s32.totalorder %s17, 3
      %p164 = por %p162, %p163
      %p165 = scmp.ne.s32.totalorder %s156, %s157
      %p166 = scmp.eq.s32.totalorder %s17, 0
      %p167 = por %p165, %p166
      %p168 = scmp.ne.s32.totalorder %s156, %s157
      %p169 = scmp.eq.s32.totalorder %s18, 3
      %p170 = por %p168, %p169
      %p172 = scmp.ne.s32.totalorder %s157, %s171
      %p173 = scmp.eq.s32.totalorder %s18, 0
      %p174 = por %p172, %p173
      %s175 = ssub.s32 %s19, %s31
      %p176 = scmp.eq.s32.totalorder %s175, 0
      %s178 = sadd.s32 %s177, 1
      %s179 = scalar_select %p176, %s177, %s178
      %p182 = pneg %p176
      %p183 = scmp.eq.s32.totalorder %s12, 3
      %p184 = por %p182, %p183
      %p185 = scmp.ne.s32.totalorder %s177, %s180
      %p186 = scmp.eq.s32.totalorder %s12, 0
      %p187 = por %p185, %p186
      %p188 = scmp.ne.s32.totalorder %s177, %s180
      %p189 = scmp.eq.s32.totalorder %s17, 3
      %p190 = por %p188, %p189
      %p191 = scmp.ne.s32.totalorder %s180, %s181
      %p192 = scmp.eq.s32.totalorder %s17, 0
      %p193 = por %p191, %p192
      %p194 = scmp.ne.s32.totalorder %s180, %s181
      %p195 = scmp.eq.s32.totalorder %s18, 3
      %p196 = por %p194, %p195
      %p198 = scmp.ne.s32.totalorder %s181, %s197
      %p199 = scmp.eq.s32.totalorder %s18, 0
      %p200 = por %p198, %p199
      %p201 = scmp.le.s32.totalorder 1, %s12
      %p202 = scmp.lt.s32.totalorder %s12, 5
      %p203 = pnand %p201, %p202
      %p204 = pneg %p203
      // Predicated region
      $region9: #{_lambda_.20} parent=5 // pred_check
        _
      $region10: #{_lambda_.20} parent=5 // pred_check_branch
        %206 = sbr.rel (%p203) target = $region12
      $region11: #{_lambda_.20} parent=5 // pred_region
        %s207 = ssub.s32 %s12, 1
        // Predicated region
        $region13: #{_lambda_.20} parent=11 // pred_check
          %p208 = pneg %p99
        $region14: #{_lambda_.20} parent=11 // pred_check_branch
          %210 = sbr.rel (%p208) target = $region16
        $region15: #{_lambda_.20} parent=11 // pred_region
          _
        $region16: #{_lambda_.20} parent=11 // pred_fallthru
          _
        // Predicated region
        $region17: #{_lambda_.20} parent=11 // pred_check
          %p211 = pneg %p125
        $region18: #{_lambda_.20} parent=11 // pred_check_branch
          %213 = sbr.rel (%p211) target = $region20
        $region19: #{_lambda_.20} parent=11 // pred_region
          %s214 = smul.u32 2, %s21
          %p215 = scmp.lt.s32.totalorder %s214, 1
          %s216 = scalar_select %p215, %s214, 1
          %s217 = smul.addr %s216, 8
          %s218 = scalar_lea.vmem %s3, %s217
          %s219 = smul.u32 2, %s21
        $region20: #{_lambda_.20} parent=11 // pred_fallthru
          _
        // Predicated region
        $region21: #{_lambda_.20} parent=11 // pred_check
          %p220 = pneg %p146
        $region22: #{_lambda_.20} parent=11 // pred_check_branch
          %222 = sbr.rel (%p220) target = $region24
        $region23: #{_lambda_.20} parent=11 // pred_region
          _
        $region24: #{_lambda_.20} parent=11 // pred_fallthru
          _
        // Predicated region
        $region25: #{_lambda_.20} parent=11 // pred_check
          %p223 = pneg %p167
        $region26: #{_lambda_.20} parent=11 // pred_check_branch
          %225 = sbr.rel (%p223) target = $region28
        $region27: #{_lambda_.20} parent=11 // pred_region
          _
        $region28: #{_lambda_.20} parent=11 // pred_fallthru
          _
      $region12: #{_lambda_.20} parent=5 // pred_fallthru
        _
      %p226 = scmp.lt.s32.totalorder %s12, 4
      // Predicated region
      $region29: #{_lambda_.20} parent=5 // pred_check
        %p227 = pneg %p226
      $region30: #{_lambda_.20} parent=5 // pred_check_branch
        %229 = sbr.rel (%p227) target = $region32
      $region31: #{_lambda_.20} parent=5 // pred_region
        // Predicated region
        $region33: #{_lambda_.20} parent=31 // pred_check
          %p230 = pneg %p46
        $region34: #{_lambda_.20} parent=31 // pred_check_branch
          %232 = sbr.rel (%p230) target = $region36
        $region35: #{_lambda_.20} parent=31 // pred_region
          %s233 = sand.u32 %s36, 1
          %s234 = sand.u32 %s36, 1
          %s235 = smul.addr %s234, 64
          %s236 = scalar_lea.vmem [#allocation3], %s235
          %s237 = smul.u32 2, %s19
          %s238 = smul.u32 4, %s20
          %s239 = smul.addr %s237, 16
          %s240 = sadd.s32 %s238, %s239
          %s241 = smul.addr %s240, 8
          %s242 = scalar_lea.vmem %s0, %s241
          // Predicated region
          $region37: #{_lambda_.20} parent=35 // pred_check
            _
          $region38: #{_lambda_.20} parent=35 // pred_check_branch
            %244 = sbr.rel (0) target = $region40
          $region39: #{_lambda_.20} parent=35 // pred_region
            // Predicated region
            $region41: #{_lambda_.20} parent=39 // pred_check
              _
            $region42: #{_lambda_.20} parent=39 // pred_check_branch
              %246 = sbr.rel (0) target = $region44
            $region43: #{_lambda_.20} parent=39 // pred_region
              loop: start=0, step=1, limit=1
              $region45: #{_lambda_.20} parent=43 // loop_pre_header
                _
              $region46: #{_lambda_.20} parent=43 // loop_header
                %s248 = sphi 0, %s252
                %p249 = scmp.ge.s32.totalorder %s248, 1
                %s253 = sphi %s242, %s242
                %s254 = sphi %s236, %s236
              $region47: #{_lambda_.20} parent=43 // loop_header_branch
                %251 = sbr.rel (%p249) target = $region51
              $region48: #{_lambda_.20} parent=43 // loop_body
                %v255 = vld [vmem:[%s253] sm:$0xff]
                %256 = vst [vmem:[%s254] sm:$0xff] %v255
                %v257 = vld [vmem:[%s253 + $0x8] sm:$0xff]
                %258 = vst [vmem:[%s254 + $0x8] sm:$0xff] %v257
                %v259 = vld [vmem:[%s253 + $0x10] sm:$0xff]
                %260 = vst [vmem:[%s254 + $0x10] sm:$0xff] %v259
                %v261 = vld [vmem:[%s253 + $0x18] sm:$0xff]
                %262 = vst [vmem:[%s254 + $0x18] sm:$0xff] %v261
                %v263 = vld [vmem:[%s253 + $0x80] sm:$0xff]
                %264 = vst [vmem:[%s254 + $0x20] sm:$0xff] %v263
                %v265 = vld [vmem:[%s253 + $0x88] sm:$0xff]
                %266 = vst [vmem:[%s254 + $0x28] sm:$0xff] %v265
                %v267 = vld [vmem:[%s253 + $0x90] sm:$0xff]
                %268 = vst [vmem:[%s254 + $0x30] sm:$0xff] %v267
                %v269 = vld [vmem:[%s253 + $0x98] sm:$0xff]
                %270 = vst [vmem:[%s254 + $0x38] sm:$0xff] %v269
              $region49: #{_lambda_.20} parent=43 // loop_footer
                %s252 = sadd.s32 1, %s248
              $region50: #{_lambda_.20} parent=43 // loop_footer_branch
                %247 = sbr.rel target = $region46
              $region51: #{_lambda_.20} parent=43 // loop_exit
                _
            $region44: #{_lambda_.20} parent=39 // pred_fallthru
              _
            // Predicated region
            $region52: #{_lambda_.20} parent=39 // pred_check
              _
            $region53: #{_lambda_.20} parent=39 // pred_check_branch
              %272 = sbr.rel target = $region55
            $region54: #{_lambda_.20} parent=39 // pred_region
              _
            $region55: #{_lambda_.20} parent=39 // pred_fallthru
              _
          $region40: #{_lambda_.20} parent=35 // pred_fallthru
            _
          %273 = vnop
        $region36: #{_lambda_.20} parent=31 // pred_fallthru
          _
        // Predicated region
        $region56: #{_lambda_.20} parent=31 // pred_check
          %p274 = pneg %p72
        $region57: #{_lambda_.20} parent=31 // pred_check_branch
          %276 = sbr.rel (%p274) target = $region59
        $region58: #{_lambda_.20} parent=31 // pred_region
          %s277 = smul.u32 64, %s20
          %p278 = scmp.lt.s32.totalorder %s277, 255
          %s279 = scalar_select %p278, %s277, 255
          %s280 = smul.addr %s279, 8
          %s281 = scalar_lea.vmem %s1, %s280
          %s282 = smul.u32 64, %s20
        $region59: #{_lambda_.20} parent=31 // pred_fallthru
          _
      $region32: #{_lambda_.20} parent=5 // pred_fallthru
        _
      %p283 = scmp.le.s32.totalorder 1, %s12
      %p284 = scmp.lt.s32.totalorder %s12, 5
      %p285 = pnand %p283, %p284
      %p286 = pneg %p285
      // Predicated region
      $region60: #{_lambda_.20} parent=5 // pred_check
        _
      $region61: #{_lambda_.20} parent=5 // pred_check_branch
        %288 = sbr.rel (%p285) target = $region63
      $region62: #{_lambda_.20} parent=5 // pred_region
        %s289 = ssub.s32 %s12, 1
        %s290 = sand.u32 %s39, 1
        %s291 = sand.u32 %s39, 1
        %s292 = smul.addr %s291, 64
        %s293 = scalar_lea.vmem [#allocation3], %s292
        // Predicated region
        $region64: #{_lambda_.20} parent=62 // pred_check
          %p294 = pneg %p52
        $region65: #{_lambda_.20} parent=62 // pred_check_branch
          %296 = sbr.rel (%p294) target = $region67
        $region66: #{_lambda_.20} parent=62 // pred_region
          _
        $region67: #{_lambda_.20} parent=62 // pred_fallthru
          _
        %s297 = sand.u32 %s39, 1
        %s298 = sand.u32 %s39, 1
        %s299 = smul.addr %s298, 64
        %s300 = scalar_lea.vmem [#allocation3], %s299
        %p301 = pneg %p52
        %p302 = pneg %p49
        %s303 = smul.u32 64, %s22
        %p304 = scmp.lt.s32.totalorder %s303, 255
        %s305 = scalar_select %p304, %s303, 255
        %s306 = smul.addr %s305, 8
        %s307 = scalar_lea.vmem %s1, %s306
        %p308 = pneg %p78
        %p309 = pneg %p75
        %p310 = pneg %p99
        %p311 = pneg %p96
        %s312 = smul.u32 2, %s21
        %p313 = scmp.lt.s32.totalorder %s312, 1
        %s314 = scalar_select %p313, %s312, 1
        %s315 = smul.addr %s314, 8
        %s316 = scalar_lea.vmem %s3, %s315
        %p317 = pneg %p125
        %p318 = pneg %p122
        %p319 = pneg %p146
        %p320 = pneg %p143
        %p321 = pneg %p167
        %p322 = pneg %p164
        %p323 = pneg %p193
        %p324 = pneg %p190
        %s325 = smul.u32 2, %s21
        %p326 = scmp.lt.s32.totalorder %s325, 1
        %s327 = scalar_select %p326, %s325, 1
        %s328 = smul.addr %s327, 8
        %s329 = scalar_lea.vmem %s6, %s328
        %s330 = smul.u32 2, %s21
        %s331 = smul.u32 4, %s22
        %s332 = smul.u32 64, %s22
        %p333 = scmp.lt.s32.totalorder %s332, 255
        %s334 = scalar_select %p333, %s332, 255
        %s335 = smul.addr %s334, 8
        %s336 = scalar_lea.vmem %s1, %s335
        %s337 = smul.u32 64, %s22
        %s338 = smul.u32 2, %s21
        %p339 = scmp.lt.s32.totalorder %s338, 1
        %s340 = scalar_select %p339, %s338, 1
        %s341 = smul.addr %s340, 8
        %s342 = scalar_lea.vmem %s3, %s341
        %s343 = smul.u32 2, %s21
        %s344 = smul.u32 2, %s21
        %p345 = scmp.lt.s32.totalorder %s344, 1
        %s346 = scalar_select %p345, %s344, 1
        %s347 = smul.addr %s346, 8
        %s348 = scalar_lea.vmem %s6, %s347
        %s349 = smul.u32 2, %s21
        %p350 = scmp.eq.s32.totalorder %s22, 0
        // Predicated region
        $region68: #{_lambda_.20} parent=62 // pred_check
          %p351 = pneg %p350
        $region69: #{_lambda_.20} parent=62 // pred_check_branch
          %353 = sbr.rel (%p351) target = $region71
        $region70: #{_lambda_.20} parent=62 // pred_region
          %vm354 = vcmask 261120
          %355 = vst.msk [vmem:[#allocation2] sm:$0xff] %vm354, 0.0
          %356 = vst.msk [vmem:[#allocation2 + $0x8] sm:$0xff] %vm354, 0.0
        $region71: #{_lambda_.20} parent=62 // pred_fallthru
          _
        %v357 = vld [vmem:[#allocation2] sm:$0xff]
        %v358 = vld [vmem:[#allocation2 + $0x8] sm:$0xff]
        %v359 = vld [vmem:[%s293] sm:$0xff]
        %v360 = vld [vmem:[%s293 + $0x8] sm:$0xff]
        %v361 = vld [vmem:[%s293 + $0x10] sm:$0xff]
        %v362 = vld [vmem:[%s293 + $0x18] sm:$0xff]
        %v363 = vld [vmem:[%s293 + $0x20] sm:$0xff]
        %v364 = vld [vmem:[%s293 + $0x28] sm:$0xff]
        %v365 = vld [vmem:[%s293 + $0x30] sm:$0xff]
        %v366 = vld [vmem:[%s293 + $0x38] sm:$0xff]
        %v367 = vld [vmem:[%s336] sm:$0xff]
        %v368 = vld [vmem:[%s336 + $0x8] sm:$0xff]
        %v369 = vld [vmem:[%s336 + $0x10] sm:$0xff]
        %v370 = vld [vmem:[%s336 + $0x18] sm:$0xff]
        %v371 = vld [vmem:[%s336 + $0x20] sm:$0xff]
        %v372 = vld [vmem:[%s336 + $0x28] sm:$0xff]
        %v373 = vld [vmem:[%s336 + $0x30] sm:$0xff]
        %v374 = vld [vmem:[%s336 + $0x38] sm:$0xff]
        %v375 = vld [vmem:[%s336 + $0x40] sm:$0xff]
        %v376 = vld [vmem:[%s336 + $0x48] sm:$0xff]
        %v377 = vld [vmem:[%s336 + $0x50] sm:$0xff]
        %v378 = vld [vmem:[%s336 + $0x58] sm:$0xff]
        %v379 = vld [vmem:[%s336 + $0x60] sm:$0xff]
        %v380 = vld [vmem:[%s336 + $0x68] sm:$0xff]
        %v381 = vld [vmem:[%s336 + $0x70] sm:$0xff]
        %v382 = vld [vmem:[%s336 + $0x78] sm:$0xff]
        %v383 = vld [vmem:[%s336 + $0x80] sm:$0xff]
        %v384 = vld [vmem:[%s336 + $0x88] sm:$0xff]
        %v385 = vld [vmem:[%s336 + $0x90] sm:$0xff]
        %v386 = vld [vmem:[%s336 + $0x98] sm:$0xff]
        %v387 = vld [vmem:[%s336 + $0xa0] sm:$0xff]
        %v388 = vld [vmem:[%s336 + $0xa8] sm:$0xff]
        %v389 = vld [vmem:[%s336 + $0xb0] sm:$0xff]
        %v390 = vld [vmem:[%s336 + $0xb8] sm:$0xff]
        %v391 = vld [vmem:[%s336 + $0xc0] sm:$0xff]
        %v392 = vld [vmem:[%s336 + $0xc8] sm:$0xff]
        %v393 = vld [vmem:[%s336 + $0xd0] sm:$0xff]
        %v394 = vld [vmem:[%s336 + $0xd8] sm:$0xff]
        %v395 = vld [vmem:[%s336 + $0xe0] sm:$0xff]
        %v396 = vld [vmem:[%s336 + $0xe8] sm:$0xff]
        %v397 = vld [vmem:[%s336 + $0xf0] sm:$0xff]
        %v398 = vld [vmem:[%s336 + $0xf8] sm:$0xff]
        %v399 = vld [vmem:[%s336 + $0x100] sm:$0xff]
        %v400 = vld [vmem:[%s336 + $0x108] sm:$0xff]
        %v401 = vld [vmem:[%s336 + $0x110] sm:$0xff]
        %v402 = vld [vmem:[%s336 + $0x118] sm:$0xff]
        %v403 = vld [vmem:[%s336 + $0x120] sm:$0xff]
        %v404 = vld [vmem:[%s336 + $0x128] sm:$0xff]
        %v405 = vld [vmem:[%s336 + $0x130] sm:$0xff]
        %v406 = vld [vmem:[%s336 + $0x138] sm:$0xff]
        %v407 = vld [vmem:[%s336 + $0x140] sm:$0xff]
        %v408 = vld [vmem:[%s336 + $0x148] sm:$0xff]
        %v409 = vld [vmem:[%s336 + $0x150] sm:$0xff]
        %v410 = vld [vmem:[%s336 + $0x158] sm:$0xff]
        %v411 = vld [vmem:[%s336 + $0x160] sm:$0xff]
        %v412 = vld [vmem:[%s336 + $0x168] sm:$0xff]
        %v413 = vld [vmem:[%s336 + $0x170] sm:$0xff]
        %v414 = vld [vmem:[%s336 + $0x178] sm:$0xff]
        %v415 = vld [vmem:[%s336 + $0x180] sm:$0xff]
        %v416 = vld [vmem:[%s336 + $0x188] sm:$0xff]
        %v417 = vld [vmem:[%s336 + $0x190] sm:$0xff]
        %v418 = vld [vmem:[%s336 + $0x198] sm:$0xff]
        %v419 = vld [vmem:[%s336 + $0x1a0] sm:$0xff]
        %v420 = vld [vmem:[%s336 + $0x1a8] sm:$0xff]
        %v421 = vld [vmem:[%s336 + $0x1b0] sm:$0xff]
        %v422 = vld [vmem:[%s336 + $0x1b8] sm:$0xff]
        %v423 = vld [vmem:[%s336 + $0x1c0] sm:$0xff]
        %v424 = vld [vmem:[%s336 + $0x1c8] sm:$0xff]
        %v425 = vld [vmem:[%s336 + $0x1d0] sm:$0xff]
        %v426 = vld [vmem:[%s336 + $0x1d8] sm:$0xff]
        %v427 = vld [vmem:[%s336 + $0x1e0] sm:$0xff]
        %v428 = vld [vmem:[%s336 + $0x1e8] sm:$0xff]
        %v429 = vld [vmem:[%s336 + $0x1f0] sm:$0xff]
        %v430 = vld [vmem:[%s336 + $0x1f8] sm:$0xff]
        %431 = vmatprep.subr.mxu0 0.0
        %432 = vmatpush1.msra.mxu0 %v382
        %433 = vmatprep.subr.mxu0 0.0
        %434 = vmatpush1.msra.mxu0 %v381
        %435 = vmatprep.subr.mxu0 0.0
        %436 = vmatpush1.msra.mxu0 %v380
        %437 = vmatprep.subr.mxu0 0.0
        %438 = vmatpush1.msra.mxu0 %v379
        %439 = vmatprep.subr.mxu0 0.0
        %440 = vmatpush1.msra.mxu0 %v378
        %441 = vmatprep.subr.mxu0 0.0
        %442 = vmatpush1.msra.mxu0 %v377
        %443 = vmatprep.subr.mxu0 0.0
        %444 = vmatpush1.msra.mxu0 %v376
        %445 = vmatprep.subr.mxu0 0.0
        %446 = vmatpush1.msra.mxu0 %v375
        %447 = vmatprep.subr.mxu0 0.0
        %448 = vmatpush1.msra.mxu0 %v374
        %449 = vmatprep.subr.mxu0 0.0
        %450 = vmatpush1.msra.mxu0 %v373
        %451 = vmatprep.subr.mxu0 0.0
        %452 = vmatpush1.msra.mxu0 %v372
        %453 = vmatprep.subr.mxu0 0.0
        %454 = vmatpush1.msra.mxu0 %v371
        %455 = vmatprep.subr.mxu0 0.0
        %456 = vmatpush1.msra.mxu0 %v370
        %457 = vmatprep.subr.mxu0 0.0
        %458 = vmatpush1.msra.mxu0 %v369
        %459 = vmatprep.subr.mxu0 0.0
        %460 = vmatpush1.msra.mxu0 %v368
        %461 = vmatprep.subr.mxu0 0.0
        %462 = vmatpush1.msra.mxu0 %v367
        %463 = vmatprep.subr.mxu0 0.0
        %464 = vmatpush2.msra.mxu0 %v398
        %465 = vmatprep.subr.mxu0 0.0
        %466 = vmatpush2.msra.mxu0 %v397
        %467 = vmatprep.subr.mxu0 0.0
        %468 = vmatpush2.msra.mxu0 %v396
        %469 = vmatprep.subr.mxu0 0.0
        %470 = vmatpush2.msra.mxu0 %v395
        %471 = vmatprep.subr.mxu0 0.0
        %472 = vmatpush2.msra.mxu0 %v394
        %473 = vmatprep.subr.mxu0 0.0
        %474 = vmatpush2.msra.mxu0 %v393
        %475 = vmatprep.subr.mxu0 0.0
        %476 = vmatpush2.msra.mxu0 %v392
        %477 = vmatprep.subr.mxu0 0.0
        %478 = vmatpush2.msra.mxu0 %v391
        %479 = vmatprep.subr.mxu0 0.0
        %480 = vmatpush2.msra.mxu0 %v390
        %481 = vmatprep.subr.mxu0 0.0
        %482 = vmatpush2.msra.mxu0 %v389
        %483 = vmatprep.subr.mxu0 0.0
        %484 = vmatpush2.msra.mxu0 %v388
        %485 = vmatprep.subr.mxu0 0.0
        %486 = vmatpush2.msra.mxu0 %v387
        %487 = vmatprep.subr.mxu0 0.0
        %488 = vmatpush2.msra.mxu0 %v386
        %489 = vmatprep.subr.mxu0 0.0
        %490 = vmatpush2.msra.mxu0 %v385
        %491 = vmatprep.subr.mxu0 0.0
        %492 = vmatpush2.msra.mxu0 %v384
        %493 = vmatprep.subr.mxu0 0.0
        %494 = vmatpush2.msra.mxu0 %v383
        %495 = vmatprep.mubr.f32.mxu0 %v360
        %496 = vmatmul.mubr.f32.gmra.mxu0 %v359
        %v497 = vpop.f32.mrf.mxu0
        %v498 = vadd.f32 0.0, %v497
        %v499 = vpop.f32.mrf.mxu0
        %500 = vmatprep.mubr.f32.mxu0 %v364
        %501 = vmatmul.mubr.f32.gmra.mxu0 %v363
        %v502 = vpop.f32.mrf.mxu0
        %v503 = vadd.f32 0.0, %v502
        %v504 = vpop.f32.mrf.mxu0
        %505 = vdwg.mxu0
        %506 = vmatprep.subr.mxu0 0.0
        %507 = vmatpush1.msra.mxu0 %v414
        %508 = vmatprep.subr.mxu0 0.0
        %509 = vmatpush1.msra.mxu0 %v413
        %510 = vmatprep.subr.mxu0 0.0
        %511 = vmatpush1.msra.mxu0 %v412
        %512 = vmatprep.subr.mxu0 0.0
        %513 = vmatpush1.msra.mxu0 %v411
        %514 = vmatprep.subr.mxu0 0.0
        %515 = vmatpush1.msra.mxu0 %v410
        %516 = vmatprep.subr.mxu0 0.0
        %517 = vmatpush1.msra.mxu0 %v409
        %518 = vmatprep.subr.mxu0 0.0
        %519 = vmatpush1.msra.mxu0 %v408
        %520 = vmatprep.subr.mxu0 0.0
        %521 = vmatpush1.msra.mxu0 %v407
        %522 = vmatprep.subr.mxu0 0.0
        %523 = vmatpush1.msra.mxu0 %v406
        %524 = vmatprep.subr.mxu0 0.0
        %525 = vmatpush1.msra.mxu0 %v405
        %526 = vmatprep.subr.mxu0 0.0
        %527 = vmatpush1.msra.mxu0 %v404
        %528 = vmatprep.subr.mxu0 0.0
        %529 = vmatpush1.msra.mxu0 %v403
        %530 = vmatprep.subr.mxu0 0.0
        %531 = vmatpush1.msra.mxu0 %v402
        %532 = vmatprep.subr.mxu0 0.0
        %533 = vmatpush1.msra.mxu0 %v401
        %534 = vmatprep.subr.mxu0 0.0
        %535 = vmatpush1.msra.mxu0 %v400
        %536 = vmatprep.subr.mxu0 0.0
        %537 = vmatpush1.msra.mxu0 %v399
        %538 = vmatprep.subr.mxu0 0.0
        %539 = vmatpush2.msra.mxu0 %v430
        %540 = vmatprep.subr.mxu0 0.0
        %541 = vmatpush2.msra.mxu0 %v429
        %542 = vmatprep.subr.mxu0 0.0
        %543 = vmatpush2.msra.mxu0 %v428
        %544 = vmatprep.subr.mxu0 0.0
        %545 = vmatpush2.msra.mxu0 %v427
        %546 = vmatprep.subr.mxu0 0.0
        %547 = vmatpush2.msra.mxu0 %v426
        %548 = vmatprep.subr.mxu0 0.0
        %549 = vmatpush2.msra.mxu0 %v425
        %550 = vmatprep.subr.mxu0 0.0
        %551 = vmatpush2.msra.mxu0 %v424
        %552 = vmatprep.subr.mxu0 0.0
        %553 = vmatpush2.msra.mxu0 %v423
        %554 = vmatprep.subr.mxu0 0.0
        %555 = vmatpush2.msra.mxu0 %v422
        %556 = vmatprep.subr.mxu0 0.0
        %557 = vmatpush2.msra.mxu0 %v421
        %558 = vmatprep.subr.mxu0 0.0
        %559 = vmatpush2.msra.mxu0 %v420
        %560 = vmatprep.subr.mxu0 0.0
        %561 = vmatpush2.msra.mxu0 %v419
        %562 = vmatprep.subr.mxu0 0.0
        %563 = vmatpush2.msra.mxu0 %v418
        %564 = vmatprep.subr.mxu0 0.0
        %565 = vmatpush2.msra.mxu0 %v417
        %566 = vmatprep.subr.mxu0 0.0
        %567 = vmatpush2.msra.mxu0 %v416
        %568 = vmatprep.subr.mxu0 0.0
        %569 = vmatpush2.msra.mxu0 %v415
        %570 = vmatprep.mubr.f32.mxu0 %v362
        %571 = vmatmul.mubr.f32.gmra.mxu0 %v361
        %v572 = vpop.f32.mrf.mxu0
        %v573 = vadd.f32 %v498, %v572
        %v574 = vpop.f32.mrf.mxu0
        %575 = vmatprep.mubr.f32.mxu0 %v366
        %576 = vmatmul.mubr.f32.gmra.mxu0 %v365
        %v577 = vpop.f32.mrf.mxu0
        %v578 = vadd.f32 %v503, %v577
        %v579 = vpop.f32.mrf.mxu0
        %580 = vdwg.mxu0
        %v581 = vadd.f32 %v357, %v573
        %v582 = vadd.f32 %v358, %v578
        %vm583 = vcmask 261120
        %584 = vst.msk [vmem:[#allocation2] sm:$0xff] %vm583, %v581
        %585 = vst.msk [vmem:[#allocation2 + $0x8] sm:$0xff] %vm583, %v582
        %p586 = scmp.eq.s32.totalorder %s22, 3
        // Predicated region
        $region72: #{_lambda_.20} parent=62 // pred_check
          %p587 = pneg %p586
        $region73: #{_lambda_.20} parent=62 // pred_check_branch
          %589 = sbr.rel (%p587) target = $region75
        $region74: #{_lambda_.20} parent=62 // pred_region
          %v590 = vld [vmem:[#allocation2] sm:$0xff]
          %v591 = vld [vmem:[#allocation2 + $0x8] sm:$0xff]
          %v592 = vld [vmem:[%s2] sm:$0x1]
          %v594 = vlaneseq
          %v595 = vshrl.u32 %v594, 7
          %v596 = vsub.s32 0, %v595
          %v597 = vrot.slane %v592, %v596
          %v599 = vadd.f32 %v590, %v597
          %v600 = vadd.f32 %v591, %v597
          %v601 = vld [vmem:[%s342] sm:$0xff]
          %v602 = vld [vmem:[%s342 + $0x8] sm:$0xff]
          %v603 = vadd.f32 %v599, %v601
          %v604 = vadd.f32 %v600, %v602
          %v605 = vsel %vm583, %v603, 0.0
          %606 = vadd.xlane.f32.xlu0 %v605
          %v607 = vpop.xlane.xlu0 %606
          %v608 = vsel %vm583, %v604, 0.0
          %609 = vadd.xlane.f32.xlu0 %v608
          %v610 = vpop.xlane.xlu0 %609
          %v611 = vrcp.pop 32.0
          %v612 = vmul.f32 %v607, %v611
          %v613 = vmul.f32 %v610, %v611
          %v614 = vsub.f32 %v603, %v612
          %v615 = vsub.f32 %v604, %v613
          %v616 = vmul.f32 %v614, %v614
          %v617 = vmul.f32 %v615, %v615
          %v618 = vsel %vm583, %v616, 0.0
          %619 = vadd.xlane.f32.xlu0 %v618
          %v620 = vpop.xlane.xlu0 %619
          %v621 = vsel %vm583, %v617, 0.0
          %622 = vadd.xlane.f32.xlu0 %v621
          %v623 = vpop.xlane.xlu0 %622
          %v624 = vmul.f32 %v620, %v611
          %v625 = vmul.f32 %v623, %v611
          %v626 = vadd.f32 %v624, 1e-05
          %v627 = vadd.f32 %v625, 1e-05
          %v628 = vrsqrt.pop %v626
          %v629 = vrsqrt.pop %v627
          %v630 = vmul.f32 %v614, %v628
          %v631 = vmul.f32 %v615, %v629
          %v632 = vld [vmem:[%s4] sm:$0x1]
          %v634 = vlaneseq
          %v635 = vshrl.u32 %v634, 7
          %v636 = vsub.s32 0, %v635
          %v637 = vrot.slane %v632, %v636
          %v639 = vmul.f32 %v630, %v637
          %v640 = vmul.f32 %v631, %v637
          %v641 = vld [vmem:[%s5] sm:$0x1]
          %v643 = vlaneseq
          %v644 = vshrl.u32 %v643, 7
          %v645 = vsub.s32 0, %v644
          %v646 = vrot.slane %v641, %v645
          %v648 = vadd.f32 %v639, %v646
          %v649 = vadd.f32 %v640, %v646
          %650 = vst.msk [vmem:[%s348] sm:$0xff] %vm583, %v648
          %651 = vst.msk [vmem:[%s348 + $0x8] sm:$0xff] %vm583, %v649
        $region75: #{_lambda_.20} parent=62 // pred_fallthru
          _
        %s652 = smul.u32 2, %s21
        %p653 = scmp.lt.s32.totalorder %s652, 1
        %s654 = scalar_select %p653, %s652, 1
        %s655 = smul.addr %s654, 8
        %s656 = scalar_lea.vmem %s6, %s655
        // Predicated region
        $region76: #{_lambda_.20} parent=62 // pred_check
          %p657 = pneg %p190
        $region77: #{_lambda_.20} parent=62 // pred_check_branch
          %659 = sbr.rel (%p657) target = $region79
        $region78: #{_lambda_.20} parent=62 // pred_region
          %s660 = smul.u32 2, %s21
        $region79: #{_lambda_.20} parent=62 // pred_fallthru
          _
        // Predicated region
        $region80: #{_lambda_.20} parent=62 // pred_check
          %p661 = pneg %p190
        $region81: #{_lambda_.20} parent=62 // pred_check_branch
          %663 = sbr.rel (%p661) target = $region83
        $region82: #{_lambda_.20} parent=62 // pred_region
          %s664 = smul.u32 2, %s21
          %p665 = scmp.lt.s32.totalorder %s664, 1
          %s666 = scalar_select %p665, %s664, 1
          %s667 = smul.addr %s666, 8
          %s668 = scalar_lea.vmem %s6, %s667
        $region83: #{_lambda_.20} parent=62 // pred_fallthru
          _
      $region63: #{_lambda_.20} parent=5 // pred_fallthru
        _
      %p669 = scmp.le.s32.totalorder 2, %s12
      // Predicated region
      $region84: #{_lambda_.20} parent=5 // pred_check
        %p670 = pneg %p669
      $region85: #{_lambda_.20} parent=5 // pred_check_branch
        %672 = sbr.rel (%p670) target = $region87
      $region86: #{_lambda_.20} parent=5 // pred_region
        %s673 = ssub.s32 %s12, 2
      $region87: #{_lambda_.20} parent=5 // pred_fallthru
        _
    $region6: #{_lambda_.20} parent=1 // loop_footer
      %s16 = sadd.s32 1, %s12
    $region7: #{_lambda_.20} parent=1 // loop_footer_branch
      %11 = sbr.rel target = $region3
    $region8: #{_lambda_.20} parent=1 // loop_exit
      _

// kernel: _lambda_.31
$region0: #{_lambda_.31}
  #allocation0 [shape = 'u32[]', space=smem, size = 0x4, offset = 0x4, fixed_abs, tag = 'smem constant byte address 0x4 - core index']
  #allocation1 [shape = 'u32[144,128]{1,0:T(1,128)}', space=vmem, size = 0x12000, scoped, tag = 'internal scratch']
  %s0 = inlined_call_operand.vmem [shape: f32[16,32], index: 0, kind: input, shape index: {}]
  %s1 = inlined_call_operand.vmem [shape: f32[1,32], index: 1, kind: input, shape index: {}]
  %s2 = inlined_call_operand.vmem [shape: f32[1,32], index: 2, kind: input, shape index: {}]
  %s3 = inlined_call_operand.hbm [shape: f32[16,32], index: 3, kind: output, shape index: {}]
  %s4 = sld [smem:[#allocation0]]
  $region22: #{_lambda_.31} parent=0
    _
  %s6 = ssub.s32 1, %s4
  %s7 = scalar_select 0, %s6, %s4
  $region1: #{_lambda_.31} parent=0
    #allocation2 [shape = 'u8[8192]{0}', space=vmem, size = 0x2000, scoped, tag = 'output window, operand 0, single buffered']
    #allocation3 [shape = 's32[1]{0}', space=sflag, size = 0x4, scoped, tag = 'scoped memory for _lambda_.31']
    %8 = vsyncpa [#allocation3], 0
    // Predicated region
    $region2: #{_lambda_.31} parent=1 // pred_check
      _
    $region3: #{_lambda_.31} parent=1 // pred_check_branch
      %10 = sbr.rel (0) target = $region5
    $region4: #{_lambda_.31} parent=1 // pred_region
      _
    $region5: #{_lambda_.31} parent=1 // pred_fallthru
      _
    // Predicated region
    $region6: #{_lambda_.31} parent=1 // pred_check
      _
    $region7: #{_lambda_.31} parent=1 // pred_check_branch
      %12 = sbr.rel (0) target = $region9
    $region8: #{_lambda_.31} parent=1 // pred_region
      _
    $region9: #{_lambda_.31} parent=1 // pred_fallthru
      _
    // Predicated region
    $region10: #{_lambda_.31} parent=1 // pred_check
      _
    $region11: #{_lambda_.31} parent=1 // pred_check_branch
      %14 = sbr.rel (0) target = $region13
    $region12: #{_lambda_.31} parent=1 // pred_region
      _
    $region13: #{_lambda_.31} parent=1 // pred_fallthru
      _
    %v15 = vld [vmem:[%s0] sm:$0xff]
    %v16 = vld [vmem:[%s0 + $0x8] sm:$0xff]
    %vm17 = vcmask 261120
    %v18 = vsel %vm17, %v15, 0.0
    %19 = vadd.xlane.f32.xlu0 %v18
    %v20 = vpop.xlane.xlu0 %19
    %v21 = vsel %vm17, %v16, 0.0
    %22 = vadd.xlane.f32.xlu0 %v21
    %v23 = vpop.xlane.xlu0 %22
    %v24 = vrcp.pop 32.0
    %v25 = vmul.f32 %v20, %v24
    %v26 = vmul.f32 %v23, %v24
    %v27 = vsub.f32 %v15, %v25
    %v28 = vsub.f32 %v16, %v26
    %v29 = vmul.f32 %v27, %v27
    %v30 = vmul.f32 %v28, %v28
    %v31 = vsel %vm17, %v29, 0.0
    %32 = vadd.xlane.f32.xlu0 %v31
    %v33 = vpop.xlane.xlu0 %32
    %v34 = vsel %vm17, %v30, 0.0
    %35 = vadd.xlane.f32.xlu0 %v34
    %v36 = vpop.xlane.xlu0 %35
    %v37 = vmul.f32 %v33, %v24
    %v38 = vmul.f32 %v36, %v24
    %v39 = vadd.f32 %v37, 1e-05
    %v40 = vadd.f32 %v38, 1e-05
    %v41 = vrsqrt.pop %v39
    %v42 = vrsqrt.pop %v40
    %v43 = vmul.f32 %v27, %v41
    %v44 = vmul.f32 %v28, %v42
    %v45 = vld [vmem:[%s1] sm:$0x1]
    %v47 = vlaneseq
    %v48 = vshrl.u32 %v47, 7
    %v49 = vsub.s32 0, %v48
    %v50 = vrot.slane %v45, %v49
    %v52 = vmul.f32 %v43, %v50
    %v53 = vmul.f32 %v44, %v50
    %v54 = vld [vmem:[%s2] sm:$0x1]
    %v56 = vlaneseq
    %v57 = vshrl.u32 %v56, 7
    %v58 = vsub.s32 0, %v57
    %v59 = vrot.slane %v54, %v58
    %v61 = vadd.f32 %v52, %v59
    %v62 = vadd.f32 %v53, %v59
    %63 = vst.msk [vmem:[#allocation2] sm:$0xff] %vm17, %v61
    %64 = vst.msk [vmem:[#allocation2 + $0x8] sm:$0xff] %vm17, %v62
    // Predicated region
    $region14: #{_lambda_.31} parent=1 // pred_check
      _
    $region15: #{_lambda_.31} parent=1 // pred_check_branch
      %66 = sbr.rel (0) target = $region17
    $region16: #{_lambda_.31} parent=1 // pred_region
      %s68 = ssub.s32 256, 256
      %69 = vsyncadd [#allocation3], %s68
      %s70 = sshll.u32 [#allocation2], 4
      %s71 = int_to_ptr.vmem [resolvable:$true] %s70
      %76 = dma.vmem_to_hbm [thread:$0]  %s71, 256, %s3, [#allocation3], 128, 128, 8
    $region17: #{_lambda_.31} parent=1 // pred_fallthru
      _
    // Predicated region
    $region18: #{_lambda_.31} parent=1 // pred_check
      _
    $region19: #{_lambda_.31} parent=1 // pred_check_branch
      %78 = sbr.rel (0) target = $region21
    $region20: #{_lambda_.31} parent=1 // pred_region
      %79 = dma.done [#allocation3], 256
    $region21: #{_lambda_.31} parent=1 // pred_fallthru
      _
    %80 = vsyncpa [#allocation3], 1

// kernel: _lambda_.25
$region0: #{_lambda_.25}
  #allocation0 [shape = 'u32[]', space=smem, size = 0x4, offset = 0x4, fixed_abs, tag = 'smem constant byte address 0x4 - core index']
  #allocation1 [shape = 'u32[144,128]{1,0:T(1,128)}', space=vmem, size = 0x12000, scoped, tag = 'internal scratch']
  #allocation2 [shape = 'f32[16,32]{1,0:T(8,128)}', space=vmem, size = 0x2000, scoped, tag = 'scratch operand']
  %s0 = inlined_call_operand.vmem [shape: f32[16,32], index: 0, kind: input, shape index: {}]
  %s1 = inlined_call_operand.vmem [shape: f32[32,32], index: 1, kind: input, shape index: {}]
  %s2 = inlined_call_operand.vmem [shape: f32[1,32], index: 2, kind: input, shape index: {}]
  %s3 = inlined_call_operand.vmem [shape: f32[16,32], index: 3, kind: output, shape index: {}]
  %s4 = sld [smem:[#allocation0]]
  $region30: #{_lambda_.25} parent=0
    _
  %s6 = ssub.s32 1, %s4
  %s7 = scalar_select 0, %s6, %s4
  // Predicated region
  $region2: #{_lambda_.25} parent=0 // pred_check
    _
  $region3: #{_lambda_.25} parent=0 // pred_check_branch
    %9 = sbr.rel (0) target = $region5
  $region4: #{_lambda_.25} parent=0 // pred_region
    _
  $region5: #{_lambda_.25} parent=0 // pred_fallthru
    _
  // Predicated region
  $region6: #{_lambda_.25} parent=0 // pred_check
    _
  $region7: #{_lambda_.25} parent=0 // pred_check_branch
    %11 = sbr.rel (0) target = $region9
  $region8: #{_lambda_.25} parent=0 // pred_region
    _
  $region9: #{_lambda_.25} parent=0 // pred_fallthru
    _
  // Predicated region
  $region10: #{_lambda_.25} parent=0 // pred_check
    _
  $region11: #{_lambda_.25} parent=0 // pred_check_branch
    %13 = sbr.rel (0) target = $region13
  $region12: #{_lambda_.25} parent=0 // pred_region
    _
  $region13: #{_lambda_.25} parent=0 // pred_fallthru
    _
  %p14 = scmp.eq.s32.totalorder 0, 0
  // Predicated region
  $region14: #{_lambda_.25} parent=0 // pred_check
    %p15 = pneg %p14
  $region15: #{_lambda_.25} parent=0 // pred_check_branch
    %17 = sbr.rel (%p15) target = $region17
  $region16: #{_lambda_.25} parent=0 // pred_region
    %vm18 = vcmask 261120
    %19 = vst.msk [vmem:[#allocation2] sm:$0xff] %vm18, 0.0
    %20 = vst.msk [vmem:[#allocation2 + $0x8] sm:$0xff] %vm18, 0.0
  $region17: #{_lambda_.25} parent=0 // pred_fallthru
    _
  %v21 = vld [vmem:[#allocation2] sm:$0xff]
  %v22 = vld [vmem:[#allocation2 + $0x8] sm:$0xff]
  %v23 = vld [vmem:[%s0] sm:$0xff]
  %v24 = vld [vmem:[%s0 + $0x8] sm:$0xff]
  %v25 = vld [vmem:[%s1] sm:$0xff]
  %v26 = vld [vmem:[%s1 + $0x8] sm:$0xff]
  %v27 = vld [vmem:[%s1 + $0x10] sm:$0xff]
  %v28 = vld [vmem:[%s1 + $0x18] sm:$0xff]
  %vm29 = vcmask 261120
  %v31 = vsel %vm29, %v23, 0
  %v34 = vsel %vm29, %v24, 0
  %36 = vmatprep.subr.mxu0 0.0
  %37 = vmatpush1.msra.mxu0 0.0
  %38 = vmatprep.subr.mxu0 0.0
  %39 = vmatpush1.msra.mxu0 0.0
  %40 = vmatprep.subr.mxu0 0.0
  %41 = vmatpush1.msra.mxu0 0.0
  %42 = vmatprep.subr.mxu0 0.0
  %43 = vmatpush1.msra.mxu0 0.0
  %44 = vmatprep.subr.mxu0 0.0
  %45 = vmatpush1.msra.mxu0 0.0
  %46 = vmatprep.subr.mxu0 0.0
  %47 = vmatpush1.msra.mxu0 0.0
  %48 = vmatprep.subr.mxu0 0.0
  %49 = vmatpush1.msra.mxu0 0.0
  %50 = vmatprep.subr.mxu0 0.0
  %51 = vmatpush1.msra.mxu0 0.0
  %52 = vmatprep.subr.mxu0 0.0
  %53 = vmatpush1.msra.mxu0 0.0
  %54 = vmatprep.subr.mxu0 0.0
  %55 = vmatpush1.msra.mxu0 0.0
  %56 = vmatprep.subr.mxu0 0.0
  %57 = vmatpush1.msra.mxu0 0.0
  %58 = vmatprep.subr.mxu0 0.0
  %59 = vmatpush1.msra.mxu0 0.0
  %60 = vmatprep.subr.mxu0 0.0
  %61 = vmatpush1.msra.mxu0 %v28
  %62 = vmatprep.subr.mxu0 0.0
  %63 = vmatpush1.msra.mxu0 %v27
  %64 = vmatprep.subr.mxu0 0.0
  %65 = vmatpush1.msra.mxu0 %v26
  %66 = vmatprep.subr.mxu0 0.0
  %67 = vmatpush1.msra.mxu0 %v25
  %68 = vmatprep.subr.mxu0 0.0
  %69 = vmatpush2.msra.mxu0 0.0
  %70 = vmatprep.subr.mxu0 0.0
  %71 = vmatpush2.msra.mxu0 0.0
  %72 = vmatprep.subr.mxu0 0.0
  %73 = vmatpush2.msra.mxu0 0.0
  %74 = vmatprep.subr.mxu0 0.0
  %75 = vmatpush2.msra.mxu0 0.0
  %76 = vmatprep.subr.mxu0 0.0
  %77 = vmatpush2.msra.mxu0 0.0
  %78 = vmatprep.subr.mxu0 0.0
  %79 = vmatpush2.msra.mxu0 0.0
  %80 = vmatprep.subr.mxu0 0.0
  %81 = vmatpush2.msra.mxu0 0.0
  %82 = vmatprep.subr.mxu0 0.0
  %83 = vmatpush2.msra.mxu0 0.0
  %84 = vmatprep.subr.mxu0 0.0
  %85 = vmatpush2.msra.mxu0 0.0
  %86 = vmatprep.subr.mxu0 0.0
  %87 = vmatpush2.msra.mxu0 0.0
  %88 = vmatprep.subr.mxu0 0.0
  %89 = vmatpush2.msra.mxu0 0.0
  %90 = vmatprep.subr.mxu0 0.0
  %91 = vmatpush2.msra.mxu0 0.0
  %92 = vmatprep.subr.mxu0 0.0
  %93 = vmatpush2.msra.mxu0 0.0
  %94 = vmatprep.subr.mxu0 0.0
  %95 = vmatpush2.msra.mxu0 0.0
  %96 = vmatprep.subr.mxu0 0.0
  %97 = vmatpush2.msra.mxu0 0.0
  %98 = vmatprep.subr.mxu0 0.0
  %99 = vmatpush2.msra.mxu0 0.0
  %100 = vmatprep.mubr.f32.mxu0 0.0
  %101 = vmatmul.mubr.f32.gmra.mxu0 %v31
  %v102 = vpop.f32.mrf.mxu0
  %v103 = vadd.f32 0.0, %v102
  %v104 = vpop.f32.mrf.mxu0
  %105 = vmatprep.mubr.f32.mxu0 0.0
  %106 = vmatmul.mubr.f32.gmra.mxu0 %v34
  %v107 = vpop.f32.mrf.mxu0
  %v108 = vadd.f32 0.0, %v107
  %v109 = vpop.f32.mrf.mxu0
  %110 = vdwg.mxu0
  %v111 = vadd.f32 %v21, %v103
  %v112 = vadd.f32 %v22, %v108
  %113 = vst.msk [vmem:[#allocation2] sm:$0xff] %vm29, %v111
  %114 = vst.msk [vmem:[#allocation2 + $0x8] sm:$0xff] %vm29, %v112
  // Predicated region
  $region18: #{_lambda_.25} parent=0 // pred_check
    %p115 = pneg %p14
  $region19: #{_lambda_.25} parent=0 // pred_check_branch
    %117 = sbr.rel (%p115) target = $region21
  $region20: #{_lambda_.25} parent=0 // pred_region
    %v118 = vld [vmem:[#allocation2] sm:$0xff]
    %v119 = vld [vmem:[#allocation2 + $0x8] sm:$0xff]
    %v120 = vld [vmem:[%s2] sm:$0x1]
    %v122 = vlaneseq
    %v123 = vshrl.u32 %v122, 7
    %v124 = vsub.s32 0, %v123
    %v125 = vrot.slane %v120, %v124
    %v127 = vadd.f32 %v118, %v125
    %v128 = vadd.f32 %v119, %v125
    %129 = vst.msk [vmem:[%s3] sm:$0xff] %vm29, %v127
    %130 = vst.msk [vmem:[%s3 + $0x8] sm:$0xff] %vm29, %v128
  $region21: #{_lambda_.25} parent=0 // pred_fallthru
    _
  // Predicated region
  $region22: #{_lambda_.25} parent=0 // pred_check
    _
  $region23: #{_lambda_.25} parent=0 // pred_check_branch
    %132 = sbr.rel (0) target = $region25
  $region24: #{_lambda_.25} parent=0 // pred_region
    _
  $region25: #{_lambda_.25} parent=0 // pred_fallthru
    _
  // Predicated region
  $region26: #{_lambda_.25} parent=0 // pred_check
    _
  $region27: #{_lambda_.25} parent=0 // pred_check_branch
    %134 = sbr.rel (0) target = $region29
  $region28: #{_lambda_.25} parent=0 // pred_region
    _
  $region29: #{_lambda_.25} parent=0 // pred_fallthru
    _

</llo_original>
